<compile_context>
chip_gen: v7x
topology: tpu7x:2x2x1
jax: 0.10.0
libtpu: 0.0.40
codegen_flags: <defaults>
</compile_context>

<pallas_src>
import functools

import jax
import jax.numpy as jnp
from jax import lax
from jax.experimental import pallas as pl
from jax.experimental.pallas import tpu as pltpu

HEAD_DIM = 32
BN_EPS = 1e-5
LS_INIT = 1e-5   # layer_scale_init_value


def _gelu(x):
    # TODO(synk): PyTorch nn.GELU() default is the exact erf form; the tanh approximation is
    # used here (lowering-safe on Mosaic), max abs deviation ~3e-3.
    c = jnp.float32(0.7978845608028654)  # sqrt(2/pi)
    return 0.5 * x * (1.0 + jnp.tanh(c * (x + 0.044715 * x * x * x)))


# ---------------------------------------------------------------------------
# Fused kernel: one image (token matrix (N, C)) per grid step.
#   y   = x + MHSA'(x)        (BN1, softmax scale, layer_scale_1 folded into weights)
#   out = y + ConvFFN'(y)     (BN2, layer_scale_2 folded into weights)
# ---------------------------------------------------------------------------
def _fused_block_kernel(x_ref, wqkv_ref, bqkv_ref, wproj_ref, bproj_ref,
                        wdw_ref, w1_ref, b1_ref, w2_ref, b2_ref, o_ref, *, W):
    x = x_ref[0].astype(jnp.float32)                    # (N, C)
    N, C = x.shape
    hd = HEAD_DIM
    nh = C // hd

    # ----------------------- stage 1: MHSA --------------------------------
    qkv = jnp.dot(x.astype(jnp.bfloat16), wqkv_ref[...],
                  preferred_element_type=jnp.float32) + bqkv_ref[...]       # (N, 3C)

    proj = None
    for h in range(nh):                                 # small static head loop
        q = qkv[:, h * hd:(h + 1) * hd]
        k = qkv[:, C + h * hd:C + (h + 1) * hd]
        v = qkv[:, 2 * C + h * hd:2 * C + (h + 1) * hd]
        # q @ k^T without materializing a transpose (contract last dims of both).
        s = lax.dot_general(q, k, (((1,), (1,)), ((), ())),
                            preferred_element_type=jnp.float32)             # (N, N)
        s = s - jnp.max(s, axis=-1, keepdims=True)
        p = jnp.exp(s)
        attn = p * pl.reciprocal(jnp.sum(p, axis=-1, keepdims=True), approx=True)
        o_h = jnp.dot(attn, v, preferred_element_type=jnp.float32)          # (N, hd)
        # (concat_h o_h) @ Wproj == sum_h o_h @ Wproj[h*hd:(h+1)*hd]  -> no lane concat
        contrib = jnp.dot(o_h.astype(jnp.bfloat16),
                          wproj_ref[h * hd:(h + 1) * hd, :],
                          preferred_element_type=jnp.float32)               # (N, C)
        proj = contrib if proj is None else proj + contrib
    y = x + proj + bproj_ref[...]                                           # (N, C)

    # ----------------------- stage 2: ConvFFN ------------------------------
    PAD = 3
    pad_rows = PAD * W
    npad = N + 2 * pad_rows
    zpad = jnp.zeros((pad_rows, C), jnp.float32)
    ypad = jnp.concatenate([zpad, y, zpad], axis=0)                         # (npad, C)

    # column (j) coordinate of each token; row (i) bounds are handled by the zero pads.
    col = lax.broadcasted_iota(jnp.int32, (N, 1), 0) % W

    # 7x7 depthwise conv: 7 sublane rolls (one per horizontal offset dw, XLU) +
    # 49 aligned value slices and FMAs (VPU). Two accumulators expose ILP.
    acc0 = None
    acc1 = None
    for dw in range(-PAD, PAD + 1):
        if dw == 0:
            cdw = ypad
        else:
            # cdw[r] = ypad[(r + dw) mod npad]; wrapped rows land in the zero pads or
            # are killed by the column mask below.
            cdw = pltpu.roll(ypad, shift=(-dw) % npad, axis=0)
        part = None
        for dh in range(-PAD, PAD + 1):
            start = (dh + PAD) * W                       # sublane-aligned for W % 8 == 0
            tap = cdw[start:start + N, :]                                   # (N, C)
            t = (dh + PAD) * 7 + (dw + PAD)
            wrow = wdw_ref[t:t + 1, :]                                      # (1, C)
            term = tap * wrow
            part = term if part is None else part + term
        if dw != 0:
            jc = col + dw
            mask = ((jc >= 0) & (jc < W)).astype(jnp.float32)               # (N, 1)
            part = part * mask
        if (dw + PAD) % 2 == 0:
            acc0 = part if acc0 is None else acc0 + part
        else:
            acc1 = part if acc1 is None else acc1 + part
    conv = acc0 + acc1                                                      # (N, C)

    # 1x1 convs == per-token matmuls over channels (BN2 folded into w1/b1, ls2 into w2/b2)
    h1 = jnp.dot(conv.astype(jnp.bfloat16), w1_ref[...],
                 preferred_element_type=jnp.float32) + b1_ref[...]          # (N, hidden)
    g = _gelu(h1)
    ffn = jnp.dot(g.astype(jnp.bfloat16), w2_ref[...],
                  preferred_element_type=jnp.float32) + b2_ref[...]         # (N, C)

    o_ref[0] = (y + ffn).astype(o_ref.dtype)


# ---------------------------------------------------------------------------
# Parameters (deterministic synthetic init, shapes follow the PyTorch module)
# ---------------------------------------------------------------------------
def make_params(key, dim, mlp_ratio=4.0):
    hidden = int(dim * mlp_ratio)
    ks = jax.random.split(key, 14)
    p = {}
    # norm = BatchNorm2d(dim)
    p['bn1_gamma'] = 1.0 + 0.1 * jax.random.normal(ks[0], (dim,), jnp.float32)
    p['bn1_beta'] = 0.1 * jax.random.normal(ks[1], (dim,), jnp.float32)
    p['bn1_mean'] = 0.1 * jax.random.normal(ks[2], (dim,), jnp.float32)
    p['bn1_var'] = 1.0 + 0.1 * jax.random.uniform(ks[3], (dim,), jnp.float32)
    # MHSA: qkv Linear(dim, 3*dim, bias=False), proj Linear(dim, dim)
    p['wqkv'] = 0.02 * jax.random.normal(ks[4], (dim, 3 * dim), jnp.float32)   # x @ wqkv
    p['wproj'] = 0.02 * jax.random.normal(ks[5], (dim, dim), jnp.float32)
    p['bproj'] = 0.02 * jax.random.normal(ks[6], (dim,), jnp.float32)
    # ConvFFN: depthwise 7x7 (C,1,7,7), BN, fc1 (hidden,C,1,1), fc2 (C,hidden,1,1)
    p['wdw'] = 0.02 * jax.random.normal(ks[7], (dim, 7, 7), jnp.float32)
    p['bn2_gamma'] = 1.0 + 0.1 * jax.random.normal(ks[8], (dim,), jnp.float32)
    p['bn2_beta'] = 0.1 * jax.random.normal(ks[9], (dim,), jnp.float32)
    p['bn2_mean'] = 0.1 * jax.random.normal(ks[10], (dim,), jnp.float32)
    p['bn2_var'] = 1.0 + 0.1 * jax.random.uniform(ks[11], (dim,), jnp.float32)
    p['w1'] = 0.02 * jax.random.normal(ks[12], (hidden, dim), jnp.float32)
    p['b1'] = jnp.zeros((hidden,), jnp.float32)
    p['w2'] = 0.02 * jax.random.normal(ks[13], (dim, hidden), jnp.float32)
    p['b2'] = jnp.zeros((dim,), jnp.float32)
    # layer scales
    p['ls1'] = LS_INIT * jnp.ones((dim,), jnp.float32)
    p['ls2'] = LS_INIT * jnp.ones((dim,), jnp.float32)
    return p


# ---------------------------------------------------------------------------
# Wrapper (NCHW in / NCHW out, like the PyTorch AttentionBlock)
# ---------------------------------------------------------------------------
@jax.jit
def attention_block_forward(x_nchw, p):
    B, C, H, W = x_nchw.shape
    N = H * W
    hidden = p['w1'].shape[0]
    scale = jnp.float32(HEAD_DIM ** -0.5)
    row = lambda v: v.reshape(1, -1)

    # ---- fold all affine constants into the weights (trace-time, free at runtime) ----
    bn1_s = p['bn1_gamma'] / jnp.sqrt(p['bn1_var'] + BN_EPS)
    bn1_b = p['bn1_beta'] - p['bn1_mean'] * bn1_s
    bn2_s = p['bn2_gamma'] / jnp.sqrt(p['bn2_var'] + BN_EPS)
    bn2_b = p['bn2_beta'] - p['bn2_mean'] * bn2_s

    # BN1 into qkv, and the 1/sqrt(head_dim) softmax scale into the Q columns.
    wqkv = p['wqkv'] * bn1_s[:, None]
    bqkv = bn1_b @ p['wqkv']
    wqkv = wqkv.at[:, :C].multiply(scale)
    bqkv = bqkv.at[:C].multiply(scale)
    # layer_scale_1 into proj
    wproj = p['wproj'] * p['ls1'][None, :]
    bproj = p['bproj'] * p['ls1']
    # BN2 into fc1, layer_scale_2 into fc2
    w1 = p['w1'].T * bn2_s[:, None]                           # (C, hidden)
    b1 = bn2_b @ p['w1'].T + p['b1']                          # (hidden,)
    w2 = p['w2'].T * p['ls2'][None, :]                        # (hidden, C)
    b2 = p['b2'] * p['ls2']                                   # (C,)
    wdw = jnp.transpose(p['wdw'], (1, 2, 0)).reshape(49, C)   # (49, C), tap-major

    bf = jnp.bfloat16
    x_tok = jnp.transpose(x_nchw, (0, 2, 3, 1)).reshape(B, N, C)   # row-major tokens

    out_tok = pl.pallas_call(
        functools.partial(_fused_block_kernel, W=W),
        out_shape=jax.ShapeDtypeStruct((B, N, C), x_nchw.dtype),
        grid=(B,),
        in_specs=[
            pl.BlockSpec((1, N, C), lambda b: (b, 0, 0)),
            pl.BlockSpec((C, 3 * C), lambda b: (0, 0)),
            pl.BlockSpec((1, 3 * C), lambda b: (0, 0)),
            pl.BlockSpec((C, C), lambda b: (0, 0)),
            pl.BlockSpec((1, C), lambda b: (0, 0)),
            pl.BlockSpec((49, C), lambda b: (0, 0)),
            pl.BlockSpec((C, hidden), lambda b: (0, 0)),
            pl.BlockSpec((1, hidden), lambda b: (0, 0)),
            pl.BlockSpec((hidden, C), lambda b: (0, 0)),
            pl.BlockSpec((1, C), lambda b: (0, 0)),
        ],
        out_specs=pl.BlockSpec((1, N, C), lambda b: (b, 0, 0)),
        compiler_params=pltpu.CompilerParams(dimension_semantics=("parallel",)),
    )(x_tok, wqkv.astype(bf), row(bqkv), wproj.astype(bf), row(bproj),
      wdw, w1.astype(bf), row(b1), w2.astype(bf), row(b2))

    return jnp.transpose(out_tok.reshape(B, H, W, C), (0, 3, 1, 2))


# ---------------------------------------------------------------------------
# Pure-JAX reference (mirrors the PyTorch forward, NCHW) for validation
# ---------------------------------------------------------------------------
def reference_forward(x, p):
    B, C, H, W = x.shape
    N = H * W
    nh = C // HEAD_DIM
    bn1_s = p['bn1_gamma'] / jnp.sqrt(p['bn1_var'] + BN_EPS)
    bn1_b = p['bn1_beta'] - p['bn1_mean'] * bn1_s
    xn = x * bn1_s[None, :, None, None] + bn1_b[None, :, None, None]
    t = xn.reshape(B, C, N).transpose(0, 2, 1)
    qkv = (t @ p['wqkv']).reshape(B, N, 3, nh, HEAD_DIM).transpose(2, 0, 3, 1, 4)
    q, k, v = qkv[0], qkv[1], qkv[2]
    attn = jax.nn.softmax((q * HEAD_DIM ** -0.5) @ jnp.swapaxes(k, -1, -2), axis=-1)
    o = (attn @ v).transpose(0, 2, 1, 3).reshape(B, N, C)
    o = o @ p['wproj'] + p['bproj']
    o = o.transpose(0, 2, 1).reshape(B, C, H, W)
    x = x + p['ls1'][None, :, None, None] * o

    dw = lax.conv_general_dilated(
        x, p['wdw'][:, None, :, :], window_strides=(1, 1),
        padding=((3, 3), (3, 3)), feature_group_count=C,
        dimension_numbers=('NCHW', 'OIHW', 'NCHW'))
    bn2_s = p['bn2_gamma'] / jnp.sqrt(p['bn2_var'] + BN_EPS)
    bn2_b = p['bn2_beta'] - p['bn2_mean'] * bn2_s
    dw = dw * bn2_s[None, :, None, None] + bn2_b[None, :, None, None]
    h1 = jnp.einsum('bchw,oc->bohw', dw, p['w1']) + p['b1'][None, :, None, None]
    g = _gelu(h1)
    ffn = jnp.einsum('bohw,co->bchw', g, p['w2']) + p['b2'][None, :, None, None]
    return x + p['ls2'][None, :, None, None] * ffn


if __name__ == "__main__":
    key = jax.random.PRNGKey(0)
    kx, kp = jax.random.split(key)
    B, C, H, W = 2, 64, 8, 8          # dim=64 -> num_heads=2 (head_dim=32), mlp hidden=256
    x = jax.random.normal(kx, (B, C, H, W), jnp.float32)
    params = make_params(kp, C, mlp_ratio=4.0)

    out = jax.block_until_ready(attention_block_forward(x, params))
    ref = reference_forward(x, params)
    assert out.shape == x.shape
    err = float(jnp.max(jnp.abs(out - ref)))
    assert err < 1e-2, f"mismatch vs reference: {err}"

    # Amplified check: with layer_scale_2=1 and 10x ConvFFN weights the ConvFFN branch is
    # O(1) of the output, so structural bugs (conv orientation / masking / offsets) are not
    # hidden behind the default 1e-5 layer scale.
    params_amp = dict(params)
    params_amp['ls2'] = jnp.ones_like(params['ls2'])
    params_amp['wdw'] = 10.0 * params['wdw']
    params_amp['w1'] = 10.0 * params['w1']
    params_amp['w2'] = 10.0 * params['w2']
    out_a = jax.block_until_ready(attention_block_forward(x, params_amp))
    ref_a = reference_forward(x, params_amp)
    scale_a = float(jnp.max(jnp.abs(ref_a - x)))
    err_a = float(jnp.max(jnp.abs(out_a - ref_a)))
    assert err_a < 0.08 * scale_a + 1e-3, f"amplified mismatch: {err_a} (scale {scale_a})"

    print("KERNEL_OK")
</pallas_src>

<mosaic_0001>
module attributes {stable_mosaic.version = 11 : i64} {
  func.func @_fused_block_kernel(%arg0: i32, %arg1: memref<1x64x64xf32, #tpu.memory_space<vmem>>, %arg2: memref<64x192xbf16, #tpu.memory_space<vmem>>, %arg3: memref<1x192xf32, #tpu.memory_space<vmem>>, %arg4: memref<64x64xbf16, #tpu.memory_space<vmem>>, %arg5: memref<1x64xf32, #tpu.memory_space<vmem>>, %arg6: memref<49x64xf32, #tpu.memory_space<vmem>>, %arg7: memref<64x256xbf16, #tpu.memory_space<vmem>>, %arg8: memref<1x256xf32, #tpu.memory_space<vmem>>, %arg9: memref<256x64xbf16, #tpu.memory_space<vmem>>, %arg10: memref<1x64xf32, #tpu.memory_space<vmem>>, %arg11: memref<1x64x64xf32, #tpu.memory_space<vmem>>) attributes {dimension_semantics = [#tpu.dimension_semantics<parallel>], iteration_bounds = array<i64: 2>, scalar_prefetch = 0 : i64, scratch_operands = 0 : i64, tpu.core_type = #tpu.core_type<tc>, window_params = [{transform_indices = @transform_0, window_bounds = array<i64: 1, 64, 64>}, {pipeline_mode = #tpu.pipeline_mode<synchronous>, transform_indices = @transform_1, window_bounds = array<i64: 64, 192>}, {pipeline_mode = #tpu.pipeline_mode<synchronous>, transform_indices = @transform_2, window_bounds = array<i64: 1, 192>}, {pipeline_mode = #tpu.pipeline_mode<synchronous>, transform_indices = @transform_3, window_bounds = array<i64: 64, 64>}, {pipeline_mode = #tpu.pipeline_mode<synchronous>, transform_indices = @transform_4, window_bounds = array<i64: 1, 64>}, {pipeline_mode = #tpu.pipeline_mode<synchronous>, transform_indices = @transform_5, window_bounds = array<i64: 49, 64>}, {pipeline_mode = #tpu.pipeline_mode<synchronous>, transform_indices = @transform_6, window_bounds = array<i64: 64, 256>}, {pipeline_mode = #tpu.pipeline_mode<synchronous>, transform_indices = @transform_7, window_bounds = array<i64: 1, 256>}, {pipeline_mode = #tpu.pipeline_mode<synchronous>, transform_indices = @transform_8, window_bounds = array<i64: 256, 64>}, {pipeline_mode = #tpu.pipeline_mode<synchronous>, transform_indices = @transform_9, window_bounds = array<i64: 1, 64>}, {transform_indices = @transform_10, window_bounds = array<i64: 1, 64, 64>}]} {
    %c0 = arith.constant 0 : index
    %c0_0 = arith.constant 0 : index
    %c0_1 = arith.constant 0 : index
    %0 = vector.load %arg1[%c0, %c0_0, %c0_1] : memref<1x64x64xf32, #tpu.memory_space<vmem>>, vector<1x64x64xf32>
    %1 = vector.shape_cast %0 : vector<1x64x64xf32> to vector<64x64xf32>
    %2 = arith.truncf %1 : vector<64x64xf32> to vector<64x64xbf16>
    %c0_2 = arith.constant 0 : index
    %c0_3 = arith.constant 0 : index
    %3 = vector.load %arg2[%c0_2, %c0_3] : memref<64x192xbf16, #tpu.memory_space<vmem>>, vector<64x192xbf16>
    %cst = arith.constant dense<0.000000e+00> : vector<64x192xf32>
    %4 = tpu.matmul %2, %3, %cst {dimension_numbers = #tpu.dot_dimension_numbers<[1], [0], [0], [1], [0, 0, 1, 1], [], []>} : vector<64x64xbf16>, vector<64x192xbf16>, vector<64x192xf32> -> vector<64x192xf32>
    %c0_4 = arith.constant 0 : index
    %c0_5 = arith.constant 0 : index
    %5 = vector.load %arg3[%c0_4, %c0_5] : memref<1x192xf32, #tpu.memory_space<vmem>>, vector<1x192xf32>
    %6 = vector.broadcast %5 : vector<1x192xf32> to vector<64x192xf32>
    %7 = arith.addf %4, %6 : vector<64x192xf32>
    %8 = vector.extract_strided_slice %7 {offsets = [0, 0], sizes = [64, 32], strides = [1, 1]} : vector<64x192xf32> to vector<64x32xf32>
    %9 = vector.extract_strided_slice %7 {offsets = [0, 64], sizes = [64, 32], strides = [1, 1]} : vector<64x192xf32> to vector<64x32xf32>
    %10 = vector.extract_strided_slice %7 {offsets = [0, 128], sizes = [64, 32], strides = [1, 1]} : vector<64x192xf32> to vector<64x32xf32>
    %cst_6 = arith.constant dense<0.000000e+00> : vector<64x64xf32>
    %11 = tpu.matmul %8, %9, %cst_6 {dimension_numbers = #tpu.dot_dimension_numbers<[1], [1], [0], [0], [0, 0, 1, 0], [], []>} : vector<64x32xf32>, vector<64x32xf32>, vector<64x64xf32> -> vector<64x64xf32>
    %cst_7 = arith.constant dense<0xFF800000> : vector<64xf32>
    %12 = vector.multi_reduction <maximumf>, %11, %cst_7 [1] : vector<64x64xf32> to vector<64xf32>
    %13 = vector.shape_cast %12 : vector<64xf32> to vector<64x1xf32>
    %14 = vector.broadcast %13 : vector<64x1xf32> to vector<64x64xf32>
    %15 = arith.subf %11, %14 : vector<64x64xf32>
    %16 = math.exp %15 : vector<64x64xf32>
    %cst_8 = arith.constant dense<0.000000e+00> : vector<64xf32>
    %17 = vector.multi_reduction <add>, %16, %cst_8 [1] : vector<64x64xf32> to vector<64xf32>
    %18 = vector.shape_cast %17 : vector<64xf32> to vector<64x1xf32>
    %19 = tpu.reciprocal %18 {approx = true} : vector<64x1xf32> -> vector<64x1xf32>
    %20 = vector.broadcast %19 : vector<64x1xf32> to vector<64x64xf32>
    %21 = arith.mulf %16, %20 : vector<64x64xf32>
    %cst_9 = arith.constant dense<0.000000e+00> : vector<64x32xf32>
    %22 = tpu.matmul %21, %10, %cst_9 {dimension_numbers = #tpu.dot_dimension_numbers<[1], [0], [0], [1], [0, 0, 1, 1], [], []>} : vector<64x64xf32>, vector<64x32xf32>, vector<64x32xf32> -> vector<64x32xf32>
    %23 = arith.truncf %22 : vector<64x32xf32> to vector<64x32xbf16>
    %c0_10 = arith.constant 0 : index
    %c0_11 = arith.constant 0 : index
    %24 = vector.load %arg4[%c0_10, %c0_11] : memref<64x64xbf16, #tpu.memory_space<vmem>>, vector<32x64xbf16>
    %cst_12 = arith.constant dense<0.000000e+00> : vector<64x64xf32>
    %25 = tpu.matmul %23, %24, %cst_12 {dimension_numbers = #tpu.dot_dimension_numbers<[1], [0], [0], [1], [0, 0, 1, 1], [], []>} : vector<64x32xbf16>, vector<32x64xbf16>, vector<64x64xf32> -> vector<64x64xf32>
    %26 = vector.extract_strided_slice %7 {offsets = [0, 32], sizes = [64, 32], strides = [1, 1]} : vector<64x192xf32> to vector<64x32xf32>
    %27 = vector.extract_strided_slice %7 {offsets = [0, 96], sizes = [64, 32], strides = [1, 1]} : vector<64x192xf32> to vector<64x32xf32>
    %28 = vector.extract_strided_slice %7 {offsets = [0, 160], sizes = [64, 32], strides = [1, 1]} : vector<64x192xf32> to vector<64x32xf32>
    %cst_13 = arith.constant dense<0.000000e+00> : vector<64x64xf32>
    %29 = tpu.matmul %26, %27, %cst_13 {dimension_numbers = #tpu.dot_dimension_numbers<[1], [1], [0], [0], [0, 0, 1, 0], [], []>} : vector<64x32xf32>, vector<64x32xf32>, vector<64x64xf32> -> vector<64x64xf32>
    %cst_14 = arith.constant dense<0xFF800000> : vector<64xf32>
    %30 = vector.multi_reduction <maximumf>, %29, %cst_14 [1] : vector<64x64xf32> to vector<64xf32>
    %31 = vector.shape_cast %30 : vector<64xf32> to vector<64x1xf32>
    %32 = vector.broadcast %31 : vector<64x1xf32> to vector<64x64xf32>
    %33 = arith.subf %29, %32 : vector<64x64xf32>
    %34 = math.exp %33 : vector<64x64xf32>
    %cst_15 = arith.constant dense<0.000000e+00> : vector<64xf32>
    %35 = vector.multi_reduction <add>, %34, %cst_15 [1] : vector<64x64xf32> to vector<64xf32>
    %36 = vector.shape_cast %35 : vector<64xf32> to vector<64x1xf32>
    %37 = tpu.reciprocal %36 {approx = true} : vector<64x1xf32> -> vector<64x1xf32>
    %38 = vector.broadcast %37 : vector<64x1xf32> to vector<64x64xf32>
    %39 = arith.mulf %34, %38 : vector<64x64xf32>
    %cst_16 = arith.constant dense<0.000000e+00> : vector<64x32xf32>
    %40 = tpu.matmul %39, %28, %cst_16 {dimension_numbers = #tpu.dot_dimension_numbers<[1], [0], [0], [1], [0, 0, 1, 1], [], []>} : vector<64x64xf32>, vector<64x32xf32>, vector<64x32xf32> -> vector<64x32xf32>
    %41 = arith.truncf %40 : vector<64x32xf32> to vector<64x32xbf16>
    %c32 = arith.constant 32 : index
    %c0_17 = arith.constant 0 : index
    %42 = vector.load %arg4[%c32, %c0_17] : memref<64x64xbf16, #tpu.memory_space<vmem>>, vector<32x64xbf16>
    %cst_18 = arith.constant dense<0.000000e+00> : vector<64x64xf32>
    %43 = tpu.matmul %41, %42, %cst_18 {dimension_numbers = #tpu.dot_dimension_numbers<[1], [0], [0], [1], [0, 0, 1, 1], [], []>} : vector<64x32xbf16>, vector<32x64xbf16>, vector<64x64xf32> -> vector<64x64xf32>
    %44 = arith.addf %25, %43 : vector<64x64xf32>
    %45 = arith.addf %1, %44 : vector<64x64xf32>
    %c0_19 = arith.constant 0 : index
    %c0_20 = arith.constant 0 : index
    %46 = vector.load %arg5[%c0_19, %c0_20] : memref<1x64xf32, #tpu.memory_space<vmem>>, vector<1x64xf32>
    %47 = vector.broadcast %46 : vector<1x64xf32> to vector<64x64xf32>
    %48 = arith.addf %45, %47 : vector<64x64xf32>
    %cst_21 = arith.constant 0.000000e+00 : f32
    %49 = vector.broadcast %cst_21 : f32 to vector<24x64xf32>
    %50 = tpu.concatenate %49, %48, %49 in 0 : vector<24x64xf32>, vector<64x64xf32>, vector<24x64xf32> -> vector<112x64xf32>
    %51 = tpu.iota {dimensions = array<i32: 0>} : vector<64x1xi32>
    %c8_i32 = arith.constant 8 : i32
    %c0_i32 = arith.constant 0 : i32
    %52 = arith.cmpi eq, %c8_i32, %c0_i32 : i32
    %c1_i32 = arith.constant 1 : i32
    %53 = arith.select %52, %c1_i32, %c8_i32 : i32
    %54 = vector.broadcast %53 : i32 to vector<64x1xi32>
    %55 = arith.remsi %51, %54 : vector<64x1xi32>
    %c0_i32_22 = arith.constant 0 : i32
    %56 = vector.broadcast %c0_i32_22 : i32 to vector<64x1xi32>
    %57 = arith.cmpi ne, %55, %56 : vector<64x1xi32>
    %c0_i32_23 = arith.constant 0 : i32
    %58 = vector.broadcast %c0_i32_23 : i32 to vector<64x1xi32>
    %59 = arith.cmpi slt, %55, %58 : vector<64x1xi32>
    %c0_i32_24 = arith.constant 0 : i32
    %60 = arith.cmpi slt, %53, %c0_i32_24 : i32
    %61 = vector.broadcast %60 : i1 to vector<64x1xi1>
    %62 = vector.broadcast %61 : vector<64x1xi1> to vector<64x1xi1>
    %63 = arith.xori %59, %62 : vector<64x1xi1>
    %64 = arith.andi %63, %57 : vector<64x1xi1>
    %65 = vector.broadcast %53 : i32 to vector<64x1xi32>
    %66 = arith.addi %55, %65 : vector<64x1xi32>
    %67 = arith.select %64, %66, %55 : vector<64x1xi1>, vector<64x1xi32>
    %c3_i32 = arith.constant 3 : i32
    %68 = tpu.dynamic_rotate %50 by %c3_i32 dim 0 : vector<112x64xf32>, i32 -> vector<112x64xf32>
    %69 = vector.extract_strided_slice %68 {offsets = [0, 0], sizes = [64, 64], strides = [1, 1]} : vector<112x64xf32> to vector<64x64xf32>
    %c0_25 = arith.constant 0 : index
    %c0_26 = arith.constant 0 : index
    %70 = vector.load %arg6[%c0_25, %c0_26] : memref<49x64xf32, #tpu.memory_space<vmem>>, vector<1x64xf32>
    %71 = vector.broadcast %70 : vector<1x64xf32> to vector<64x64xf32>
    %72 = arith.mulf %69, %71 : vector<64x64xf32>
    %73 = vector.extract_strided_slice %68 {offsets = [8, 0], sizes = [64, 64], strides = [1, 1]} : vector<112x64xf32> to vector<64x64xf32>
    %c7 = arith.constant 7 : index
    %c0_27 = arith.constant 0 : index
    %74 = vector.load %arg6[%c7, %c0_27] : memref<49x64xf32, #tpu.memory_space<vmem>>, vector<1x64xf32>
    %75 = vector.broadcast %74 : vector<1x64xf32> to vector<64x64xf32>
    %76 = arith.mulf %73, %75 : vector<64x64xf32>
    %77 = arith.addf %72, %76 : vector<64x64xf32>
    %78 = vector.extract_strided_slice %68 {offsets = [16, 0], sizes = [64, 64], strides = [1, 1]} : vector<112x64xf32> to vector<64x64xf32>
    %c14 = arith.constant 14 : index
    %c0_28 = arith.constant 0 : index
    %79 = vector.load %arg6[%c14, %c0_28] : memref<49x64xf32, #tpu.memory_space<vmem>>, vector<1x64xf32>
    %80 = vector.broadcast %79 : vector<1x64xf32> to vector<64x64xf32>
    %81 = arith.mulf %78, %80 : vector<64x64xf32>
    %82 = arith.addf %77, %81 : vector<64x64xf32>
    %83 = vector.extract_strided_slice %68 {offsets = [24, 0], sizes = [64, 64], strides = [1, 1]} : vector<112x64xf32> to vector<64x64xf32>
    %c21 = arith.constant 21 : index
    %c0_29 = arith.constant 0 : index
    %84 = vector.load %arg6[%c21, %c0_29] : memref<49x64xf32, #tpu.memory_space<vmem>>, vector<1x64xf32>
    %85 = vector.broadcast %84 : vector<1x64xf32> to vector<64x64xf32>
    %86 = arith.mulf %83, %85 : vector<64x64xf32>
    %87 = arith.addf %82, %86 : vector<64x64xf32>
    %88 = vector.extract_strided_slice %68 {offsets = [32, 0], sizes = [64, 64], strides = [1, 1]} : vector<112x64xf32> to vector<64x64xf32>
    %c28 = arith.constant 28 : index
    %c0_30 = arith.constant 0 : index
    %89 = vector.load %arg6[%c28, %c0_30] : memref<49x64xf32, #tpu.memory_space<vmem>>, vector<1x64xf32>
    %90 = vector.broadcast %89 : vector<1x64xf32> to vector<64x64xf32>
    %91 = arith.mulf %88, %90 : vector<64x64xf32>
    %92 = arith.addf %87, %91 : vector<64x64xf32>
    %93 = vector.extract_strided_slice %68 {offsets = [40, 0], sizes = [64, 64], strides = [1, 1]} : vector<112x64xf32> to vector<64x64xf32>
    %c35 = arith.constant 35 : index
    %c0_31 = arith.constant 0 : index
    %94 = vector.load %arg6[%c35, %c0_31] : memref<49x64xf32, #tpu.memory_space<vmem>>, vector<1x64xf32>
    %95 = vector.broadcast %94 : vector<1x64xf32> to vector<64x64xf32>
    %96 = arith.mulf %93, %95 : vector<64x64xf32>
    %97 = arith.addf %92, %96 : vector<64x64xf32>
    %98 = vector.extract_strided_slice %68 {offsets = [48, 0], sizes = [64, 64], strides = [1, 1]} : vector<112x64xf32> to vector<64x64xf32>
    %c42 = arith.constant 42 : index
    %c0_32 = arith.constant 0 : index
    %99 = vector.load %arg6[%c42, %c0_32] : memref<49x64xf32, #tpu.memory_space<vmem>>, vector<1x64xf32>
    %100 = vector.broadcast %99 : vector<1x64xf32> to vector<64x64xf32>
    %101 = arith.mulf %98, %100 : vector<64x64xf32>
    %102 = arith.addf %97, %101 : vector<64x64xf32>
    %c-3_i32 = arith.constant -3 : i32
    %103 = vector.broadcast %c-3_i32 : i32 to vector<64x1xi32>
    %104 = arith.addi %67, %103 : vector<64x1xi32>
    %c0_i32_33 = arith.constant 0 : i32
    %105 = vector.broadcast %c0_i32_33 : i32 to vector<64x1xi32>
    %106 = arith.cmpi sge, %104, %105 : vector<64x1xi32>
    %c8_i32_34 = arith.constant 8 : i32
    %107 = vector.broadcast %c8_i32_34 : i32 to vector<64x1xi32>
    %108 = arith.cmpi slt, %104, %107 : vector<64x1xi32>
    %109 = arith.andi %106, %108 : vector<64x1xi1>
    %110 = arith.extui %109 : vector<64x1xi1> to vector<64x1xi32>
    %111 = arith.sitofp %110 : vector<64x1xi32> to vector<64x1xf32>
    %112 = vector.broadcast %111 : vector<64x1xf32> to vector<64x64xf32>
    %113 = arith.mulf %102, %112 : vector<64x64xf32>
    %c2_i32 = arith.constant 2 : i32
    %114 = tpu.dynamic_rotate %50 by %c2_i32 dim 0 : vector<112x64xf32>, i32 -> vector<112x64xf32>
    %115 = vector.extract_strided_slice %114 {offsets = [0, 0], sizes = [64, 64], strides = [1, 1]} : vector<112x64xf32> to vector<64x64xf32>
    %c1 = arith.constant 1 : index
    %c0_35 = arith.constant 0 : index
    %116 = vector.load %arg6[%c1, %c0_35] : memref<49x64xf32, #tpu.memory_space<vmem>>, vector<1x64xf32>
    %117 = vector.broadcast %116 : vector<1x64xf32> to vector<64x64xf32>
    %118 = arith.mulf %115, %117 : vector<64x64xf32>
    %119 = vector.extract_strided_slice %114 {offsets = [8, 0], sizes = [64, 64], strides = [1, 1]} : vector<112x64xf32> to vector<64x64xf32>
    %c8 = arith.constant 8 : index
    %c0_36 = arith.constant 0 : index
    %120 = vector.load %arg6[%c8, %c0_36] : memref<49x64xf32, #tpu.memory_space<vmem>>, vector<1x64xf32>
    %121 = vector.broadcast %120 : vector<1x64xf32> to vector<64x64xf32>
    %122 = arith.mulf %119, %121 : vector<64x64xf32>
    %123 = arith.addf %118, %122 : vector<64x64xf32>
    %124 = vector.extract_strided_slice %114 {offsets = [16, 0], sizes = [64, 64], strides = [1, 1]} : vector<112x64xf32> to vector<64x64xf32>
    %c15 = arith.constant 15 : index
    %c0_37 = arith.constant 0 : index
    %125 = vector.load %arg6[%c15, %c0_37] : memref<49x64xf32, #tpu.memory_space<vmem>>, vector<1x64xf32>
    %126 = vector.broadcast %125 : vector<1x64xf32> to vector<64x64xf32>
    %127 = arith.mulf %124, %126 : vector<64x64xf32>
    %128 = arith.addf %123, %127 : vector<64x64xf32>
    %129 = vector.extract_strided_slice %114 {offsets = [24, 0], sizes = [64, 64], strides = [1, 1]} : vector<112x64xf32> to vector<64x64xf32>
    %c22 = arith.constant 22 : index
    %c0_38 = arith.constant 0 : index
    %130 = vector.load %arg6[%c22, %c0_38] : memref<49x64xf32, #tpu.memory_space<vmem>>, vector<1x64xf32>
    %131 = vector.broadcast %130 : vector<1x64xf32> to vector<64x64xf32>
    %132 = arith.mulf %129, %131 : vector<64x64xf32>
    %133 = arith.addf %128, %132 : vector<64x64xf32>
    %134 = vector.extract_strided_slice %114 {offsets = [32, 0], sizes = [64, 64], strides = [1, 1]} : vector<112x64xf32> to vector<64x64xf32>
    %c29 = arith.constant 29 : index
    %c0_39 = arith.constant 0 : index
    %135 = vector.load %arg6[%c29, %c0_39] : memref<49x64xf32, #tpu.memory_space<vmem>>, vector<1x64xf32>
    %136 = vector.broadcast %135 : vector<1x64xf32> to vector<64x64xf32>
    %137 = arith.mulf %134, %136 : vector<64x64xf32>
    %138 = arith.addf %133, %137 : vector<64x64xf32>
    %139 = vector.extract_strided_slice %114 {offsets = [40, 0], sizes = [64, 64], strides = [1, 1]} : vector<112x64xf32> to vector<64x64xf32>
    %c36 = arith.constant 36 : index
    %c0_40 = arith.constant 0 : index
    %140 = vector.load %arg6[%c36, %c0_40] : memref<49x64xf32, #tpu.memory_space<vmem>>, vector<1x64xf32>
    %141 = vector.broadcast %140 : vector<1x64xf32> to vector<64x64xf32>
    %142 = arith.mulf %139, %141 : vector<64x64xf32>
    %143 = arith.addf %138, %142 : vector<64x64xf32>
    %144 = vector.extract_strided_slice %114 {offsets = [48, 0], sizes = [64, 64], strides = [1, 1]} : vector<112x64xf32> to vector<64x64xf32>
    %c43 = arith.constant 43 : index
    %c0_41 = arith.constant 0 : index
    %145 = vector.load %arg6[%c43, %c0_41] : memref<49x64xf32, #tpu.memory_space<vmem>>, vector<1x64xf32>
    %146 = vector.broadcast %145 : vector<1x64xf32> to vector<64x64xf32>
    %147 = arith.mulf %144, %146 : vector<64x64xf32>
    %148 = arith.addf %143, %147 : vector<64x64xf32>
    %c-2_i32 = arith.constant -2 : i32
    %149 = vector.broadcast %c-2_i32 : i32 to vector<64x1xi32>
    %150 = arith.addi %67, %149 : vector<64x1xi32>
    %c0_i32_42 = arith.constant 0 : i32
    %151 = vector.broadcast %c0_i32_42 : i32 to vector<64x1xi32>
    %152 = arith.cmpi sge, %150, %151 : vector<64x1xi32>
    %c8_i32_43 = arith.constant 8 : i32
    %153 = vector.broadcast %c8_i32_43 : i32 to vector<64x1xi32>
    %154 = arith.cmpi slt, %150, %153 : vector<64x1xi32>
    %155 = arith.andi %152, %154 : vector<64x1xi1>
    %156 = arith.extui %155 : vector<64x1xi1> to vector<64x1xi32>
    %157 = arith.sitofp %156 : vector<64x1xi32> to vector<64x1xf32>
    %158 = vector.broadcast %157 : vector<64x1xf32> to vector<64x64xf32>
    %159 = arith.mulf %148, %158 : vector<64x64xf32>
    %c1_i32_44 = arith.constant 1 : i32
    %160 = tpu.dynamic_rotate %50 by %c1_i32_44 dim 0 : vector<112x64xf32>, i32 -> vector<112x64xf32>
    %161 = vector.extract_strided_slice %160 {offsets = [0, 0], sizes = [64, 64], strides = [1, 1]} : vector<112x64xf32> to vector<64x64xf32>
    %c2 = arith.constant 2 : index
    %c0_45 = arith.constant 0 : index
    %162 = vector.load %arg6[%c2, %c0_45] : memref<49x64xf32, #tpu.memory_space<vmem>>, vector<1x64xf32>
    %163 = vector.broadcast %162 : vector<1x64xf32> to vector<64x64xf32>
    %164 = arith.mulf %161, %163 : vector<64x64xf32>
    %165 = vector.extract_strided_slice %160 {offsets = [8, 0], sizes = [64, 64], strides = [1, 1]} : vector<112x64xf32> to vector<64x64xf32>
    %c9 = arith.constant 9 : index
    %c0_46 = arith.constant 0 : index
    %166 = vector.load %arg6[%c9, %c0_46] : memref<49x64xf32, #tpu.memory_space<vmem>>, vector<1x64xf32>
    %167 = vector.broadcast %166 : vector<1x64xf32> to vector<64x64xf32>
    %168 = arith.mulf %165, %167 : vector<64x64xf32>
    %169 = arith.addf %164, %168 : vector<64x64xf32>
    %170 = vector.extract_strided_slice %160 {offsets = [16, 0], sizes = [64, 64], strides = [1, 1]} : vector<112x64xf32> to vector<64x64xf32>
    %c16 = arith.constant 16 : index
    %c0_47 = arith.constant 0 : index
    %171 = vector.load %arg6[%c16, %c0_47] : memref<49x64xf32, #tpu.memory_space<vmem>>, vector<1x64xf32>
    %172 = vector.broadcast %171 : vector<1x64xf32> to vector<64x64xf32>
    %173 = arith.mulf %170, %172 : vector<64x64xf32>
    %174 = arith.addf %169, %173 : vector<64x64xf32>
    %175 = vector.extract_strided_slice %160 {offsets = [24, 0], sizes = [64, 64], strides = [1, 1]} : vector<112x64xf32> to vector<64x64xf32>
    %c23 = arith.constant 23 : index
    %c0_48 = arith.constant 0 : index
    %176 = vector.load %arg6[%c23, %c0_48] : memref<49x64xf32, #tpu.memory_space<vmem>>, vector<1x64xf32>
    %177 = vector.broadcast %176 : vector<1x64xf32> to vector<64x64xf32>
    %178 = arith.mulf %175, %177 : vector<64x64xf32>
    %179 = arith.addf %174, %178 : vector<64x64xf32>
    %180 = vector.extract_strided_slice %160 {offsets = [32, 0], sizes = [64, 64], strides = [1, 1]} : vector<112x64xf32> to vector<64x64xf32>
    %c30 = arith.constant 30 : index
    %c0_49 = arith.constant 0 : index
    %181 = vector.load %arg6[%c30, %c0_49] : memref<49x64xf32, #tpu.memory_space<vmem>>, vector<1x64xf32>
    %182 = vector.broadcast %181 : vector<1x64xf32> to vector<64x64xf32>
    %183 = arith.mulf %180, %182 : vector<64x64xf32>
    %184 = arith.addf %179, %183 : vector<64x64xf32>
    %185 = vector.extract_strided_slice %160 {offsets = [40, 0], sizes = [64, 64], strides = [1, 1]} : vector<112x64xf32> to vector<64x64xf32>
    %c37 = arith.constant 37 : index
    %c0_50 = arith.constant 0 : index
    %186 = vector.load %arg6[%c37, %c0_50] : memref<49x64xf32, #tpu.memory_space<vmem>>, vector<1x64xf32>
    %187 = vector.broadcast %186 : vector<1x64xf32> to vector<64x64xf32>
    %188 = arith.mulf %185, %187 : vector<64x64xf32>
    %189 = arith.addf %184, %188 : vector<64x64xf32>
    %190 = vector.extract_strided_slice %160 {offsets = [48, 0], sizes = [64, 64], strides = [1, 1]} : vector<112x64xf32> to vector<64x64xf32>
    %c44 = arith.constant 44 : index
    %c0_51 = arith.constant 0 : index
    %191 = vector.load %arg6[%c44, %c0_51] : memref<49x64xf32, #tpu.memory_space<vmem>>, vector<1x64xf32>
    %192 = vector.broadcast %191 : vector<1x64xf32> to vector<64x64xf32>
    %193 = arith.mulf %190, %192 : vector<64x64xf32>
    %194 = arith.addf %189, %193 : vector<64x64xf32>
    %c-1_i32 = arith.constant -1 : i32
    %195 = vector.broadcast %c-1_i32 : i32 to vector<64x1xi32>
    %196 = arith.addi %67, %195 : vector<64x1xi32>
    %c0_i32_52 = arith.constant 0 : i32
    %197 = vector.broadcast %c0_i32_52 : i32 to vector<64x1xi32>
    %198 = arith.cmpi sge, %196, %197 : vector<64x1xi32>
    %c8_i32_53 = arith.constant 8 : i32
    %199 = vector.broadcast %c8_i32_53 : i32 to vector<64x1xi32>
    %200 = arith.cmpi slt, %196, %199 : vector<64x1xi32>
    %201 = arith.andi %198, %200 : vector<64x1xi1>
    %202 = arith.extui %201 : vector<64x1xi1> to vector<64x1xi32>
    %203 = arith.sitofp %202 : vector<64x1xi32> to vector<64x1xf32>
    %204 = vector.broadcast %203 : vector<64x1xf32> to vector<64x64xf32>
    %205 = arith.mulf %194, %204 : vector<64x64xf32>
    %206 = arith.addf %113, %205 : vector<64x64xf32>
    %207 = vector.extract_strided_slice %50 {offsets = [0, 0], sizes = [64, 64], strides = [1, 1]} : vector<112x64xf32> to vector<64x64xf32>
    %c3 = arith.constant 3 : index
    %c0_54 = arith.constant 0 : index
    %208 = vector.load %arg6[%c3, %c0_54] : memref<49x64xf32, #tpu.memory_space<vmem>>, vector<1x64xf32>
    %209 = vector.broadcast %208 : vector<1x64xf32> to vector<64x64xf32>
    %210 = arith.mulf %207, %209 : vector<64x64xf32>
    %211 = vector.extract_strided_slice %50 {offsets = [8, 0], sizes = [64, 64], strides = [1, 1]} : vector<112x64xf32> to vector<64x64xf32>
    %c10 = arith.constant 10 : index
    %c0_55 = arith.constant 0 : index
    %212 = vector.load %arg6[%c10, %c0_55] : memref<49x64xf32, #tpu.memory_space<vmem>>, vector<1x64xf32>
    %213 = vector.broadcast %212 : vector<1x64xf32> to vector<64x64xf32>
    %214 = arith.mulf %211, %213 : vector<64x64xf32>
    %215 = arith.addf %210, %214 : vector<64x64xf32>
    %216 = vector.extract_strided_slice %50 {offsets = [16, 0], sizes = [64, 64], strides = [1, 1]} : vector<112x64xf32> to vector<64x64xf32>
    %c17 = arith.constant 17 : index
    %c0_56 = arith.constant 0 : index
    %217 = vector.load %arg6[%c17, %c0_56] : memref<49x64xf32, #tpu.memory_space<vmem>>, vector<1x64xf32>
    %218 = vector.broadcast %217 : vector<1x64xf32> to vector<64x64xf32>
    %219 = arith.mulf %216, %218 : vector<64x64xf32>
    %220 = arith.addf %215, %219 : vector<64x64xf32>
    %221 = vector.extract_strided_slice %50 {offsets = [24, 0], sizes = [64, 64], strides = [1, 1]} : vector<112x64xf32> to vector<64x64xf32>
    %c24 = arith.constant 24 : index
    %c0_57 = arith.constant 0 : index
    %222 = vector.load %arg6[%c24, %c0_57] : memref<49x64xf32, #tpu.memory_space<vmem>>, vector<1x64xf32>
    %223 = vector.broadcast %222 : vector<1x64xf32> to vector<64x64xf32>
    %224 = arith.mulf %221, %223 : vector<64x64xf32>
    %225 = arith.addf %220, %224 : vector<64x64xf32>
    %226 = vector.extract_strided_slice %50 {offsets = [32, 0], sizes = [64, 64], strides = [1, 1]} : vector<112x64xf32> to vector<64x64xf32>
    %c31 = arith.constant 31 : index
    %c0_58 = arith.constant 0 : index
    %227 = vector.load %arg6[%c31, %c0_58] : memref<49x64xf32, #tpu.memory_space<vmem>>, vector<1x64xf32>
    %228 = vector.broadcast %227 : vector<1x64xf32> to vector<64x64xf32>
    %229 = arith.mulf %226, %228 : vector<64x64xf32>
    %230 = arith.addf %225, %229 : vector<64x64xf32>
    %231 = vector.extract_strided_slice %50 {offsets = [40, 0], sizes = [64, 64], strides = [1, 1]} : vector<112x64xf32> to vector<64x64xf32>
    %c38 = arith.constant 38 : index
    %c0_59 = arith.constant 0 : index
    %232 = vector.load %arg6[%c38, %c0_59] : memref<49x64xf32, #tpu.memory_space<vmem>>, vector<1x64xf32>
    %233 = vector.broadcast %232 : vector<1x64xf32> to vector<64x64xf32>
    %234 = arith.mulf %231, %233 : vector<64x64xf32>
    %235 = arith.addf %230, %234 : vector<64x64xf32>
    %236 = vector.extract_strided_slice %50 {offsets = [48, 0], sizes = [64, 64], strides = [1, 1]} : vector<112x64xf32> to vector<64x64xf32>
    %c45 = arith.constant 45 : index
    %c0_60 = arith.constant 0 : index
    %237 = vector.load %arg6[%c45, %c0_60] : memref<49x64xf32, #tpu.memory_space<vmem>>, vector<1x64xf32>
    %238 = vector.broadcast %237 : vector<1x64xf32> to vector<64x64xf32>
    %239 = arith.mulf %236, %238 : vector<64x64xf32>
    %240 = arith.addf %235, %239 : vector<64x64xf32>
    %241 = arith.addf %159, %240 : vector<64x64xf32>
    %c111_i32 = arith.constant 111 : i32
    %242 = tpu.dynamic_rotate %50 by %c111_i32 dim 0 : vector<112x64xf32>, i32 -> vector<112x64xf32>
    %243 = vector.extract_strided_slice %242 {offsets = [0, 0], sizes = [64, 64], strides = [1, 1]} : vector<112x64xf32> to vector<64x64xf32>
    %c4 = arith.constant 4 : index
    %c0_61 = arith.constant 0 : index
    %244 = vector.load %arg6[%c4, %c0_61] : memref<49x64xf32, #tpu.memory_space<vmem>>, vector<1x64xf32>
    %245 = vector.broadcast %244 : vector<1x64xf32> to vector<64x64xf32>
    %246 = arith.mulf %243, %245 : vector<64x64xf32>
    %247 = vector.extract_strided_slice %242 {offsets = [8, 0], sizes = [64, 64], strides = [1, 1]} : vector<112x64xf32> to vector<64x64xf32>
    %c11 = arith.constant 11 : index
    %c0_62 = arith.constant 0 : index
    %248 = vector.load %arg6[%c11, %c0_62] : memref<49x64xf32, #tpu.memory_space<vmem>>, vector<1x64xf32>
    %249 = vector.broadcast %248 : vector<1x64xf32> to vector<64x64xf32>
    %250 = arith.mulf %247, %249 : vector<64x64xf32>
    %251 = arith.addf %246, %250 : vector<64x64xf32>
    %252 = vector.extract_strided_slice %242 {offsets = [16, 0], sizes = [64, 64], strides = [1, 1]} : vector<112x64xf32> to vector<64x64xf32>
    %c18 = arith.constant 18 : index
    %c0_63 = arith.constant 0 : index
    %253 = vector.load %arg6[%c18, %c0_63] : memref<49x64xf32, #tpu.memory_space<vmem>>, vector<1x64xf32>
    %254 = vector.broadcast %253 : vector<1x64xf32> to vector<64x64xf32>
    %255 = arith.mulf %252, %254 : vector<64x64xf32>
    %256 = arith.addf %251, %255 : vector<64x64xf32>
    %257 = vector.extract_strided_slice %242 {offsets = [24, 0], sizes = [64, 64], strides = [1, 1]} : vector<112x64xf32> to vector<64x64xf32>
    %c25 = arith.constant 25 : index
    %c0_64 = arith.constant 0 : index
    %258 = vector.load %arg6[%c25, %c0_64] : memref<49x64xf32, #tpu.memory_space<vmem>>, vector<1x64xf32>
    %259 = vector.broadcast %258 : vector<1x64xf32> to vector<64x64xf32>
    %260 = arith.mulf %257, %259 : vector<64x64xf32>
    %261 = arith.addf %256, %260 : vector<64x64xf32>
    %262 = vector.extract_strided_slice %242 {offsets = [32, 0], sizes = [64, 64], strides = [1, 1]} : vector<112x64xf32> to vector<64x64xf32>
    %c32_65 = arith.constant 32 : index
    %c0_66 = arith.constant 0 : index
    %263 = vector.load %arg6[%c32_65, %c0_66] : memref<49x64xf32, #tpu.memory_space<vmem>>, vector<1x64xf32>
    %264 = vector.broadcast %263 : vector<1x64xf32> to vector<64x64xf32>
    %265 = arith.mulf %262, %264 : vector<64x64xf32>
    %266 = arith.addf %261, %265 : vector<64x64xf32>
    %267 = vector.extract_strided_slice %242 {offsets = [40, 0], sizes = [64, 64], strides = [1, 1]} : vector<112x64xf32> to vector<64x64xf32>
    %c39 = arith.constant 39 : index
    %c0_67 = arith.constant 0 : index
    %268 = vector.load %arg6[%c39, %c0_67] : memref<49x64xf32, #tpu.memory_space<vmem>>, vector<1x64xf32>
    %269 = vector.broadcast %268 : vector<1x64xf32> to vector<64x64xf32>
    %270 = arith.mulf %267, %269 : vector<64x64xf32>
    %271 = arith.addf %266, %270 : vector<64x64xf32>
    %272 = vector.extract_strided_slice %242 {offsets = [48, 0], sizes = [64, 64], strides = [1, 1]} : vector<112x64xf32> to vector<64x64xf32>
    %c46 = arith.constant 46 : index
    %c0_68 = arith.constant 0 : index
    %273 = vector.load %arg6[%c46, %c0_68] : memref<49x64xf32, #tpu.memory_space<vmem>>, vector<1x64xf32>
    %274 = vector.broadcast %273 : vector<1x64xf32> to vector<64x64xf32>
    %275 = arith.mulf %272, %274 : vector<64x64xf32>
    %276 = arith.addf %271, %275 : vector<64x64xf32>
    %c1_i32_69 = arith.constant 1 : i32
    %277 = vector.broadcast %c1_i32_69 : i32 to vector<64x1xi32>
    %278 = arith.addi %67, %277 : vector<64x1xi32>
    %c0_i32_70 = arith.constant 0 : i32
    %279 = vector.broadcast %c0_i32_70 : i32 to vector<64x1xi32>
    %280 = arith.cmpi sge, %278, %279 : vector<64x1xi32>
    %c8_i32_71 = arith.constant 8 : i32
    %281 = vector.broadcast %c8_i32_71 : i32 to vector<64x1xi32>
    %282 = arith.cmpi slt, %278, %281 : vector<64x1xi32>
    %283 = arith.andi %280, %282 : vector<64x1xi1>
    %284 = arith.extui %283 : vector<64x1xi1> to vector<64x1xi32>
    %285 = arith.sitofp %284 : vector<64x1xi32> to vector<64x1xf32>
    %286 = vector.broadcast %285 : vector<64x1xf32> to vector<64x64xf32>
    %287 = arith.mulf %276, %286 : vector<64x64xf32>
    %288 = arith.addf %206, %287 : vector<64x64xf32>
    %c110_i32 = arith.constant 110 : i32
    %289 = tpu.dynamic_rotate %50 by %c110_i32 dim 0 : vector<112x64xf32>, i32 -> vector<112x64xf32>
    %290 = vector.extract_strided_slice %289 {offsets = [0, 0], sizes = [64, 64], strides = [1, 1]} : vector<112x64xf32> to vector<64x64xf32>
    %c5 = arith.constant 5 : index
    %c0_72 = arith.constant 0 : index
    %291 = vector.load %arg6[%c5, %c0_72] : memref<49x64xf32, #tpu.memory_space<vmem>>, vector<1x64xf32>
    %292 = vector.broadcast %291 : vector<1x64xf32> to vector<64x64xf32>
    %293 = arith.mulf %290, %292 : vector<64x64xf32>
    %294 = vector.extract_strided_slice %289 {offsets = [8, 0], sizes = [64, 64], strides = [1, 1]} : vector<112x64xf32> to vector<64x64xf32>
    %c12 = arith.constant 12 : index
    %c0_73 = arith.constant 0 : index
    %295 = vector.load %arg6[%c12, %c0_73] : memref<49x64xf32, #tpu.memory_space<vmem>>, vector<1x64xf32>
    %296 = vector.broadcast %295 : vector<1x64xf32> to vector<64x64xf32>
    %297 = arith.mulf %294, %296 : vector<64x64xf32>
    %298 = arith.addf %293, %297 : vector<64x64xf32>
    %299 = vector.extract_strided_slice %289 {offsets = [16, 0], sizes = [64, 64], strides = [1, 1]} : vector<112x64xf32> to vector<64x64xf32>
    %c19 = arith.constant 19 : index
    %c0_74 = arith.constant 0 : index
    %300 = vector.load %arg6[%c19, %c0_74] : memref<49x64xf32, #tpu.memory_space<vmem>>, vector<1x64xf32>
    %301 = vector.broadcast %300 : vector<1x64xf32> to vector<64x64xf32>
    %302 = arith.mulf %299, %301 : vector<64x64xf32>
    %303 = arith.addf %298, %302 : vector<64x64xf32>
    %304 = vector.extract_strided_slice %289 {offsets = [24, 0], sizes = [64, 64], strides = [1, 1]} : vector<112x64xf32> to vector<64x64xf32>
    %c26 = arith.constant 26 : index
    %c0_75 = arith.constant 0 : index
    %305 = vector.load %arg6[%c26, %c0_75] : memref<49x64xf32, #tpu.memory_space<vmem>>, vector<1x64xf32>
    %306 = vector.broadcast %305 : vector<1x64xf32> to vector<64x64xf32>
    %307 = arith.mulf %304, %306 : vector<64x64xf32>
    %308 = arith.addf %303, %307 : vector<64x64xf32>
    %309 = vector.extract_strided_slice %289 {offsets = [32, 0], sizes = [64, 64], strides = [1, 1]} : vector<112x64xf32> to vector<64x64xf32>
    %c33 = arith.constant 33 : index
    %c0_76 = arith.constant 0 : index
    %310 = vector.load %arg6[%c33, %c0_76] : memref<49x64xf32, #tpu.memory_space<vmem>>, vector<1x64xf32>
    %311 = vector.broadcast %310 : vector<1x64xf32> to vector<64x64xf32>
    %312 = arith.mulf %309, %311 : vector<64x64xf32>
    %313 = arith.addf %308, %312 : vector<64x64xf32>
    %314 = vector.extract_strided_slice %289 {offsets = [40, 0], sizes = [64, 64], strides = [1, 1]} : vector<112x64xf32> to vector<64x64xf32>
    %c40 = arith.constant 40 : index
    %c0_77 = arith.constant 0 : index
    %315 = vector.load %arg6[%c40, %c0_77] : memref<49x64xf32, #tpu.memory_space<vmem>>, vector<1x64xf32>
    %316 = vector.broadcast %315 : vector<1x64xf32> to vector<64x64xf32>
    %317 = arith.mulf %314, %316 : vector<64x64xf32>
    %318 = arith.addf %313, %317 : vector<64x64xf32>
    %319 = vector.extract_strided_slice %289 {offsets = [48, 0], sizes = [64, 64], strides = [1, 1]} : vector<112x64xf32> to vector<64x64xf32>
    %c47 = arith.constant 47 : index
    %c0_78 = arith.constant 0 : index
    %320 = vector.load %arg6[%c47, %c0_78] : memref<49x64xf32, #tpu.memory_space<vmem>>, vector<1x64xf32>
    %321 = vector.broadcast %320 : vector<1x64xf32> to vector<64x64xf32>
    %322 = arith.mulf %319, %321 : vector<64x64xf32>
    %323 = arith.addf %318, %322 : vector<64x64xf32>
    %c2_i32_79 = arith.constant 2 : i32
    %324 = vector.broadcast %c2_i32_79 : i32 to vector<64x1xi32>
    %325 = arith.addi %67, %324 : vector<64x1xi32>
    %c0_i32_80 = arith.constant 0 : i32
    %326 = vector.broadcast %c0_i32_80 : i32 to vector<64x1xi32>
    %327 = arith.cmpi sge, %325, %326 : vector<64x1xi32>
    %c8_i32_81 = arith.constant 8 : i32
    %328 = vector.broadcast %c8_i32_81 : i32 to vector<64x1xi32>
    %329 = arith.cmpi slt, %325, %328 : vector<64x1xi32>
    %330 = arith.andi %327, %329 : vector<64x1xi1>
    %331 = arith.extui %330 : vector<64x1xi1> to vector<64x1xi32>
    %332 = arith.sitofp %331 : vector<64x1xi32> to vector<64x1xf32>
    %333 = vector.broadcast %332 : vector<64x1xf32> to vector<64x64xf32>
    %334 = arith.mulf %323, %333 : vector<64x64xf32>
    %335 = arith.addf %241, %334 : vector<64x64xf32>
    %c109_i32 = arith.constant 109 : i32
    %336 = tpu.dynamic_rotate %50 by %c109_i32 dim 0 : vector<112x64xf32>, i32 -> vector<112x64xf32>
    %337 = vector.extract_strided_slice %336 {offsets = [0, 0], sizes = [64, 64], strides = [1, 1]} : vector<112x64xf32> to vector<64x64xf32>
    %c6 = arith.constant 6 : index
    %c0_82 = arith.constant 0 : index
    %338 = vector.load %arg6[%c6, %c0_82] : memref<49x64xf32, #tpu.memory_space<vmem>>, vector<1x64xf32>
    %339 = vector.broadcast %338 : vector<1x64xf32> to vector<64x64xf32>
    %340 = arith.mulf %337, %339 : vector<64x64xf32>
    %341 = vector.extract_strided_slice %336 {offsets = [8, 0], sizes = [64, 64], strides = [1, 1]} : vector<112x64xf32> to vector<64x64xf32>
    %c13 = arith.constant 13 : index
    %c0_83 = arith.constant 0 : index
    %342 = vector.load %arg6[%c13, %c0_83] : memref<49x64xf32, #tpu.memory_space<vmem>>, vector<1x64xf32>
    %343 = vector.broadcast %342 : vector<1x64xf32> to vector<64x64xf32>
    %344 = arith.mulf %341, %343 : vector<64x64xf32>
    %345 = arith.addf %340, %344 : vector<64x64xf32>
    %346 = vector.extract_strided_slice %336 {offsets = [16, 0], sizes = [64, 64], strides = [1, 1]} : vector<112x64xf32> to vector<64x64xf32>
    %c20 = arith.constant 20 : index
    %c0_84 = arith.constant 0 : index
    %347 = vector.load %arg6[%c20, %c0_84] : memref<49x64xf32, #tpu.memory_space<vmem>>, vector<1x64xf32>
    %348 = vector.broadcast %347 : vector<1x64xf32> to vector<64x64xf32>
    %349 = arith.mulf %346, %348 : vector<64x64xf32>
    %350 = arith.addf %345, %349 : vector<64x64xf32>
    %351 = vector.extract_strided_slice %336 {offsets = [24, 0], sizes = [64, 64], strides = [1, 1]} : vector<112x64xf32> to vector<64x64xf32>
    %c27 = arith.constant 27 : index
    %c0_85 = arith.constant 0 : index
    %352 = vector.load %arg6[%c27, %c0_85] : memref<49x64xf32, #tpu.memory_space<vmem>>, vector<1x64xf32>
    %353 = vector.broadcast %352 : vector<1x64xf32> to vector<64x64xf32>
    %354 = arith.mulf %351, %353 : vector<64x64xf32>
    %355 = arith.addf %350, %354 : vector<64x64xf32>
    %356 = vector.extract_strided_slice %336 {offsets = [32, 0], sizes = [64, 64], strides = [1, 1]} : vector<112x64xf32> to vector<64x64xf32>
    %c34 = arith.constant 34 : index
    %c0_86 = arith.constant 0 : index
    %357 = vector.load %arg6[%c34, %c0_86] : memref<49x64xf32, #tpu.memory_space<vmem>>, vector<1x64xf32>
    %358 = vector.broadcast %357 : vector<1x64xf32> to vector<64x64xf32>
    %359 = arith.mulf %356, %358 : vector<64x64xf32>
    %360 = arith.addf %355, %359 : vector<64x64xf32>
    %361 = vector.extract_strided_slice %336 {offsets = [40, 0], sizes = [64, 64], strides = [1, 1]} : vector<112x64xf32> to vector<64x64xf32>
    %c41 = arith.constant 41 : index
    %c0_87 = arith.constant 0 : index
    %362 = vector.load %arg6[%c41, %c0_87] : memref<49x64xf32, #tpu.memory_space<vmem>>, vector<1x64xf32>
    %363 = vector.broadcast %362 : vector<1x64xf32> to vector<64x64xf32>
    %364 = arith.mulf %361, %363 : vector<64x64xf32>
    %365 = arith.addf %360, %364 : vector<64x64xf32>
    %366 = vector.extract_strided_slice %336 {offsets = [48, 0], sizes = [64, 64], strides = [1, 1]} : vector<112x64xf32> to vector<64x64xf32>
    %c48 = arith.constant 48 : index
    %c0_88 = arith.constant 0 : index
    %367 = vector.load %arg6[%c48, %c0_88] : memref<49x64xf32, #tpu.memory_space<vmem>>, vector<1x64xf32>
    %368 = vector.broadcast %367 : vector<1x64xf32> to vector<64x64xf32>
    %369 = arith.mulf %366, %368 : vector<64x64xf32>
    %370 = arith.addf %365, %369 : vector<64x64xf32>
    %c3_i32_89 = arith.constant 3 : i32
    %371 = vector.broadcast %c3_i32_89 : i32 to vector<64x1xi32>
    %372 = arith.addi %67, %371 : vector<64x1xi32>
    %c0_i32_90 = arith.constant 0 : i32
    %373 = vector.broadcast %c0_i32_90 : i32 to vector<64x1xi32>
    %374 = arith.cmpi sge, %372, %373 : vector<64x1xi32>
    %c8_i32_91 = arith.constant 8 : i32
    %375 = vector.broadcast %c8_i32_91 : i32 to vector<64x1xi32>
    %376 = arith.cmpi slt, %372, %375 : vector<64x1xi32>
    %377 = arith.andi %374, %376 : vector<64x1xi1>
    %378 = arith.extui %377 : vector<64x1xi1> to vector<64x1xi32>
    %379 = arith.sitofp %378 : vector<64x1xi32> to vector<64x1xf32>
    %380 = vector.broadcast %379 : vector<64x1xf32> to vector<64x64xf32>
    %381 = arith.mulf %370, %380 : vector<64x64xf32>
    %382 = arith.addf %288, %381 : vector<64x64xf32>
    %383 = arith.addf %382, %335 : vector<64x64xf32>
    %384 = arith.truncf %383 : vector<64x64xf32> to vector<64x64xbf16>
    %c0_92 = arith.constant 0 : index
    %c0_93 = arith.constant 0 : index
    %385 = vector.load %arg7[%c0_92, %c0_93] : memref<64x256xbf16, #tpu.memory_space<vmem>>, vector<64x256xbf16>
    %cst_94 = arith.constant dense<0.000000e+00> : vector<64x256xf32>
    %386 = tpu.matmul %384, %385, %cst_94 {dimension_numbers = #tpu.dot_dimension_numbers<[1], [0], [0], [1], [0, 0, 1, 1], [], []>} : vector<64x64xbf16>, vector<64x256xbf16>, vector<64x256xf32> -> vector<64x256xf32>
    %c0_95 = arith.constant 0 : index
    %c0_96 = arith.constant 0 : index
    %387 = vector.load %arg8[%c0_95, %c0_96] : memref<1x256xf32, #tpu.memory_space<vmem>>, vector<1x256xf32>
    %388 = vector.broadcast %387 : vector<1x256xf32> to vector<64x256xf32>
    %389 = arith.addf %386, %388 : vector<64x256xf32>
    %cst_97 = arith.constant 5.000000e-01 : f32
    %390 = vector.broadcast %cst_97 : f32 to vector<64x256xf32>
    %391 = arith.mulf %390, %389 : vector<64x256xf32>
    %cst_98 = arith.constant 4.471500e-02 : f32
    %392 = vector.broadcast %cst_98 : f32 to vector<64x256xf32>
    %393 = arith.mulf %392, %389 : vector<64x256xf32>
    %394 = arith.mulf %393, %389 : vector<64x256xf32>
    %395 = arith.mulf %394, %389 : vector<64x256xf32>
    %396 = arith.addf %389, %395 : vector<64x256xf32>
    %cst_99 = arith.constant 0.797884583 : f32
    %397 = vector.broadcast %cst_99 : f32 to vector<64x256xf32>
    %398 = arith.mulf %397, %396 : vector<64x256xf32>
    %399 = math.tanh %398 : vector<64x256xf32>
    %cst_100 = arith.constant 1.000000e+00 : f32
    %400 = vector.broadcast %cst_100 : f32 to vector<64x256xf32>
    %401 = arith.addf %400, %399 : vector<64x256xf32>
    %402 = arith.mulf %391, %401 : vector<64x256xf32>
    %403 = arith.truncf %402 : vector<64x256xf32> to vector<64x256xbf16>
    %c0_101 = arith.constant 0 : index
    %c0_102 = arith.constant 0 : index
    %404 = vector.load %arg9[%c0_101, %c0_102] : memref<256x64xbf16, #tpu.memory_space<vmem>>, vector<256x64xbf16>
    %cst_103 = arith.constant dense<0.000000e+00> : vector<64x64xf32>
    %405 = tpu.matmul %403, %404, %cst_103 {dimension_numbers = #tpu.dot_dimension_numbers<[1], [0], [0], [1], [0, 0, 1, 1], [], []>} : vector<64x256xbf16>, vector<256x64xbf16>, vector<64x64xf32> -> vector<64x64xf32>
    %c0_104 = arith.constant 0 : index
    %c0_105 = arith.constant 0 : index
    %406 = vector.load %arg10[%c0_104, %c0_105] : memref<1x64xf32, #tpu.memory_space<vmem>>, vector<1x64xf32>
    %407 = vector.broadcast %406 : vector<1x64xf32> to vector<64x64xf32>
    %408 = arith.addf %405, %407 : vector<64x64xf32>
    %409 = arith.addf %48, %408 : vector<64x64xf32>
    %c0_106 = arith.constant 0 : index
    %c0_107 = arith.constant 0 : index
    %c0_108 = arith.constant 0 : index
    %410 = vector.load %arg11[%c0_106, %c0_107, %c0_108] : memref<1x64x64xf32, #tpu.memory_space<vmem>>, vector<1x64x64xf32>
    %411 = vector.shape_cast %410 : vector<1x64x64xf32> to vector<64x64xf32>
    %412 = vector.shape_cast %409 : vector<64x64xf32> to vector<1x64x64xf32>
    tpu.vector_store %arg11[%c0_106, %c0_107, %c0_108], %412 {strides = array<i32>} : memref<1x64x64xf32, #tpu.memory_space<vmem>>, vector<1x64x64xf32>,
    return
  }
  func.func @transform_0(%arg0: i32) -> (i32, i32, i32) {
    %c0_i32 = arith.constant 0 : i32
    %c0_i32_0 = arith.constant 0 : i32
    %c0_i32_1 = arith.constant 0 : i32
    return %arg0, %c0_i32, %c0_i32_0 : i32, i32, i32
  }
  func.func @transform_1(%arg0: i32) -> (i32, i32) {
    %c0_i32 = arith.constant 0 : i32
    %c0_i32_0 = arith.constant 0 : i32
    %c0_i32_1 = arith.constant 0 : i32
    return %c0_i32, %c0_i32_0 : i32, i32
  }
  func.func @transform_2(%arg0: i32) -> (i32, i32) {
    %c0_i32 = arith.constant 0 : i32
    %c0_i32_0 = arith.constant 0 : i32
    %c0_i32_1 = arith.constant 0 : i32
    return %c0_i32, %c0_i32_0 : i32, i32
  }
  func.func @transform_3(%arg0: i32) -> (i32, i32) {
    %c0_i32 = arith.constant 0 : i32
    %c0_i32_0 = arith.constant 0 : i32
    %c0_i32_1 = arith.constant 0 : i32
    return %c0_i32, %c0_i32_0 : i32, i32
  }
  func.func @transform_4(%arg0: i32) -> (i32, i32) {
    %c0_i32 = arith.constant 0 : i32
    %c0_i32_0 = arith.constant 0 : i32
    %c0_i32_1 = arith.constant 0 : i32
    return %c0_i32, %c0_i32_0 : i32, i32
  }
  func.func @transform_5(%arg0: i32) -> (i32, i32) {
    %c0_i32 = arith.constant 0 : i32
    %c0_i32_0 = arith.constant 0 : i32
    %c0_i32_1 = arith.constant 0 : i32
    return %c0_i32, %c0_i32_0 : i32, i32
  }
  func.func @transform_6(%arg0: i32) -> (i32, i32) {
    %c0_i32 = arith.constant 0 : i32
    %c0_i32_0 = arith.constant 0 : i32
    %c0_i32_1 = arith.constant 0 : i32
    return %c0_i32, %c0_i32_0 : i32, i32
  }
  func.func @transform_7(%arg0: i32) -> (i32, i32) {
    %c0_i32 = arith.constant 0 : i32
    %c0_i32_0 = arith.constant 0 : i32
    %c0_i32_1 = arith.constant 0 : i32
    return %c0_i32, %c0_i32_0 : i32, i32
  }
  func.func @transform_8(%arg0: i32) -> (i32, i32) {
    %c0_i32 = arith.constant 0 : i32
    %c0_i32_0 = arith.constant 0 : i32
    %c0_i32_1 = arith.constant 0 : i32
    return %c0_i32, %c0_i32_0 : i32, i32
  }
  func.func @transform_9(%arg0: i32) -> (i32, i32) {
    %c0_i32 = arith.constant 0 : i32
    %c0_i32_0 = arith.constant 0 : i32
    %c0_i32_1 = arith.constant 0 : i32
    return %c0_i32, %c0_i32_0 : i32, i32
  }
  func.func @transform_10(%arg0: i32) -> (i32, i32, i32) {
    %c0_i32 = arith.constant 0 : i32
    %c0_i32_0 = arith.constant 0 : i32
    %c0_i32_1 = arith.constant 0 : i32
    return %arg0, %c0_i32, %c0_i32_0 : i32, i32, i32
  }
}

</mosaic_0001>

<llo_original>
// kernel: attention_block_forward.1
$region0: #{attention_block_forward.1}
  #allocation0 [shape = 'u32[]', space=smem, size = 0x4, offset = 0x4, fixed_abs, tag = 'smem constant byte address 0x4 - core index']
  #allocation1 [shape = 'u32[144,128]{1,0:T(1,128)}', space=vmem, size = 0x12000, scoped, tag = 'internal scratch']
  %s0 = inlined_call_operand.vmem [shape: f32[2,64,64], index: 0, kind: input, shape index: {}]
  %s1 = inlined_call_operand.vmem [shape: bf16[64,192], index: 1, kind: input, shape index: {}]
  %s2 = inlined_call_operand.vmem [shape: f32[1,192], index: 2, kind: input, shape index: {}]
  %s3 = inlined_call_operand.vmem [shape: bf16[64,64], index: 3, kind: input, shape index: {}]
  %s4 = inlined_call_operand.vmem [shape: f32[1,64], index: 4, kind: input, shape index: {}]
  %s5 = inlined_call_operand.vmem [shape: f32[49,64], index: 5, kind: input, shape index: {}]
  %s6 = inlined_call_operand.vmem [shape: bf16[64,256], index: 6, kind: input, shape index: {}]
  %s7 = inlined_call_operand.vmem [shape: f32[1,256], index: 7, kind: input, shape index: {}]
  %s8 = inlined_call_operand.vmem [shape: bf16[256,64], index: 8, kind: input, shape index: {}]
  %s9 = inlined_call_operand.vmem [shape: f32[1,64], index: 9, kind: input, shape index: {}]
  %s10 = inlined_call_operand.hbm [shape: f32[2,64,64], index: 10, kind: output, shape index: {}]
  %s11 = sld [smem:[#allocation0]]
  $region73: #{attention_block_forward.1} parent=0
    _
  %s13 = ssub.s32 1, %s11
  %s14 = scalar_select 0, %s13, %s11
  $region1: #{attention_block_forward.1} parent=0
    #allocation2 [shape = 'u8[65536]{0}', space=vmem, size = 0x10000, scoped, tag = 'output window, operand 0']
    #allocation3 [shape = 's32[2]{0}', space=sflag, size = 0x8, scoped, tag = 'scoped memory for attention_block_forward.1']
    %15 = vsyncpa [#allocation3], 0
    %s16 = scalar_lea.sflag [#allocation3], 1
    %17 = vsyncpa %s16, 0
    loop: start=0, step=1, limit=4
    $region2: #{attention_block_forward.1} parent=1 // loop_pre_header
      _
    $region3: #{attention_block_forward.1} parent=1 // loop_header
      %s19 = sphi 0, %s23
      %p20 = scmp.ge.s32.totalorder %s19, 4
      %s29 = sphi 0, %s31
      %s32 = sphi 0, %s29
      %s33 = sphi 0, %s32
      %s49 = sphi 0, %s33
      %s53 = sphi 0, %s53
      %s55 = sphi 0, %s53
      %s56 = sphi 0, %s55
      %s70 = sphi 0, %s56
      %s74 = sphi 0, %s74
      %s76 = sphi 0, %s74
      %s77 = sphi 0, %s76
      %s91 = sphi 0, %s77
      %s95 = sphi 0, %s95
      %s97 = sphi 0, %s95
      %s98 = sphi 0, %s97
      %s112 = sphi 0, %s98
      %s116 = sphi 0, %s116
      %s118 = sphi 0, %s116
      %s119 = sphi 0, %s118
      %s133 = sphi 0, %s119
      %s137 = sphi 0, %s137
      %s139 = sphi 0, %s137
      %s140 = sphi 0, %s139
      %s154 = sphi 0, %s140
      %s158 = sphi 0, %s158
      %s160 = sphi 0, %s158
      %s161 = sphi 0, %s160
      %s175 = sphi 0, %s161
      %s179 = sphi 0, %s179
      %s181 = sphi 0, %s179
      %s182 = sphi 0, %s181
      %s196 = sphi 0, %s182
      %s200 = sphi 0, %s200
      %s202 = sphi 0, %s200
      %s203 = sphi 0, %s202
      %s217 = sphi 0, %s203
      %s221 = sphi 0, %s221
      %s223 = sphi 0, %s221
      %s224 = sphi 0, %s223
      %s238 = sphi 0, %s224
      %s244 = sphi 0, %s246
      %s247 = sphi 0, %s244
      %s248 = sphi 0, %s247
      %s264 = sphi 0, %s248
    $region4: #{attention_block_forward.1} parent=1 // loop_header_branch
      %22 = sbr.rel (%p20) target = $region8
    $region5: #{attention_block_forward.1} parent=1 // loop_body
      %s24 = ssub.s32 %s19, 1
      %s25 = ssub.s32 %s19, 2
      %s26 = sadd.s32 %s19, 1
      %s27 = ssub.s32 %s19, %s26
      %p28 = scmp.eq.s32.totalorder %s27, 0
      %s30 = sadd.s32 %s29, 1
      %s31 = scalar_select %p28, %s29, %s30
      %p34 = pneg %p28
      %p35 = scmp.eq.s32.totalorder %s19, 1
      %p36 = por %p34, %p35
      %p37 = scmp.ne.s32.totalorder %s29, %s32
      %p38 = scmp.eq.s32.totalorder %s19, 0
      %p39 = por %p37, %p38
      %p40 = scmp.ne.s32.totalorder %s29, %s32
      %p41 = scmp.eq.s32.totalorder %s24, 1
      %p42 = por %p40, %p41
      %p43 = scmp.ne.s32.totalorder %s32, %s33
      %p44 = scmp.eq.s32.totalorder %s24, 0
      %p45 = por %p43, %p44
      %p46 = scmp.ne.s32.totalorder %s32, %s33
      %p47 = scmp.eq.s32.totalorder %s25, 1
      %p48 = por %p46, %p47
      %p50 = scmp.ne.s32.totalorder %s33, %s49
      %p51 = scmp.eq.s32.totalorder %s25, 0
      %p52 = por %p50, %p51
      %s54 = sadd.s32 %s53, 1
      %p57 = scmp.eq.s32.totalorder %s19, 1
      %p58 = scmp.ne.s32.totalorder %s53, %s55
      %p59 = scmp.eq.s32.totalorder %s19, 0
      %p60 = por %p58, %p59
      %p61 = scmp.ne.s32.totalorder %s53, %s55
      %p62 = scmp.eq.s32.totalorder %s24, 1
      %p63 = por %p61, %p62
      %p64 = scmp.ne.s32.totalorder %s55, %s56
      %p65 = scmp.eq.s32.totalorder %s24, 0
      %p66 = por %p64, %p65
      %p67 = scmp.ne.s32.totalorder %s55, %s56
      %p68 = scmp.eq.s32.totalorder %s25, 1
      %p69 = por %p67, %p68
      %p71 = scmp.ne.s32.totalorder %s56, %s70
      %p72 = scmp.eq.s32.totalorder %s25, 0
      %p73 = por %p71, %p72
      %s75 = sadd.s32 %s74, 1
      %p78 = scmp.eq.s32.totalorder %s19, 1
      %p79 = scmp.ne.s32.totalorder %s74, %s76
      %p80 = scmp.eq.s32.totalorder %s19, 0
      %p81 = por %p79, %p80
      %p82 = scmp.ne.s32.totalorder %s74, %s76
      %p83 = scmp.eq.s32.totalorder %s24, 1
      %p84 = por %p82, %p83
      %p85 = scmp.ne.s32.totalorder %s76, %s77
      %p86 = scmp.eq.s32.totalorder %s24, 0
      %p87 = por %p85, %p86
      %p88 = scmp.ne.s32.totalorder %s76, %s77
      %p89 = scmp.eq.s32.totalorder %s25, 1
      %p90 = por %p88, %p89
      %p92 = scmp.ne.s32.totalorder %s77, %s91
      %p93 = scmp.eq.s32.totalorder %s25, 0
      %p94 = por %p92, %p93
      %s96 = sadd.s32 %s95, 1
      %p99 = scmp.eq.s32.totalorder %s19, 1
      %p100 = scmp.ne.s32.totalorder %s95, %s97
      %p101 = scmp.eq.s32.totalorder %s19, 0
      %p102 = por %p100, %p101
      %p103 = scmp.ne.s32.totalorder %s95, %s97
      %p104 = scmp.eq.s32.totalorder %s24, 1
      %p105 = por %p103, %p104
      %p106 = scmp.ne.s32.totalorder %s97, %s98
      %p107 = scmp.eq.s32.totalorder %s24, 0
      %p108 = por %p106, %p107
      %p109 = scmp.ne.s32.totalorder %s97, %s98
      %p110 = scmp.eq.s32.totalorder %s25, 1
      %p111 = por %p109, %p110
      %p113 = scmp.ne.s32.totalorder %s98, %s112
      %p114 = scmp.eq.s32.totalorder %s25, 0
      %p115 = por %p113, %p114
      %s117 = sadd.s32 %s116, 1
      %p120 = scmp.eq.s32.totalorder %s19, 1
      %p121 = scmp.ne.s32.totalorder %s116, %s118
      %p122 = scmp.eq.s32.totalorder %s19, 0
      %p123 = por %p121, %p122
      %p124 = scmp.ne.s32.totalorder %s116, %s118
      %p125 = scmp.eq.s32.totalorder %s24, 1
      %p126 = por %p124, %p125
      %p127 = scmp.ne.s32.totalorder %s118, %s119
      %p128 = scmp.eq.s32.totalorder %s24, 0
      %p129 = por %p127, %p128
      %p130 = scmp.ne.s32.totalorder %s118, %s119
      %p131 = scmp.eq.s32.totalorder %s25, 1
      %p132 = por %p130, %p131
      %p134 = scmp.ne.s32.totalorder %s119, %s133
      %p135 = scmp.eq.s32.totalorder %s25, 0
      %p136 = por %p134, %p135
      %s138 = sadd.s32 %s137, 1
      %p141 = scmp.eq.s32.totalorder %s19, 1
      %p142 = scmp.ne.s32.totalorder %s137, %s139
      %p143 = scmp.eq.s32.totalorder %s19, 0
      %p144 = por %p142, %p143
      %p145 = scmp.ne.s32.totalorder %s137, %s139
      %p146 = scmp.eq.s32.totalorder %s24, 1
      %p147 = por %p145, %p146
      %p148 = scmp.ne.s32.totalorder %s139, %s140
      %p149 = scmp.eq.s32.totalorder %s24, 0
      %p150 = por %p148, %p149
      %p151 = scmp.ne.s32.totalorder %s139, %s140
      %p152 = scmp.eq.s32.totalorder %s25, 1
      %p153 = por %p151, %p152
      %p155 = scmp.ne.s32.totalorder %s140, %s154
      %p156 = scmp.eq.s32.totalorder %s25, 0
      %p157 = por %p155, %p156
      %s159 = sadd.s32 %s158, 1
      %p162 = scmp.eq.s32.totalorder %s19, 1
      %p163 = scmp.ne.s32.totalorder %s158, %s160
      %p164 = scmp.eq.s32.totalorder %s19, 0
      %p165 = por %p163, %p164
      %p166 = scmp.ne.s32.totalorder %s158, %s160
      %p167 = scmp.eq.s32.totalorder %s24, 1
      %p168 = por %p166, %p167
      %p169 = scmp.ne.s32.totalorder %s160, %s161
      %p170 = scmp.eq.s32.totalorder %s24, 0
      %p171 = por %p169, %p170
      %p172 = scmp.ne.s32.totalorder %s160, %s161
      %p173 = scmp.eq.s32.totalorder %s25, 1
      %p174 = por %p172, %p173
      %p176 = scmp.ne.s32.totalorder %s161, %s175
      %p177 = scmp.eq.s32.totalorder %s25, 0
      %p178 = por %p176, %p177
      %s180 = sadd.s32 %s179, 1
      %p183 = scmp.eq.s32.totalorder %s19, 1
      %p184 = scmp.ne.s32.totalorder %s179, %s181
      %p185 = scmp.eq.s32.totalorder %s19, 0
      %p186 = por %p184, %p185
      %p187 = scmp.ne.s32.totalorder %s179, %s181
      %p188 = scmp.eq.s32.totalorder %s24, 1
      %p189 = por %p187, %p188
      %p190 = scmp.ne.s32.totalorder %s181, %s182
      %p191 = scmp.eq.s32.totalorder %s24, 0
      %p192 = por %p190, %p191
      %p193 = scmp.ne.s32.totalorder %s181, %s182
      %p194 = scmp.eq.s32.totalorder %s25, 1
      %p195 = por %p193, %p194
      %p197 = scmp.ne.s32.totalorder %s182, %s196
      %p198 = scmp.eq.s32.totalorder %s25, 0
      %p199 = por %p197, %p198
      %s201 = sadd.s32 %s200, 1
      %p204 = scmp.eq.s32.totalorder %s19, 1
      %p205 = scmp.ne.s32.totalorder %s200, %s202
      %p206 = scmp.eq.s32.totalorder %s19, 0
      %p207 = por %p205, %p206
      %p208 = scmp.ne.s32.totalorder %s200, %s202
      %p209 = scmp.eq.s32.totalorder %s24, 1
      %p210 = por %p208, %p209
      %p211 = scmp.ne.s32.totalorder %s202, %s203
      %p212 = scmp.eq.s32.totalorder %s24, 0
      %p213 = por %p211, %p212
      %p214 = scmp.ne.s32.totalorder %s202, %s203
      %p215 = scmp.eq.s32.totalorder %s25, 1
      %p216 = por %p214, %p215
      %p218 = scmp.ne.s32.totalorder %s203, %s217
      %p219 = scmp.eq.s32.totalorder %s25, 0
      %p220 = por %p218, %p219
      %s222 = sadd.s32 %s221, 1
      %p225 = scmp.eq.s32.totalorder %s19, 1
      %p226 = scmp.ne.s32.totalorder %s221, %s223
      %p227 = scmp.eq.s32.totalorder %s19, 0
      %p228 = por %p226, %p227
      %p229 = scmp.ne.s32.totalorder %s221, %s223
      %p230 = scmp.eq.s32.totalorder %s24, 1
      %p231 = por %p229, %p230
      %p232 = scmp.ne.s32.totalorder %s223, %s224
      %p233 = scmp.eq.s32.totalorder %s24, 0
      %p234 = por %p232, %p233
      %p235 = scmp.ne.s32.totalorder %s223, %s224
      %p236 = scmp.eq.s32.totalorder %s25, 1
      %p237 = por %p235, %p236
      %p239 = scmp.ne.s32.totalorder %s224, %s238
      %p240 = scmp.eq.s32.totalorder %s25, 0
      %p241 = por %p239, %p240
      %s242 = ssub.s32 %s19, %s26
      %p243 = scmp.eq.s32.totalorder %s242, 0
      %s245 = sadd.s32 %s244, 1
      %s246 = scalar_select %p243, %s244, %s245
      %p249 = pneg %p243
      %p250 = scmp.eq.s32.totalorder %s19, 1
      %p251 = por %p249, %p250
      %p252 = scmp.ne.s32.totalorder %s244, %s247
      %p253 = scmp.eq.s32.totalorder %s19, 0
      %p254 = por %p252, %p253
      %p255 = scmp.ne.s32.totalorder %s244, %s247
      %p256 = scmp.eq.s32.totalorder %s24, 1
      %p257 = por %p255, %p256
      %p258 = scmp.ne.s32.totalorder %s247, %s248
      %p259 = scmp.eq.s32.totalorder %s24, 0
      %p260 = por %p258, %p259
      %p261 = scmp.ne.s32.totalorder %s247, %s248
      %p262 = scmp.eq.s32.totalorder %s25, 1
      %p263 = por %p261, %p262
      %p265 = scmp.ne.s32.totalorder %s248, %s264
      %p266 = scmp.eq.s32.totalorder %s25, 0
      %p267 = por %p265, %p266
      %p268 = scmp.le.s32.totalorder 1, %s19
      %p269 = scmp.lt.s32.totalorder %s19, 3
      %p270 = pnand %p268, %p269
      %p271 = pneg %p270
      // Predicated region
      $region9: #{attention_block_forward.1} parent=5 // pred_check
        _
      $region10: #{attention_block_forward.1} parent=5 // pred_check_branch
        %273 = sbr.rel (%p270) target = $region12
      $region11: #{attention_block_forward.1} parent=5 // pred_region
        %s274 = ssub.s32 %s19, 1
        // Predicated region
        $region13: #{attention_block_forward.1} parent=11 // pred_check
          %p275 = pneg %p66
        $region14: #{attention_block_forward.1} parent=11 // pred_check_branch
          %277 = sbr.rel (%p275) target = $region16
        $region15: #{attention_block_forward.1} parent=11 // pred_region
          _
        $region16: #{attention_block_forward.1} parent=11 // pred_fallthru
          _
        // Predicated region
        $region17: #{attention_block_forward.1} parent=11 // pred_check
          %p278 = pneg %p87
        $region18: #{attention_block_forward.1} parent=11 // pred_check_branch
          %280 = sbr.rel (%p278) target = $region20
        $region19: #{attention_block_forward.1} parent=11 // pred_region
          _
        $region20: #{attention_block_forward.1} parent=11 // pred_fallthru
          _
        // Predicated region
        $region21: #{attention_block_forward.1} parent=11 // pred_check
          %p281 = pneg %p108
        $region22: #{attention_block_forward.1} parent=11 // pred_check_branch
          %283 = sbr.rel (%p281) target = $region24
        $region23: #{attention_block_forward.1} parent=11 // pred_region
          _
        $region24: #{attention_block_forward.1} parent=11 // pred_fallthru
          _
        // Predicated region
        $region25: #{attention_block_forward.1} parent=11 // pred_check
          %p284 = pneg %p129
        $region26: #{attention_block_forward.1} parent=11 // pred_check_branch
          %286 = sbr.rel (%p284) target = $region28
        $region27: #{attention_block_forward.1} parent=11 // pred_region
          _
        $region28: #{attention_block_forward.1} parent=11 // pred_fallthru
          _
        // Predicated region
        $region29: #{attention_block_forward.1} parent=11 // pred_check
          %p287 = pneg %p150
        $region30: #{attention_block_forward.1} parent=11 // pred_check_branch
          %289 = sbr.rel (%p287) target = $region32
        $region31: #{attention_block_forward.1} parent=11 // pred_region
          _
        $region32: #{attention_block_forward.1} parent=11 // pred_fallthru
          _
        // Predicated region
        $region33: #{attention_block_forward.1} parent=11 // pred_check
          %p290 = pneg %p171
        $region34: #{attention_block_forward.1} parent=11 // pred_check_branch
          %292 = sbr.rel (%p290) target = $region36
        $region35: #{attention_block_forward.1} parent=11 // pred_region
          _
        $region36: #{attention_block_forward.1} parent=11 // pred_fallthru
          _
        // Predicated region
        $region37: #{attention_block_forward.1} parent=11 // pred_check
          %p293 = pneg %p192
        $region38: #{attention_block_forward.1} parent=11 // pred_check_branch
          %295 = sbr.rel (%p293) target = $region40
        $region39: #{attention_block_forward.1} parent=11 // pred_region
          _
        $region40: #{attention_block_forward.1} parent=11 // pred_fallthru
          _
        // Predicated region
        $region41: #{attention_block_forward.1} parent=11 // pred_check
          %p296 = pneg %p213
        $region42: #{attention_block_forward.1} parent=11 // pred_check_branch
          %298 = sbr.rel (%p296) target = $region44
        $region43: #{attention_block_forward.1} parent=11 // pred_region
          _
        $region44: #{attention_block_forward.1} parent=11 // pred_fallthru
          _
        // Predicated region
        $region45: #{attention_block_forward.1} parent=11 // pred_check
          %p299 = pneg %p234
        $region46: #{attention_block_forward.1} parent=11 // pred_check_branch
          %301 = sbr.rel (%p299) target = $region48
        $region47: #{attention_block_forward.1} parent=11 // pred_region
          _
        $region48: #{attention_block_forward.1} parent=11 // pred_fallthru
          _
      $region12: #{attention_block_forward.1} parent=5 // pred_fallthru
        _
      %p302 = scmp.lt.s32.totalorder %s19, 2
      // Predicated region
      $region49: #{attention_block_forward.1} parent=5 // pred_check
        %p303 = pneg %p302
      $region50: #{attention_block_forward.1} parent=5 // pred_check_branch
        %305 = sbr.rel (%p303) target = $region52
      $region51: #{attention_block_forward.1} parent=5 // pred_region
        // Predicated region
        $region53: #{attention_block_forward.1} parent=51 // pred_check
          %p306 = pneg %p39
        $region54: #{attention_block_forward.1} parent=51 // pred_check_branch
          %308 = sbr.rel (%p306) target = $region56
        $region55: #{attention_block_forward.1} parent=51 // pred_region
          %p309 = scmp.lt.s32.totalorder %s19, 1
          %s310 = scalar_select %p309, %s19, 1
          %s311 = smul.addr %s310, 8
          %s312 = smul.addr %s311, 8
          %s313 = scalar_lea.vmem %s0, %s312
        $region56: #{attention_block_forward.1} parent=51 // pred_fallthru
          _
      $region52: #{attention_block_forward.1} parent=5 // pred_fallthru
        _
      %p314 = scmp.le.s32.totalorder 1, %s19
      %p315 = scmp.lt.s32.totalorder %s19, 3
      %p316 = pnand %p314, %p315
      %p317 = pneg %p316
      // Predicated region
      $region57: #{attention_block_forward.1} parent=5 // pred_check
        _
      $region58: #{attention_block_forward.1} parent=5 // pred_check_branch
        %319 = sbr.rel (%p316) target = $region60
      $region59: #{attention_block_forward.1} parent=5 // pred_region
        %s320 = ssub.s32 %s19, 1
        %p321 = scmp.lt.s32.totalorder %s24, 1
        %s322 = scalar_select %p321, %s24, 1
        %s323 = smul.addr %s322, 8
        %s324 = smul.addr %s323, 8
        %s325 = scalar_lea.vmem %s0, %s324
        %p326 = pneg %p45
        %p327 = pneg %p42
        %p328 = pneg %p66
        %p329 = pneg %p63
        %p330 = pneg %p87
        %p331 = pneg %p84
        %p332 = pneg %p108
        %p333 = pneg %p105
        %p334 = pneg %p129
        %p335 = pneg %p126
        %p336 = pneg %p150
        %p337 = pneg %p147
        %p338 = pneg %p171
        %p339 = pneg %p168
        %p340 = pneg %p192
        %p341 = pneg %p189
        %p342 = pneg %p213
        %p343 = pneg %p210
        %p344 = pneg %p234
        %p345 = pneg %p231
        %p346 = pneg %p260
        %p347 = pneg %p257
        %s348 = sand.u32 %s247, 1
        %s349 = scalar_lea.sflag [#allocation3], %s348
        %s350 = sand.u32 %s247, 1
        %s351 = smul.addr %s350, 64
        %s352 = scalar_lea.vmem [#allocation2], %s351
        %p353 = scmp.lt.s32.totalorder %s24, 1
        %s354 = scalar_select %p353, %s24, 1
        %s355 = smul.addr %s354, 8
        %s356 = smul.addr %s355, 8
        %s357 = scalar_lea.vmem %s0, %s356
        %v359 = vld [vmem:[%s357] sm:$0xff]
        %v360 = vld [vmem:[%s357 + $0x8] sm:$0xff]
        %v361 = vld [vmem:[%s357 + $0x10] sm:$0xff]
        %v362 = vld [vmem:[%s357 + $0x18] sm:$0xff]
        %v363 = vld [vmem:[%s357 + $0x20] sm:$0xff]
        %v364 = vld [vmem:[%s357 + $0x28] sm:$0xff]
        %v365 = vld [vmem:[%s357 + $0x30] sm:$0xff]
        %v366 = vld [vmem:[%s357 + $0x38] sm:$0xff]
        %v367 = vpack.c.bf16 %v360, %v359
        %v368 = vpack.c.bf16 %v362, %v361
        %v369 = vpack.c.bf16 %v364, %v363
        %v370 = vpack.c.bf16 %v366, %v365
        %v371 = vld [vmem:[%s1] sm:$0xff]
        %v372 = vld [vmem:[%s1 + $0x8] sm:$0xff]
        %v373 = vld [vmem:[%s1 + $0x10] sm:$0xff]
        %v374 = vld [vmem:[%s1 + $0x18] sm:$0xff]
        %v375 = vld [vmem:[%s1 + $0x20] sm:$0xff]
        %v376 = vld [vmem:[%s1 + $0x28] sm:$0xff]
        %v377 = vld [vmem:[%s1 + $0x30] sm:$0xff]
        %v378 = vld [vmem:[%s1 + $0x38] sm:$0xff]
        %v379 = vld [vmem:[%s2] sm:$0x3]
        %v381 = vlaneseq
        %v382 = vshrl.u32 %v381, 7
        %v383 = vsub.s32 0, %v382
        %v384 = vrot.slane %v379, %v383
        %v385 = vlaneseq
        %v386 = vshrl.u32 %v385, 7
        %v387 = vsub.s32 1, %v386
        %v388 = vrot.slane %v379, %v387
        %v399 = vunpack.c.l.b16 %v371
        %v400 = vunpack.c.h.b16 %v371
        %v401 = vunpack.c.l.b16 %v372
        %v402 = vunpack.c.h.b16 %v372
        %v403 = vunpack.c.l.b16 %v373
        %v404 = vunpack.c.h.b16 %v373
        %v405 = vunpack.c.l.b16 %v374
        %v406 = vunpack.c.h.b16 %v374
        %v407 = vunpack.c.l.b16 %v375
        %v408 = vunpack.c.h.b16 %v375
        %v409 = vunpack.c.l.b16 %v376
        %v410 = vunpack.c.h.b16 %v376
        %v411 = vunpack.c.l.b16 %v377
        %v412 = vunpack.c.h.b16 %v377
        %v413 = vunpack.c.l.b16 %v378
        %v414 = vunpack.c.h.b16 %v378
        %v415 = vpack.c.b16 %v401, %v399
        %v416 = vpack.c.b16 %v402, %v400
        %v417 = vpack.c.b16 %v405, %v403
        %v418 = vpack.c.b16 %v406, %v404
        %v419 = vpack.c.b16 %v409, %v407
        %v420 = vpack.c.b16 %v410, %v408
        %v421 = vpack.c.b16 %v413, %v411
        %v422 = vpack.c.b16 %v414, %v412
        %vm431 = vcmask 523264
        %v433 = vsel %vm431, %v367, 0
        %v436 = vsel %vm431, %v368, 0
        %v439 = vsel %vm431, %v369, 0
        %v442 = vsel %vm431, %v370, 0
        %444 = vmatprep.subr.bf16.mxu0 %v416
        %445 = vmatpush1.bf16.msra.mxu0 %v415
        %446 = vmatprep.subr.bf16.mxu0 %v418
        %447 = vmatpush1.bf16.msra.mxu0 %v417
        %448 = vmatprep.subr.bf16.mxu0 %v420
        %449 = vmatpush1.bf16.msra.mxu0 %v419
        %450 = vmatprep.subr.bf16.mxu0 %v422
        %451 = vmatpush1.bf16.msra.mxu0 %v421
        %452 = vmatprep.subr.bf16.mxu0 0
        %453 = vmatpush1.bf16.msra.mxu0 0
        %454 = vmatprep.subr.bf16.mxu0 0
        %455 = vmatpush1.bf16.msra.mxu0 0
        %456 = vmatprep.subr.bf16.mxu0 0
        %457 = vmatpush1.bf16.msra.mxu0 0
        %458 = vmatprep.subr.bf16.mxu0 0
        %459 = vmatpush1.bf16.msra.mxu0 0
        %460 = vmatprep.subr.bf16.mxu0 0
        %461 = vmatpush1.bf16.msra.mxu0 0
        %462 = vmatprep.subr.bf16.mxu0 0
        %463 = vmatpush1.bf16.msra.mxu0 0
        %464 = vmatprep.subr.bf16.mxu0 0
        %465 = vmatpush1.bf16.msra.mxu0 0
        %466 = vmatprep.subr.bf16.mxu0 0
        %467 = vmatpush1.bf16.msra.mxu0 0
        %468 = vmatprep.subr.bf16.mxu0 0
        %469 = vmatpush1.bf16.msra.mxu0 0
        %470 = vmatprep.subr.bf16.mxu0 0
        %471 = vmatpush1.bf16.msra.mxu0 0
        %472 = vmatprep.subr.bf16.mxu0 0
        %473 = vmatpush1.bf16.msra.mxu0 0
        %474 = vmatprep.subr.bf16.mxu0 0
        %475 = vmatpush1.bf16.msra.mxu0 0
        %476 = vmatprep.mubr.bf16.mxu0 0
        %477 = vmatmul.mubr.bf16.gmra.mrb[0].mxu0 %v433
        %v478 = vpop.f32.mrb[0].mxu0
        %v479 = vadd.f32 %v384, %v478
        %v480 = vpop.f32.mrb[0].mxu0
        %v481 = vadd.f32 %v388, %v480
        %v482 = vpop.f32.mrb[0].mxu0
        %v483 = vadd.f32 %v384, %v482
        %v484 = vpop.f32.mrb[0].mxu0
        %v485 = vadd.f32 %v388, %v484
        %486 = vmatprep.mubr.bf16.mxu0 0
        %487 = vmatmul.mubr.bf16.gmra.mrb[0].mxu0 %v436
        %v488 = vpop.f32.mrb[0].mxu0
        %v489 = vadd.f32 %v384, %v488
        %v490 = vpop.f32.mrb[0].mxu0
        %v491 = vadd.f32 %v388, %v490
        %v492 = vpop.f32.mrb[0].mxu0
        %v493 = vadd.f32 %v384, %v492
        %v494 = vpop.f32.mrb[0].mxu0
        %v495 = vadd.f32 %v388, %v494
        %496 = vmatprep.mubr.bf16.mxu0 0
        %497 = vmatmul.mubr.bf16.gmra.mrb[0].mxu0 %v439
        %v498 = vpop.f32.mrb[0].mxu0
        %v499 = vadd.f32 %v384, %v498
        %v500 = vpop.f32.mrb[0].mxu0
        %v501 = vadd.f32 %v388, %v500
        %v502 = vpop.f32.mrb[0].mxu0
        %v503 = vadd.f32 %v384, %v502
        %v504 = vpop.f32.mrb[0].mxu0
        %v505 = vadd.f32 %v388, %v504
        %506 = vmatprep.mubr.bf16.mxu0 0
        %507 = vmatmul.mubr.bf16.gmra.mrb[0].mxu0 %v442
        %v508 = vpop.f32.mrb[0].mxu0
        %v509 = vadd.f32 %v384, %v508
        %v510 = vpop.f32.mrb[0].mxu0
        %v511 = vadd.f32 %v388, %v510
        %v512 = vpop.f32.mrb[0].mxu0
        %v513 = vadd.f32 %v384, %v512
        %v514 = vpop.f32.mrb[0].mxu0
        %v515 = vadd.f32 %v388, %v514
        %516 = vdwg.mxu0
        %525 = vrot.lane.b32.xlu0 %v479, 64
        %v526 = vpop.permute.xlu0 %525
        %527 = vrot.lane.b32.xlu0 %v483, 64
        %v528 = vpop.permute.xlu0 %527
        %529 = vrot.lane.b32.xlu0 %v489, 64
        %v530 = vpop.permute.xlu0 %529
        %531 = vrot.lane.b32.xlu0 %v493, 64
        %v532 = vpop.permute.xlu0 %531
        %533 = vrot.lane.b32.xlu0 %v499, 64
        %v534 = vpop.permute.xlu0 %533
        %535 = vrot.lane.b32.xlu0 %v503, 64
        %v536 = vpop.permute.xlu0 %535
        %537 = vrot.lane.b32.xlu0 %v509, 64
        %v538 = vpop.permute.xlu0 %537
        %539 = vrot.lane.b32.xlu0 %v513, 64
        %v540 = vpop.permute.xlu0 %539
        %vm541 = vcmask 261120
        %v542 = vsel %vm541, %v479, 0
        %v544 = vsel %vm541, %v483, 0
        %v546 = vsel %vm541, %v489, 0
        %v548 = vsel %vm541, %v493, 0
        %v550 = vsel %vm541, %v499, 0
        %v552 = vsel %vm541, %v503, 0
        %v554 = vsel %vm541, %v509, 0
        %v556 = vsel %vm541, %v513, 0
        %v558 = vsel %vm541, %v526, 0
        %v560 = vsel %vm541, %v528, 0
        %v562 = vsel %vm541, %v530, 0
        %v564 = vsel %vm541, %v532, 0
        %v566 = vsel %vm541, %v534, 0
        %v568 = vsel %vm541, %v536, 0
        %v570 = vsel %vm541, %v538, 0
        %v572 = vsel %vm541, %v540, 0
        %574 = vmatprep.subr.mxu0 0.0
        %575 = vmatpush1.xpose.msra.mxu0 %v558
        %576 = vmatprep.subr.mxu0 0.0
        %577 = vmatpush1.xpose.msra.mxu0 %v560
        %578 = vmatprep.subr.mxu0 0.0
        %579 = vmatpush1.xpose.msra.mxu0 %v562
        %580 = vmatprep.subr.mxu0 0.0
        %581 = vmatpush1.xpose.msra.mxu0 %v564
        %582 = vmatprep.subr.mxu0 0.0
        %583 = vmatpush1.xpose.msra.mxu0 %v566
        %584 = vmatprep.subr.mxu0 0.0
        %585 = vmatpush1.xpose.msra.mxu0 %v568
        %586 = vmatprep.subr.mxu0 0.0
        %587 = vmatpush1.xpose.msra.mxu0 %v570
        %588 = vmatprep.subr.mxu0 0.0
        %589 = vmatpush1.xpose.msra.mxu0 %v572
        %590 = vmatprep.subr.mxu0 0.0
        %591 = vmatpush1.xpose.msra.mxu0 0.0
        %592 = vmatprep.subr.mxu0 0.0
        %593 = vmatpush1.xpose.msra.mxu0 0.0
        %594 = vmatprep.subr.mxu0 0.0
        %595 = vmatpush1.xpose.msra.mxu0 0.0
        %596 = vmatprep.subr.mxu0 0.0
        %597 = vmatpush1.xpose.msra.mxu0 0.0
        %598 = vmatprep.subr.mxu0 0.0
        %599 = vmatpush1.xpose.msra.mxu0 0.0
        %600 = vmatprep.subr.mxu0 0.0
        %601 = vmatpush1.xpose.msra.mxu0 0.0
        %602 = vmatprep.subr.mxu0 0.0
        %603 = vmatpush1.xpose.msra.mxu0 0.0
        %604 = vmatprep.subr.mxu0 0.0
        %605 = vmatpush1.xpose.msra.mxu0 0.0
        %606 = vmatprep.subr.mxu0 0.0
        %607 = vmatpush1.xpose.msra.mxu0 0.0
        %608 = vmatprep.subr.mxu0 0.0
        %609 = vmatpush1.xpose.msra.mxu0 0.0
        %610 = vmatprep.subr.mxu0 0.0
        %611 = vmatpush1.xpose.msra.mxu0 0.0
        %612 = vmatprep.subr.mxu0 0.0
        %613 = vmatpush1.xpose.msra.mxu0 0.0
        %614 = vmatprep.subr.mxu0 0.0
        %615 = vmatpush1.xpose.msra.mxu0 0.0
        %616 = vmatprep.subr.mxu0 0.0
        %617 = vmatpush1.xpose.msra.mxu0 0.0
        %618 = vmatprep.subr.mxu0 0.0
        %619 = vmatpush1.xpose.msra.mxu0 0.0
        %620 = vmatprep.subr.mxu0 0.0
        %621 = vmatpush1.xpose.msra.mxu0 0.0
        %622 = vmatprep.subr.mxu0 0.0
        %623 = vmatpush1.xpose.msra.mxu0 0.0
        %624 = vmatprep.subr.mxu0 0.0
        %625 = vmatpush1.xpose.msra.mxu0 0.0
        %626 = vmatprep.subr.mxu0 0.0
        %627 = vmatpush1.xpose.msra.mxu0 0.0
        %628 = vmatprep.subr.mxu0 0.0
        %629 = vmatpush1.xpose.msra.mxu0 0.0
        %630 = vmatprep.subr.mxu0 0.0
        %631 = vmatpush1.xpose.msra.mxu0 0.0
        %632 = vmatprep.subr.mxu0 0.0
        %633 = vmatpush1.xpose.msra.mxu0 0.0
        %634 = vmatprep.subr.mxu0 0.0
        %635 = vmatpush1.xpose.msra.mxu0 0.0
        %636 = vmatprep.subr.mxu0 0.0
        %637 = vmatpush1.xpose.msra.mxu0 0.0
        %638 = vmatprep.mubr.f32.mxu0 0.0
        %639 = vmatmul.mubr.f32.gmra.mrb[0].mxu0 %v542
        %v640 = vpop.f32.mrb[0].mxu0
        %v641 = vadd.f32 0.0, %v640
        %v642 = vpop.f32.mrb[0].mxu0
        %643 = vmatprep.mubr.f32.mxu0 0.0
        %644 = vmatmul.mubr.f32.gmra.mrb[0].mxu0 %v544
        %v645 = vpop.f32.mrb[0].mxu0
        %v646 = vadd.f32 0.0, %v645
        %v647 = vpop.f32.mrb[0].mxu0
        %648 = vmatprep.mubr.f32.mxu0 0.0
        %649 = vmatmul.mubr.f32.gmra.mrb[0].mxu0 %v546
        %v650 = vpop.f32.mrb[0].mxu0
        %v651 = vadd.f32 0.0, %v650
        %v652 = vpop.f32.mrb[0].mxu0
        %653 = vmatprep.mubr.f32.mxu0 0.0
        %654 = vmatmul.mubr.f32.gmra.mrb[0].mxu0 %v548
        %v655 = vpop.f32.mrb[0].mxu0
        %v656 = vadd.f32 0.0, %v655
        %v657 = vpop.f32.mrb[0].mxu0
        %658 = vmatprep.mubr.f32.mxu0 0.0
        %659 = vmatmul.mubr.f32.gmra.mrb[0].mxu0 %v550
        %v660 = vpop.f32.mrb[0].mxu0
        %v661 = vadd.f32 0.0, %v660
        %v662 = vpop.f32.mrb[0].mxu0
        %663 = vmatprep.mubr.f32.mxu0 0.0
        %664 = vmatmul.mubr.f32.gmra.mrb[0].mxu0 %v552
        %v665 = vpop.f32.mrb[0].mxu0
        %v666 = vadd.f32 0.0, %v665
        %v667 = vpop.f32.mrb[0].mxu0
        %668 = vmatprep.mubr.f32.mxu0 0.0
        %669 = vmatmul.mubr.f32.gmra.mrb[0].mxu0 %v554
        %v670 = vpop.f32.mrb[0].mxu0
        %v671 = vadd.f32 0.0, %v670
        %v672 = vpop.f32.mrb[0].mxu0
        %673 = vmatprep.mubr.f32.mxu0 0.0
        %674 = vmatmul.mubr.f32.gmra.mrb[0].mxu0 %v556
        %v675 = vpop.f32.mrb[0].mxu0
        %v676 = vadd.f32 0.0, %v675
        %v677 = vpop.f32.mrb[0].mxu0
        %678 = vdwg.mxu0
        %v679 = vsel %vm431, %v641, -inf
        %680 = vmax.xlane.f32.xlu0 %v679
        %v681 = vpop.xlane.xlu0 %680
        %v682 = vsel %vm431, %v646, -inf
        %683 = vmax.xlane.f32.xlu0 %v682
        %v684 = vpop.xlane.xlu0 %683
        %v685 = vsel %vm431, %v651, -inf
        %686 = vmax.xlane.f32.xlu0 %v685
        %v687 = vpop.xlane.xlu0 %686
        %v688 = vsel %vm431, %v656, -inf
        %689 = vmax.xlane.f32.xlu0 %v688
        %v690 = vpop.xlane.xlu0 %689
        %v691 = vsel %vm431, %v661, -inf
        %692 = vmax.xlane.f32.xlu0 %v691
        %v693 = vpop.xlane.xlu0 %692
        %v694 = vsel %vm431, %v666, -inf
        %695 = vmax.xlane.f32.xlu0 %v694
        %v696 = vpop.xlane.xlu0 %695
        %v697 = vsel %vm431, %v671, -inf
        %698 = vmax.xlane.f32.xlu0 %v697
        %v699 = vpop.xlane.xlu0 %698
        %v700 = vsel %vm431, %v676, -inf
        %701 = vmax.xlane.f32.xlu0 %v700
        %v702 = vpop.xlane.xlu0 %701
        %v703 = vsub.f32 %v641, %v681
        %v704 = vsub.f32 %v646, %v684
        %v705 = vsub.f32 %v651, %v687
        %v706 = vsub.f32 %v656, %v690
        %v707 = vsub.f32 %v661, %v693
        %v708 = vsub.f32 %v666, %v696
        %v709 = vsub.f32 %v671, %v699
        %v710 = vsub.f32 %v676, %v702
        %v711 = vmul.f32 %v703, 1.442695
        %v712 = vpow.pop %v711
        %v713 = vmul.f32 %v704, 1.442695
        %v714 = vpow.pop %v713
        %v715 = vmul.f32 %v705, 1.442695
        %v716 = vpow.pop %v715
        %v717 = vmul.f32 %v706, 1.442695
        %v718 = vpow.pop %v717
        %v719 = vmul.f32 %v707, 1.442695
        %v720 = vpow.pop %v719
        %v721 = vmul.f32 %v708, 1.442695
        %v722 = vpow.pop %v721
        %v723 = vmul.f32 %v709, 1.442695
        %v724 = vpow.pop %v723
        %v725 = vmul.f32 %v710, 1.442695
        %v726 = vpow.pop %v725
        %v727 = vsel %vm431, %v712, 0.0
        %728 = vadd.xlane.f32.xlu0 %v727
        %v729 = vpop.xlane.xlu0 %728
        %v730 = vsel %vm431, %v714, 0.0
        %731 = vadd.xlane.f32.xlu0 %v730
        %v732 = vpop.xlane.xlu0 %731
        %v733 = vsel %vm431, %v716, 0.0
        %734 = vadd.xlane.f32.xlu0 %v733
        %v735 = vpop.xlane.xlu0 %734
        %v736 = vsel %vm431, %v718, 0.0
        %737 = vadd.xlane.f32.xlu0 %v736
        %v738 = vpop.xlane.xlu0 %737
        %v739 = vsel %vm431, %v720, 0.0
        %740 = vadd.xlane.f32.xlu0 %v739
        %v741 = vpop.xlane.xlu0 %740
        %v742 = vsel %vm431, %v722, 0.0
        %743 = vadd.xlane.f32.xlu0 %v742
        %v744 = vpop.xlane.xlu0 %743
        %v745 = vsel %vm431, %v724, 0.0
        %746 = vadd.xlane.f32.xlu0 %v745
        %v747 = vpop.xlane.xlu0 %746
        %v748 = vsel %vm431, %v726, 0.0
        %749 = vadd.xlane.f32.xlu0 %v748
        %v750 = vpop.xlane.xlu0 %749
        %v751 = vrcp.pop %v729
        %v752 = vrcp.pop %v732
        %v753 = vrcp.pop %v735
        %v754 = vrcp.pop %v738
        %v755 = vrcp.pop %v741
        %v756 = vrcp.pop %v744
        %v757 = vrcp.pop %v747
        %v758 = vrcp.pop %v750
        %v759 = vmul.f32 %v712, %v751
        %v760 = vmul.f32 %v714, %v752
        %v761 = vmul.f32 %v716, %v753
        %v762 = vmul.f32 %v718, %v754
        %v763 = vmul.f32 %v720, %v755
        %v764 = vmul.f32 %v722, %v756
        %v765 = vmul.f32 %v724, %v757
        %v766 = vmul.f32 %v726, %v758
        %v768 = vsel %vm431, %v759, 0
        %v771 = vsel %vm431, %v760, 0
        %v774 = vsel %vm431, %v761, 0
        %v777 = vsel %vm431, %v762, 0
        %v780 = vsel %vm431, %v763, 0
        %v783 = vsel %vm431, %v764, 0
        %v786 = vsel %vm431, %v765, 0
        %v789 = vsel %vm431, %v766, 0
        %791 = vmatprep.subr.mxu0 0.0
        %792 = vmatpush1.msra.mxu0 %v481
        %793 = vmatprep.subr.mxu0 0.0
        %794 = vmatpush1.msra.mxu0 %v485
        %795 = vmatprep.subr.mxu0 0.0
        %796 = vmatpush1.msra.mxu0 %v491
        %797 = vmatprep.subr.mxu0 0.0
        %798 = vmatpush1.msra.mxu0 %v495
        %799 = vmatprep.subr.mxu0 0.0
        %800 = vmatpush1.msra.mxu0 %v501
        %801 = vmatprep.subr.mxu0 0.0
        %802 = vmatpush1.msra.mxu0 %v505
        %803 = vmatprep.subr.mxu0 0.0
        %804 = vmatpush1.msra.mxu0 %v511
        %805 = vmatprep.subr.mxu0 0.0
        %806 = vmatpush1.msra.mxu0 %v515
        %807 = vmatprep.subr.mxu0 0.0
        %808 = vmatpush1.msra.mxu0 0.0
        %809 = vmatprep.subr.mxu0 0.0
        %810 = vmatpush1.msra.mxu0 0.0
        %811 = vmatprep.subr.mxu0 0.0
        %812 = vmatpush1.msra.mxu0 0.0
        %813 = vmatprep.subr.mxu0 0.0
        %814 = vmatpush1.msra.mxu0 0.0
        %815 = vmatprep.subr.mxu0 0.0
        %816 = vmatpush1.msra.mxu0 0.0
        %817 = vmatprep.subr.mxu0 0.0
        %818 = vmatpush1.msra.mxu0 0.0
        %819 = vmatprep.subr.mxu0 0.0
        %820 = vmatpush1.msra.mxu0 0.0
        %821 = vmatprep.subr.mxu0 0.0
        %822 = vmatpush1.msra.mxu0 0.0
        %823 = vmatprep.subr.mxu0 0.0
        %824 = vmatpush1.msra.mxu0 0.0
        %825 = vmatprep.subr.mxu0 0.0
        %826 = vmatpush1.msra.mxu0 0.0
        %827 = vmatprep.subr.mxu0 0.0
        %828 = vmatpush1.msra.mxu0 0.0
        %829 = vmatprep.subr.mxu0 0.0
        %830 = vmatpush1.msra.mxu0 0.0
        %831 = vmatprep.subr.mxu0 0.0
        %832 = vmatpush1.msra.mxu0 0.0
        %833 = vmatprep.subr.mxu0 0.0
        %834 = vmatpush1.msra.mxu0 0.0
        %835 = vmatprep.subr.mxu0 0.0
        %836 = vmatpush1.msra.mxu0 0.0
        %837 = vmatprep.subr.mxu0 0.0
        %838 = vmatpush1.msra.mxu0 0.0
        %839 = vmatprep.subr.mxu0 0.0
        %840 = vmatpush1.msra.mxu0 0.0
        %841 = vmatprep.subr.mxu0 0.0
        %842 = vmatpush1.msra.mxu0 0.0
        %843 = vmatprep.subr.mxu0 0.0
        %844 = vmatpush1.msra.mxu0 0.0
        %845 = vmatprep.subr.mxu0 0.0
        %846 = vmatpush1.msra.mxu0 0.0
        %847 = vmatprep.subr.mxu0 0.0
        %848 = vmatpush1.msra.mxu0 0.0
        %849 = vmatprep.subr.mxu0 0.0
        %850 = vmatpush1.msra.mxu0 0.0
        %851 = vmatprep.subr.mxu0 0.0
        %852 = vmatpush1.msra.mxu0 0.0
        %853 = vmatprep.subr.mxu0 0.0
        %854 = vmatpush1.msra.mxu0 0.0
        %855 = vmatprep.mubr.f32.mxu0 0.0
        %856 = vmatmul.mubr.f32.gmra.mrb[0].mxu0 %v768
        %v857 = vpop.f32.mrb[0].mxu0
        %v858 = vadd.f32 0.0, %v857
        %v859 = vpop.f32.mrb[0].mxu0
        %860 = vmatprep.mubr.f32.mxu0 0.0
        %861 = vmatmul.mubr.f32.gmra.mrb[0].mxu0 %v771
        %v862 = vpop.f32.mrb[0].mxu0
        %v863 = vadd.f32 0.0, %v862
        %v864 = vpop.f32.mrb[0].mxu0
        %865 = vmatprep.mubr.f32.mxu0 0.0
        %866 = vmatmul.mubr.f32.gmra.mrb[0].mxu0 %v774
        %v867 = vpop.f32.mrb[0].mxu0
        %v868 = vadd.f32 0.0, %v867
        %v869 = vpop.f32.mrb[0].mxu0
        %870 = vmatprep.mubr.f32.mxu0 0.0
        %871 = vmatmul.mubr.f32.gmra.mrb[0].mxu0 %v777
        %v872 = vpop.f32.mrb[0].mxu0
        %v873 = vadd.f32 0.0, %v872
        %v874 = vpop.f32.mrb[0].mxu0
        %875 = vmatprep.mubr.f32.mxu0 0.0
        %876 = vmatmul.mubr.f32.gmra.mrb[0].mxu0 %v780
        %v877 = vpop.f32.mrb[0].mxu0
        %v878 = vadd.f32 0.0, %v877
        %v879 = vpop.f32.mrb[0].mxu0
        %880 = vmatprep.mubr.f32.mxu0 0.0
        %881 = vmatmul.mubr.f32.gmra.mrb[0].mxu0 %v783
        %v882 = vpop.f32.mrb[0].mxu0
        %v883 = vadd.f32 0.0, %v882
        %v884 = vpop.f32.mrb[0].mxu0
        %885 = vmatprep.mubr.f32.mxu0 0.0
        %886 = vmatmul.mubr.f32.gmra.mrb[0].mxu0 %v786
        %v887 = vpop.f32.mrb[0].mxu0
        %v888 = vadd.f32 0.0, %v887
        %v889 = vpop.f32.mrb[0].mxu0
        %890 = vmatprep.mubr.f32.mxu0 0.0
        %891 = vmatmul.mubr.f32.gmra.mrb[0].mxu0 %v789
        %v892 = vpop.f32.mrb[0].mxu0
        %v893 = vadd.f32 0.0, %v892
        %v894 = vpop.f32.mrb[0].mxu0
        %895 = vdwg.mxu0
        %v896 = vpack.c.bf16 %v863, %v858
        %v897 = vpack.c.bf16 %v873, %v868
        %v898 = vpack.c.bf16 %v883, %v878
        %v899 = vpack.c.bf16 %v893, %v888
        %v900 = vld [vmem:[%s3] sm:$0xf]
        %v901 = vld [vmem:[%s3 + $0x4] sm:$0xf]
        %v902 = vld [vmem:[%s3 + $0x8] sm:$0xf]
        %v903 = vld [vmem:[%s3 + $0xc] sm:$0xf]
        %904 = vrot.lane.b32.xlu0 %v479, 96
        %v905 = vpop.permute.xlu0 %904
        %906 = vrot.lane.b32.xlu0 %v483, 96
        %v907 = vpop.permute.xlu0 %906
        %908 = vrot.lane.b32.xlu0 %v489, 96
        %v909 = vpop.permute.xlu0 %908
        %910 = vrot.lane.b32.xlu0 %v493, 96
        %v911 = vpop.permute.xlu0 %910
        %912 = vrot.lane.b32.xlu0 %v499, 96
        %v913 = vpop.permute.xlu0 %912
        %914 = vrot.lane.b32.xlu0 %v503, 96
        %v915 = vpop.permute.xlu0 %914
        %916 = vrot.lane.b32.xlu0 %v509, 96
        %v917 = vpop.permute.xlu0 %916
        %918 = vrot.lane.b32.xlu0 %v513, 96
        %v919 = vpop.permute.xlu0 %918
        %920 = vrot.lane.b32.xlu0 %v479, 32
        %v921 = vpop.permute.xlu0 %920
        %922 = vrot.lane.b32.xlu0 %v483, 32
        %v923 = vpop.permute.xlu0 %922
        %924 = vrot.lane.b32.xlu0 %v489, 32
        %v925 = vpop.permute.xlu0 %924
        %926 = vrot.lane.b32.xlu0 %v493, 32
        %v927 = vpop.permute.xlu0 %926
        %928 = vrot.lane.b32.xlu0 %v499, 32
        %v929 = vpop.permute.xlu0 %928
        %930 = vrot.lane.b32.xlu0 %v503, 32
        %v931 = vpop.permute.xlu0 %930
        %932 = vrot.lane.b32.xlu0 %v509, 32
        %v933 = vpop.permute.xlu0 %932
        %934 = vrot.lane.b32.xlu0 %v513, 32
        %v935 = vpop.permute.xlu0 %934
        %v936 = vsel %vm541, %v905, 0
        %v938 = vsel %vm541, %v907, 0
        %v940 = vsel %vm541, %v909, 0
        %v942 = vsel %vm541, %v911, 0
        %v944 = vsel %vm541, %v913, 0
        %v946 = vsel %vm541, %v915, 0
        %v948 = vsel %vm541, %v917, 0
        %v950 = vsel %vm541, %v919, 0
        %v952 = vsel %vm541, %v921, 0
        %v954 = vsel %vm541, %v923, 0
        %v956 = vsel %vm541, %v925, 0
        %v958 = vsel %vm541, %v927, 0
        %v960 = vsel %vm541, %v929, 0
        %v962 = vsel %vm541, %v931, 0
        %v964 = vsel %vm541, %v933, 0
        %v966 = vsel %vm541, %v935, 0
        %968 = vmatprep.subr.mxu0 0.0
        %969 = vmatpush1.xpose.msra.mxu0 %v952
        %970 = vmatprep.subr.mxu0 0.0
        %971 = vmatpush1.xpose.msra.mxu0 %v954
        %972 = vmatprep.subr.mxu0 0.0
        %973 = vmatpush1.xpose.msra.mxu0 %v956
        %974 = vmatprep.subr.mxu0 0.0
        %975 = vmatpush1.xpose.msra.mxu0 %v958
        %976 = vmatprep.subr.mxu0 0.0
        %977 = vmatpush1.xpose.msra.mxu0 %v960
        %978 = vmatprep.subr.mxu0 0.0
        %979 = vmatpush1.xpose.msra.mxu0 %v962
        %980 = vmatprep.subr.mxu0 0.0
        %981 = vmatpush1.xpose.msra.mxu0 %v964
        %982 = vmatprep.subr.mxu0 0.0
        %983 = vmatpush1.xpose.msra.mxu0 %v966
        %984 = vmatprep.subr.mxu0 0.0
        %985 = vmatpush1.xpose.msra.mxu0 0.0
        %986 = vmatprep.subr.mxu0 0.0
        %987 = vmatpush1.xpose.msra.mxu0 0.0
        %988 = vmatprep.subr.mxu0 0.0
        %989 = vmatpush1.xpose.msra.mxu0 0.0
        %990 = vmatprep.subr.mxu0 0.0
        %991 = vmatpush1.xpose.msra.mxu0 0.0
        %992 = vmatprep.subr.mxu0 0.0
        %993 = vmatpush1.xpose.msra.mxu0 0.0
        %994 = vmatprep.subr.mxu0 0.0
        %995 = vmatpush1.xpose.msra.mxu0 0.0
        %996 = vmatprep.subr.mxu0 0.0
        %997 = vmatpush1.xpose.msra.mxu0 0.0
        %998 = vmatprep.subr.mxu0 0.0
        %999 = vmatpush1.xpose.msra.mxu0 0.0
        %1000 = vmatprep.subr.mxu0 0.0
        %1001 = vmatpush1.xpose.msra.mxu0 0.0
        %1002 = vmatprep.subr.mxu0 0.0
        %1003 = vmatpush1.xpose.msra.mxu0 0.0
        %1004 = vmatprep.subr.mxu0 0.0
        %1005 = vmatpush1.xpose.msra.mxu0 0.0
        %1006 = vmatprep.subr.mxu0 0.0
        %1007 = vmatpush1.xpose.msra.mxu0 0.0
        %1008 = vmatprep.subr.mxu0 0.0
        %1009 = vmatpush1.xpose.msra.mxu0 0.0
        %1010 = vmatprep.subr.mxu0 0.0
        %1011 = vmatpush1.xpose.msra.mxu0 0.0
        %1012 = vmatprep.subr.mxu0 0.0
        %1013 = vmatpush1.xpose.msra.mxu0 0.0
        %1014 = vmatprep.subr.mxu0 0.0
        %1015 = vmatpush1.xpose.msra.mxu0 0.0
        %1016 = vmatprep.subr.mxu0 0.0
        %1017 = vmatpush1.xpose.msra.mxu0 0.0
        %1018 = vmatprep.subr.mxu0 0.0
        %1019 = vmatpush1.xpose.msra.mxu0 0.0
        %1020 = vmatprep.subr.mxu0 0.0
        %1021 = vmatpush1.xpose.msra.mxu0 0.0
        %1022 = vmatprep.subr.mxu0 0.0
        %1023 = vmatpush1.xpose.msra.mxu0 0.0
        %1024 = vmatprep.subr.mxu0 0.0
        %1025 = vmatpush1.xpose.msra.mxu0 0.0
        %1026 = vmatprep.subr.mxu0 0.0
        %1027 = vmatpush1.xpose.msra.mxu0 0.0
        %1028 = vmatprep.subr.mxu0 0.0
        %1029 = vmatpush1.xpose.msra.mxu0 0.0
        %1030 = vmatprep.subr.mxu0 0.0
        %1031 = vmatpush1.xpose.msra.mxu0 0.0
        %1032 = vmatprep.mubr.f32.mxu0 0.0
        %1033 = vmatmul.mubr.f32.gmra.mrb[0].mxu0 %v936
        %v1034 = vpop.f32.mrb[0].mxu0
        %v1035 = vadd.f32 0.0, %v1034
        %v1036 = vpop.f32.mrb[0].mxu0
        %1037 = vmatprep.mubr.f32.mxu0 0.0
        %1038 = vmatmul.mubr.f32.gmra.mrb[0].mxu0 %v938
        %v1039 = vpop.f32.mrb[0].mxu0
        %v1040 = vadd.f32 0.0, %v1039
        %v1041 = vpop.f32.mrb[0].mxu0
        %1042 = vmatprep.mubr.f32.mxu0 0.0
        %1043 = vmatmul.mubr.f32.gmra.mrb[0].mxu0 %v940
        %v1044 = vpop.f32.mrb[0].mxu0
        %v1045 = vadd.f32 0.0, %v1044
        %v1046 = vpop.f32.mrb[0].mxu0
        %1047 = vmatprep.mubr.f32.mxu0 0.0
        %1048 = vmatmul.mubr.f32.gmra.mrb[0].mxu0 %v942
        %v1049 = vpop.f32.mrb[0].mxu0
        %v1050 = vadd.f32 0.0, %v1049
        %v1051 = vpop.f32.mrb[0].mxu0
        %1052 = vmatprep.mubr.f32.mxu0 0.0
        %1053 = vmatmul.mubr.f32.gmra.mrb[0].mxu0 %v944
        %v1054 = vpop.f32.mrb[0].mxu0
        %v1055 = vadd.f32 0.0, %v1054
        %v1056 = vpop.f32.mrb[0].mxu0
        %1057 = vmatprep.mubr.f32.mxu0 0.0
        %1058 = vmatmul.mubr.f32.gmra.mrb[0].mxu0 %v946
        %v1059 = vpop.f32.mrb[0].mxu0
        %v1060 = vadd.f32 0.0, %v1059
        %v1061 = vpop.f32.mrb[0].mxu0
        %1062 = vmatprep.mubr.f32.mxu0 0.0
        %1063 = vmatmul.mubr.f32.gmra.mrb[0].mxu0 %v948
        %v1064 = vpop.f32.mrb[0].mxu0
        %v1065 = vadd.f32 0.0, %v1064
        %v1066 = vpop.f32.mrb[0].mxu0
        %1067 = vmatprep.mubr.f32.mxu0 0.0
        %1068 = vmatmul.mubr.f32.gmra.mrb[0].mxu0 %v950
        %v1069 = vpop.f32.mrb[0].mxu0
        %v1070 = vadd.f32 0.0, %v1069
        %v1071 = vpop.f32.mrb[0].mxu0
        %1072 = vdwg.mxu0
        %v1073 = vsel %vm431, %v1035, -inf
        %1074 = vmax.xlane.f32.xlu0 %v1073
        %v1075 = vpop.xlane.xlu0 %1074
        %v1076 = vsel %vm431, %v1040, -inf
        %1077 = vmax.xlane.f32.xlu0 %v1076
        %v1078 = vpop.xlane.xlu0 %1077
        %v1079 = vsel %vm431, %v1045, -inf
        %1080 = vmax.xlane.f32.xlu0 %v1079
        %v1081 = vpop.xlane.xlu0 %1080
        %v1082 = vsel %vm431, %v1050, -inf
        %1083 = vmax.xlane.f32.xlu0 %v1082
        %v1084 = vpop.xlane.xlu0 %1083
        %v1085 = vsel %vm431, %v1055, -inf
        %1086 = vmax.xlane.f32.xlu0 %v1085
        %v1087 = vpop.xlane.xlu0 %1086
        %v1088 = vsel %vm431, %v1060, -inf
        %1089 = vmax.xlane.f32.xlu0 %v1088
        %v1090 = vpop.xlane.xlu0 %1089
        %v1091 = vsel %vm431, %v1065, -inf
        %1092 = vmax.xlane.f32.xlu0 %v1091
        %v1093 = vpop.xlane.xlu0 %1092
        %v1094 = vsel %vm431, %v1070, -inf
        %1095 = vmax.xlane.f32.xlu0 %v1094
        %v1096 = vpop.xlane.xlu0 %1095
        %v1097 = vsub.f32 %v1035, %v1075
        %v1098 = vsub.f32 %v1040, %v1078
        %v1099 = vsub.f32 %v1045, %v1081
        %v1100 = vsub.f32 %v1050, %v1084
        %v1101 = vsub.f32 %v1055, %v1087
        %v1102 = vsub.f32 %v1060, %v1090
        %v1103 = vsub.f32 %v1065, %v1093
        %v1104 = vsub.f32 %v1070, %v1096
        %v1105 = vmul.f32 %v1097, 1.442695
        %v1106 = vpow.pop %v1105
        %v1107 = vmul.f32 %v1098, 1.442695
        %v1108 = vpow.pop %v1107
        %v1109 = vmul.f32 %v1099, 1.442695
        %v1110 = vpow.pop %v1109
        %v1111 = vmul.f32 %v1100, 1.442695
        %v1112 = vpow.pop %v1111
        %v1113 = vmul.f32 %v1101, 1.442695
        %v1114 = vpow.pop %v1113
        %v1115 = vmul.f32 %v1102, 1.442695
        %v1116 = vpow.pop %v1115
        %v1117 = vmul.f32 %v1103, 1.442695
        %v1118 = vpow.pop %v1117
        %v1119 = vmul.f32 %v1104, 1.442695
        %v1120 = vpow.pop %v1119
        %v1121 = vsel %vm431, %v1106, 0.0
        %1122 = vadd.xlane.f32.xlu0 %v1121
        %v1123 = vpop.xlane.xlu0 %1122
        %v1124 = vsel %vm431, %v1108, 0.0
        %1125 = vadd.xlane.f32.xlu0 %v1124
        %v1126 = vpop.xlane.xlu0 %1125
        %v1127 = vsel %vm431, %v1110, 0.0
        %1128 = vadd.xlane.f32.xlu0 %v1127
        %v1129 = vpop.xlane.xlu0 %1128
        %v1130 = vsel %vm431, %v1112, 0.0
        %1131 = vadd.xlane.f32.xlu0 %v1130
        %v1132 = vpop.xlane.xlu0 %1131
        %v1133 = vsel %vm431, %v1114, 0.0
        %1134 = vadd.xlane.f32.xlu0 %v1133
        %v1135 = vpop.xlane.xlu0 %1134
        %v1136 = vsel %vm431, %v1116, 0.0
        %1137 = vadd.xlane.f32.xlu0 %v1136
        %v1138 = vpop.xlane.xlu0 %1137
        %v1139 = vsel %vm431, %v1118, 0.0
        %1140 = vadd.xlane.f32.xlu0 %v1139
        %v1141 = vpop.xlane.xlu0 %1140
        %v1142 = vsel %vm431, %v1120, 0.0
        %1143 = vadd.xlane.f32.xlu0 %v1142
        %v1144 = vpop.xlane.xlu0 %1143
        %v1145 = vrcp.pop %v1123
        %v1146 = vrcp.pop %v1126
        %v1147 = vrcp.pop %v1129
        %v1148 = vrcp.pop %v1132
        %v1149 = vrcp.pop %v1135
        %v1150 = vrcp.pop %v1138
        %v1151 = vrcp.pop %v1141
        %v1152 = vrcp.pop %v1144
        %v1153 = vmul.f32 %v1106, %v1145
        %v1154 = vmul.f32 %v1108, %v1146
        %v1155 = vmul.f32 %v1110, %v1147
        %v1156 = vmul.f32 %v1112, %v1148
        %v1157 = vmul.f32 %v1114, %v1149
        %v1158 = vmul.f32 %v1116, %v1150
        %v1159 = vmul.f32 %v1118, %v1151
        %v1160 = vmul.f32 %v1120, %v1152
        %1169 = vrot.lane.b32.xlu0 %v481, 96
        %v1170 = vpop.permute.xlu0 %1169
        %1171 = vrot.lane.b32.xlu0 %v485, 96
        %v1172 = vpop.permute.xlu0 %1171
        %1173 = vrot.lane.b32.xlu0 %v491, 96
        %v1174 = vpop.permute.xlu0 %1173
        %1175 = vrot.lane.b32.xlu0 %v495, 96
        %v1176 = vpop.permute.xlu0 %1175
        %1177 = vrot.lane.b32.xlu0 %v501, 96
        %v1178 = vpop.permute.xlu0 %1177
        %1179 = vrot.lane.b32.xlu0 %v505, 96
        %v1180 = vpop.permute.xlu0 %1179
        %1181 = vrot.lane.b32.xlu0 %v511, 96
        %v1182 = vpop.permute.xlu0 %1181
        %1183 = vrot.lane.b32.xlu0 %v515, 96
        %v1184 = vpop.permute.xlu0 %1183
        %v1194 = vsel %vm431, %v1153, 0
        %v1197 = vsel %vm431, %v1154, 0
        %v1200 = vsel %vm431, %v1155, 0
        %v1203 = vsel %vm431, %v1156, 0
        %v1206 = vsel %vm431, %v1157, 0
        %v1209 = vsel %vm431, %v1158, 0
        %v1212 = vsel %vm431, %v1159, 0
        %v1215 = vsel %vm431, %v1160, 0
        %1217 = vmatprep.subr.mxu0 0.0
        %1218 = vmatpush1.msra.mxu0 %v1170
        %1219 = vmatprep.subr.mxu0 0.0
        %1220 = vmatpush1.msra.mxu0 %v1172
        %1221 = vmatprep.subr.mxu0 0.0
        %1222 = vmatpush1.msra.mxu0 %v1174
        %1223 = vmatprep.subr.mxu0 0.0
        %1224 = vmatpush1.msra.mxu0 %v1176
        %1225 = vmatprep.subr.mxu0 0.0
        %1226 = vmatpush1.msra.mxu0 %v1178
        %1227 = vmatprep.subr.mxu0 0.0
        %1228 = vmatpush1.msra.mxu0 %v1180
        %1229 = vmatprep.subr.mxu0 0.0
        %1230 = vmatpush1.msra.mxu0 %v1182
        %1231 = vmatprep.subr.mxu0 0.0
        %1232 = vmatpush1.msra.mxu0 %v1184
        %1233 = vmatprep.subr.mxu0 0.0
        %1234 = vmatpush1.msra.mxu0 0.0
        %1235 = vmatprep.subr.mxu0 0.0
        %1236 = vmatpush1.msra.mxu0 0.0
        %1237 = vmatprep.subr.mxu0 0.0
        %1238 = vmatpush1.msra.mxu0 0.0
        %1239 = vmatprep.subr.mxu0 0.0
        %1240 = vmatpush1.msra.mxu0 0.0
        %1241 = vmatprep.subr.mxu0 0.0
        %1242 = vmatpush1.msra.mxu0 0.0
        %1243 = vmatprep.subr.mxu0 0.0
        %1244 = vmatpush1.msra.mxu0 0.0
        %1245 = vmatprep.subr.mxu0 0.0
        %1246 = vmatpush1.msra.mxu0 0.0
        %1247 = vmatprep.subr.mxu0 0.0
        %1248 = vmatpush1.msra.mxu0 0.0
        %1249 = vmatprep.subr.mxu0 0.0
        %1250 = vmatpush1.msra.mxu0 0.0
        %1251 = vmatprep.subr.mxu0 0.0
        %1252 = vmatpush1.msra.mxu0 0.0
        %1253 = vmatprep.subr.mxu0 0.0
        %1254 = vmatpush1.msra.mxu0 0.0
        %1255 = vmatprep.subr.mxu0 0.0
        %1256 = vmatpush1.msra.mxu0 0.0
        %1257 = vmatprep.subr.mxu0 0.0
        %1258 = vmatpush1.msra.mxu0 0.0
        %1259 = vmatprep.subr.mxu0 0.0
        %1260 = vmatpush1.msra.mxu0 0.0
        %1261 = vmatprep.subr.mxu0 0.0
        %1262 = vmatpush1.msra.mxu0 0.0
        %1263 = vmatprep.subr.mxu0 0.0
        %1264 = vmatpush1.msra.mxu0 0.0
        %1265 = vmatprep.subr.mxu0 0.0
        %1266 = vmatpush1.msra.mxu0 0.0
        %1267 = vmatprep.subr.mxu0 0.0
        %1268 = vmatpush1.msra.mxu0 0.0
        %1269 = vmatprep.subr.mxu0 0.0
        %1270 = vmatpush1.msra.mxu0 0.0
        %1271 = vmatprep.subr.mxu0 0.0
        %1272 = vmatpush1.msra.mxu0 0.0
        %1273 = vmatprep.subr.mxu0 0.0
        %1274 = vmatpush1.msra.mxu0 0.0
        %1275 = vmatprep.subr.mxu0 0.0
        %1276 = vmatpush1.msra.mxu0 0.0
        %1277 = vmatprep.subr.mxu0 0.0
        %1278 = vmatpush1.msra.mxu0 0.0
        %1279 = vmatprep.subr.mxu0 0.0
        %1280 = vmatpush1.msra.mxu0 0.0
        %1281 = vmatprep.mubr.f32.mxu0 0.0
        %1282 = vmatmul.mubr.f32.gmra.mrb[0].mxu0 %v1194
        %v1283 = vpop.f32.mrb[0].mxu0
        %v1284 = vadd.f32 0.0, %v1283
        %v1285 = vpop.f32.mrb[0].mxu0
        %1286 = vmatprep.mubr.f32.mxu0 0.0
        %1287 = vmatmul.mubr.f32.gmra.mrb[0].mxu0 %v1197
        %v1288 = vpop.f32.mrb[0].mxu0
        %v1289 = vadd.f32 0.0, %v1288
        %v1290 = vpop.f32.mrb[0].mxu0
        %1291 = vmatprep.mubr.f32.mxu0 0.0
        %1292 = vmatmul.mubr.f32.gmra.mrb[0].mxu0 %v1200
        %v1293 = vpop.f32.mrb[0].mxu0
        %v1294 = vadd.f32 0.0, %v1293
        %v1295 = vpop.f32.mrb[0].mxu0
        %1296 = vmatprep.mubr.f32.mxu0 0.0
        %1297 = vmatmul.mubr.f32.gmra.mrb[0].mxu0 %v1203
        %v1298 = vpop.f32.mrb[0].mxu0
        %v1299 = vadd.f32 0.0, %v1298
        %v1300 = vpop.f32.mrb[0].mxu0
        %1301 = vmatprep.mubr.f32.mxu0 0.0
        %1302 = vmatmul.mubr.f32.gmra.mrb[0].mxu0 %v1206
        %v1303 = vpop.f32.mrb[0].mxu0
        %v1304 = vadd.f32 0.0, %v1303
        %v1305 = vpop.f32.mrb[0].mxu0
        %1306 = vmatprep.mubr.f32.mxu0 0.0
        %1307 = vmatmul.mubr.f32.gmra.mrb[0].mxu0 %v1209
        %v1308 = vpop.f32.mrb[0].mxu0
        %v1309 = vadd.f32 0.0, %v1308
        %v1310 = vpop.f32.mrb[0].mxu0
        %1311 = vmatprep.mubr.f32.mxu0 0.0
        %1312 = vmatmul.mubr.f32.gmra.mrb[0].mxu0 %v1212
        %v1313 = vpop.f32.mrb[0].mxu0
        %v1314 = vadd.f32 0.0, %v1313
        %v1315 = vpop.f32.mrb[0].mxu0
        %1316 = vmatprep.mubr.f32.mxu0 0.0
        %1317 = vmatmul.mubr.f32.gmra.mrb[0].mxu0 %v1215
        %v1318 = vpop.f32.mrb[0].mxu0
        %v1319 = vadd.f32 0.0, %v1318
        %v1320 = vpop.f32.mrb[0].mxu0
        %1321 = vdwg.mxu0
        %v1322 = vpack.c.bf16 %v1289, %v1284
        %v1323 = vpack.c.bf16 %v1299, %v1294
        %v1324 = vpack.c.bf16 %v1309, %v1304
        %v1325 = vpack.c.bf16 %v1319, %v1314
        %v1326 = vld [vmem:[%s3 + $0x10] sm:$0xf]
        %v1327 = vld [vmem:[%s3 + $0x14] sm:$0xf]
        %v1328 = vld [vmem:[%s3 + $0x18] sm:$0xf]
        %v1329 = vld [vmem:[%s3 + $0x1c] sm:$0xf]
        %v1334 = vunpack.c.l.b16 %v1326
        %v1335 = vunpack.c.l.b16 %v1327
        %v1336 = vunpack.c.l.b16 %v1328
        %v1337 = vunpack.c.l.b16 %v1329
        %v1338 = vpack.c.b16 %v1335, %v1334
        %v1339 = vpack.c.b16 %v1337, %v1336
        %v1343 = vsel %vm541, %v1322, 0
        %v1346 = vsel %vm541, %v1323, 0
        %v1349 = vsel %vm541, %v1324, 0
        %v1352 = vsel %vm541, %v1325, 0
        %1354 = vmatprep.subr.bf16.mxu0 0
        %1355 = vmatpush1.bf16.msra.mxu0 %v1338
        %1356 = vmatprep.subr.bf16.mxu0 0
        %1357 = vmatpush1.bf16.msra.mxu0 %v1339
        %1358 = vmatprep.subr.bf16.mxu0 0
        %1359 = vmatpush1.bf16.msra.mxu0 0
        %1360 = vmatprep.subr.bf16.mxu0 0
        %1361 = vmatpush1.bf16.msra.mxu0 0
        %1362 = vmatprep.subr.bf16.mxu0 0
        %1363 = vmatpush1.bf16.msra.mxu0 0
        %1364 = vmatprep.subr.bf16.mxu0 0
        %1365 = vmatpush1.bf16.msra.mxu0 0
        %1366 = vmatprep.subr.bf16.mxu0 0
        %1367 = vmatpush1.bf16.msra.mxu0 0
        %1368 = vmatprep.subr.bf16.mxu0 0
        %1369 = vmatpush1.bf16.msra.mxu0 0
        %1370 = vmatprep.subr.bf16.mxu0 0
        %1371 = vmatpush1.bf16.msra.mxu0 0
        %1372 = vmatprep.subr.bf16.mxu0 0
        %1373 = vmatpush1.bf16.msra.mxu0 0
        %1374 = vmatprep.subr.bf16.mxu0 0
        %1375 = vmatpush1.bf16.msra.mxu0 0
        %1376 = vmatprep.subr.bf16.mxu0 0
        %1377 = vmatpush1.bf16.msra.mxu0 0
        %1378 = vmatprep.subr.bf16.mxu0 0
        %1379 = vmatpush1.bf16.msra.mxu0 0
        %1380 = vmatprep.subr.bf16.mxu0 0
        %1381 = vmatpush1.bf16.msra.mxu0 0
        %1382 = vmatprep.subr.bf16.mxu0 0
        %1383 = vmatpush1.bf16.msra.mxu0 0
        %1384 = vmatprep.subr.bf16.mxu0 0
        %1385 = vmatpush1.bf16.msra.mxu0 0
        %1386 = vmatprep.mubr.bf16.mxu0 0
        %1387 = vmatmul.mubr.bf16.gmra.mrb[0].mxu0 %v1343
        %v1388 = vpop.f32.mrb[0].mxu0
        %v1389 = vadd.f32 0.0, %v1388
        %v1390 = vpop.f32.mrb[0].mxu0
        %v1391 = vpop.f32.mrb[0].mxu0
        %v1392 = vadd.f32 0.0, %v1391
        %v1393 = vpop.f32.mrb[0].mxu0
        %1394 = vmatprep.mubr.bf16.mxu0 0
        %1395 = vmatmul.mubr.bf16.gmra.mrb[0].mxu0 %v1346
        %v1396 = vpop.f32.mrb[0].mxu0
        %v1397 = vadd.f32 0.0, %v1396
        %v1398 = vpop.f32.mrb[0].mxu0
        %v1399 = vpop.f32.mrb[0].mxu0
        %v1400 = vadd.f32 0.0, %v1399
        %v1401 = vpop.f32.mrb[0].mxu0
        %1402 = vmatprep.mubr.bf16.mxu0 0
        %1403 = vmatmul.mubr.bf16.gmra.mrb[0].mxu0 %v1349
        %v1404 = vpop.f32.mrb[0].mxu0
        %v1405 = vadd.f32 0.0, %v1404
        %v1406 = vpop.f32.mrb[0].mxu0
        %v1407 = vpop.f32.mrb[0].mxu0
        %v1408 = vadd.f32 0.0, %v1407
        %v1409 = vpop.f32.mrb[0].mxu0
        %1410 = vmatprep.mubr.bf16.mxu0 0
        %1411 = vmatmul.mubr.bf16.gmra.mrb[0].mxu0 %v1352
        %v1412 = vpop.f32.mrb[0].mxu0
        %v1413 = vadd.f32 0.0, %v1412
        %v1414 = vpop.f32.mrb[0].mxu0
        %v1415 = vpop.f32.mrb[0].mxu0
        %v1416 = vadd.f32 0.0, %v1415
        %v1417 = vpop.f32.mrb[0].mxu0
        %1418 = vdwg.mxu0
        %v1423 = vunpack.c.l.b16 %v900
        %v1424 = vunpack.c.l.b16 %v901
        %v1425 = vunpack.c.l.b16 %v902
        %v1426 = vunpack.c.l.b16 %v903
        %v1427 = vpack.c.b16 %v1424, %v1423
        %v1428 = vpack.c.b16 %v1426, %v1425
        %v1432 = vsel %vm541, %v896, 0
        %v1435 = vsel %vm541, %v897, 0
        %v1438 = vsel %vm541, %v898, 0
        %v1441 = vsel %vm541, %v899, 0
        %1443 = vmatprep.subr.bf16.mxu0 0
        %1444 = vmatpush1.bf16.msra.mxu0 %v1427
        %1445 = vmatprep.subr.bf16.mxu0 0
        %1446 = vmatpush1.bf16.msra.mxu0 %v1428
        %1447 = vmatprep.subr.bf16.mxu0 0
        %1448 = vmatpush1.bf16.msra.mxu0 0
        %1449 = vmatprep.subr.bf16.mxu0 0
        %1450 = vmatpush1.bf16.msra.mxu0 0
        %1451 = vmatprep.subr.bf16.mxu0 0
        %1452 = vmatpush1.bf16.msra.mxu0 0
        %1453 = vmatprep.subr.bf16.mxu0 0
        %1454 = vmatpush1.bf16.msra.mxu0 0
        %1455 = vmatprep.subr.bf16.mxu0 0
        %1456 = vmatpush1.bf16.msra.mxu0 0
        %1457 = vmatprep.subr.bf16.mxu0 0
        %1458 = vmatpush1.bf16.msra.mxu0 0
        %1459 = vmatprep.subr.bf16.mxu0 0
        %1460 = vmatpush1.bf16.msra.mxu0 0
        %1461 = vmatprep.subr.bf16.mxu0 0
        %1462 = vmatpush1.bf16.msra.mxu0 0
        %1463 = vmatprep.subr.bf16.mxu0 0
        %1464 = vmatpush1.bf16.msra.mxu0 0
        %1465 = vmatprep.subr.bf16.mxu0 0
        %1466 = vmatpush1.bf16.msra.mxu0 0
        %1467 = vmatprep.subr.bf16.mxu0 0
        %1468 = vmatpush1.bf16.msra.mxu0 0
        %1469 = vmatprep.subr.bf16.mxu0 0
        %1470 = vmatpush1.bf16.msra.mxu0 0
        %1471 = vmatprep.subr.bf16.mxu0 0
        %1472 = vmatpush1.bf16.msra.mxu0 0
        %1473 = vmatprep.subr.bf16.mxu0 0
        %1474 = vmatpush1.bf16.msra.mxu0 0
        %1475 = vmatprep.mubr.bf16.mxu0 0
        %1476 = vmatmul.mubr.bf16.gmra.mrb[0].mxu0 %v1432
        %v1477 = vpop.f32.mrb[0].mxu0
        %v1478 = vadd.f32 %v1389, %v1477
        %v1479 = vpop.f32.mrb[0].mxu0
        %v1480 = vpop.f32.mrb[0].mxu0
        %v1481 = vadd.f32 %v1392, %v1480
        %v1482 = vpop.f32.mrb[0].mxu0
        %1483 = vmatprep.mubr.bf16.mxu0 0
        %1484 = vmatmul.mubr.bf16.gmra.mrb[0].mxu0 %v1435
        %v1485 = vpop.f32.mrb[0].mxu0
        %v1486 = vadd.f32 %v1397, %v1485
        %v1487 = vpop.f32.mrb[0].mxu0
        %v1488 = vpop.f32.mrb[0].mxu0
        %v1489 = vadd.f32 %v1400, %v1488
        %v1490 = vpop.f32.mrb[0].mxu0
        %1491 = vmatprep.mubr.bf16.mxu0 0
        %1492 = vmatmul.mubr.bf16.gmra.mrb[0].mxu0 %v1438
        %v1493 = vpop.f32.mrb[0].mxu0
        %v1494 = vadd.f32 %v1405, %v1493
        %v1495 = vpop.f32.mrb[0].mxu0
        %v1496 = vpop.f32.mrb[0].mxu0
        %v1497 = vadd.f32 %v1408, %v1496
        %v1498 = vpop.f32.mrb[0].mxu0
        %1499 = vmatprep.mubr.bf16.mxu0 0
        %1500 = vmatmul.mubr.bf16.gmra.mrb[0].mxu0 %v1441
        %v1501 = vpop.f32.mrb[0].mxu0
        %v1502 = vadd.f32 %v1413, %v1501
        %v1503 = vpop.f32.mrb[0].mxu0
        %v1504 = vpop.f32.mrb[0].mxu0
        %v1505 = vadd.f32 %v1416, %v1504
        %v1506 = vpop.f32.mrb[0].mxu0
        %1507 = vdwg.mxu0
        %v1508 = vadd.f32 %v359, %v1478
        %v1509 = vadd.f32 %v360, %v1481
        %v1510 = vadd.f32 %v361, %v1486
        %v1511 = vadd.f32 %v362, %v1489
        %v1512 = vadd.f32 %v363, %v1494
        %v1513 = vadd.f32 %v364, %v1497
        %v1514 = vadd.f32 %v365, %v1502
        %v1515 = vadd.f32 %v366, %v1505
        %v1516 = vld [vmem:[%s4] sm:$0x1]
        %v1518 = vlaneseq
        %v1519 = vshrl.u32 %v1518, 7
        %v1520 = vsub.s32 0, %v1519
        %v1521 = vrot.slane %v1516, %v1520
        %v1523 = vadd.f32 %v1508, %v1521
        %v1524 = vadd.f32 %v1509, %v1521
        %v1525 = vadd.f32 %v1510, %v1521
        %v1526 = vadd.f32 %v1511, %v1521
        %v1527 = vadd.f32 %v1512, %v1521
        %v1528 = vadd.f32 %v1513, %v1521
        %v1529 = vadd.f32 %v1514, %v1521
        %v1530 = vadd.f32 %v1515, %v1521
        %v1531 = vlaneseq
        %v1532 = vshrl.u32 %v1531, 7
        %v1533 = vadd.s32 %v1532, 8
        %v1534 = vadd.s32 %v1532, 16
        %v1535 = vadd.s32 %v1532, 24
        %v1536 = vadd.s32 %v1532, 32
        %v1537 = vadd.s32 %v1532, 40
        %v1538 = vadd.s32 %v1532, 48
        %v1539 = vadd.s32 %v1532, 56
        %vm1540 = vcmp.lt.s32.totalorder %v1532, 0
        %v1541 = vsub.s32 0, %v1532
        %v1542 = vsel %vm1540, %v1541, %v1532
        %v1543 = vshrl.u32 %v1542, 3
        %v1544 = vand.u32 %v1542, 7
        %v1545 = vsub.s32 0, %v1544
        %v1546 = vsel %vm1540, %v1545, %v1544
        %vm1547 = vcmp.lt.s32.totalorder %v1533, 0
        %v1548 = vsub.s32 0, %v1533
        %v1549 = vsel %vm1547, %v1548, %v1533
        %v1550 = vshrl.u32 %v1549, 3
        %v1551 = vand.u32 %v1549, 7
        %v1552 = vsub.s32 0, %v1551
        %v1553 = vsel %vm1547, %v1552, %v1551
        %vm1554 = vcmp.lt.s32.totalorder %v1534, 0
        %v1555 = vsub.s32 0, %v1534
        %v1556 = vsel %vm1554, %v1555, %v1534
        %v1557 = vshrl.u32 %v1556, 3
        %v1558 = vand.u32 %v1556, 7
        %v1559 = vsub.s32 0, %v1558
        %v1560 = vsel %vm1554, %v1559, %v1558
        %vm1561 = vcmp.lt.s32.totalorder %v1535, 0
        %v1562 = vsub.s32 0, %v1535
        %v1563 = vsel %vm1561, %v1562, %v1535
        %v1564 = vshrl.u32 %v1563, 3
        %v1565 = vand.u32 %v1563, 7
        %v1566 = vsub.s32 0, %v1565
        %v1567 = vsel %vm1561, %v1566, %v1565
        %vm1568 = vcmp.lt.s32.totalorder %v1536, 0
        %v1569 = vsub.s32 0, %v1536
        %v1570 = vsel %vm1568, %v1569, %v1536
        %v1571 = vshrl.u32 %v1570, 3
        %v1572 = vand.u32 %v1570, 7
        %v1573 = vsub.s32 0, %v1572
        %v1574 = vsel %vm1568, %v1573, %v1572
        %vm1575 = vcmp.lt.s32.totalorder %v1537, 0
        %v1576 = vsub.s32 0, %v1537
        %v1577 = vsel %vm1575, %v1576, %v1537
        %v1578 = vshrl.u32 %v1577, 3
        %v1579 = vand.u32 %v1577, 7
        %v1580 = vsub.s32 0, %v1579
        %v1581 = vsel %vm1575, %v1580, %v1579
        %vm1582 = vcmp.lt.s32.totalorder %v1538, 0
        %v1583 = vsub.s32 0, %v1538
        %v1584 = vsel %vm1582, %v1583, %v1538
        %v1585 = vshrl.u32 %v1584, 3
        %v1586 = vand.u32 %v1584, 7
        %v1587 = vsub.s32 0, %v1586
        %v1588 = vsel %vm1582, %v1587, %v1586
        %vm1589 = vcmp.lt.s32.totalorder %v1539, 0
        %v1590 = vsub.s32 0, %v1539
        %v1591 = vsel %vm1589, %v1590, %v1539
        %v1592 = vshrl.u32 %v1591, 3
        %v1593 = vand.u32 %v1591, 7
        %v1594 = vsub.s32 0, %v1593
        %v1595 = vsel %vm1589, %v1594, %v1593
        %vm1596 = vcmp.ne.s32.totalorder %v1546, 0
        %vm1597 = vcmp.ne.s32.totalorder %v1553, 0
        %vm1598 = vcmp.ne.s32.totalorder %v1560, 0
        %vm1599 = vcmp.ne.s32.totalorder %v1567, 0
        %vm1600 = vcmp.ne.s32.totalorder %v1574, 0
        %vm1601 = vcmp.ne.s32.totalorder %v1581, 0
        %vm1602 = vcmp.ne.s32.totalorder %v1588, 0
        %vm1603 = vcmp.ne.s32.totalorder %v1595, 0
        %vm1604 = vcmp.lt.s32.totalorder %v1546, 0
        %vm1605 = vcmp.lt.s32.totalorder %v1553, 0
        %vm1606 = vcmp.lt.s32.totalorder %v1560, 0
        %vm1607 = vcmp.lt.s32.totalorder %v1567, 0
        %vm1608 = vcmp.lt.s32.totalorder %v1574, 0
        %vm1609 = vcmp.lt.s32.totalorder %v1581, 0
        %vm1610 = vcmp.lt.s32.totalorder %v1588, 0
        %vm1611 = vcmp.lt.s32.totalorder %v1595, 0
        %vm1612 = vmand %vm1604, %vm1596
        %vm1613 = vmand %vm1605, %vm1597
        %vm1614 = vmand %vm1606, %vm1598
        %vm1615 = vmand %vm1607, %vm1599
        %vm1616 = vmand %vm1608, %vm1600
        %vm1617 = vmand %vm1609, %vm1601
        %vm1618 = vmand %vm1610, %vm1602
        %vm1619 = vmand %vm1611, %vm1603
        %v1620 = vadd.s32 %v1546, 8
        %v1621 = vadd.s32 %v1553, 8
        %v1622 = vadd.s32 %v1560, 8
        %v1623 = vadd.s32 %v1567, 8
        %v1624 = vadd.s32 %v1574, 8
        %v1625 = vadd.s32 %v1581, 8
        %v1626 = vadd.s32 %v1588, 8
        %v1627 = vadd.s32 %v1595, 8
        %v1628 = vsel %vm1612, %v1620, %v1546
        %v1629 = vsel %vm1613, %v1621, %v1553
        %v1630 = vsel %vm1614, %v1622, %v1560
        %v1631 = vsel %vm1615, %v1623, %v1567
        %v1632 = vsel %vm1616, %v1624, %v1574
        %v1633 = vsel %vm1617, %v1625, %v1581
        %v1634 = vsel %vm1618, %v1626, %v1588
        %v1635 = vsel %vm1619, %v1627, %v1595
        %v1636 = vrot.slane %v1523, 5
        %v1637 = vrot.slane %v1524, 5
        %v1638 = vrot.slane %v1525, 5
        %v1639 = vrot.slane %v1526, 5
        %v1640 = vrot.slane %v1527, 5
        %v1641 = vrot.slane %v1528, 5
        %v1642 = vrot.slane %v1529, 5
        %v1643 = vrot.slane %v1530, 5
        %vm1644 = vcmp.lt.s32.totalorder %v1532, 3
        %v1645 = vsel %vm1644, %v1643, 0.0
        %v1646 = vsel %vm1644, %v1642, %v1643
        %v1647 = vsel %vm1644, %v1641, %v1642
        %v1648 = vsel %vm1644, %v1640, %v1641
        %v1649 = vsel %vm1644, %v1639, %v1640
        %v1650 = vsel %vm1644, %v1638, %v1639
        %v1651 = vsel %vm1644, %v1637, %v1638
        %v1652 = vsel %vm1644, %v1636, %v1637
        %v1653 = vsel %vm1644, 0.0, %v1636
        %v1654 = vld [vmem:[%s5] sm:$0x1]
        %v1655 = vlaneseq
        %v1656 = vshrl.u32 %v1655, 7
        %v1657 = vsub.s32 0, %v1656
        %v1658 = vrot.slane %v1654, %v1657
        %v1659 = vmul.f32 0.0, %v1658
        %v1660 = vmul.f32 %v1653, %v1658
        %v1661 = vmul.f32 %v1652, %v1658
        %v1662 = vmul.f32 %v1651, %v1658
        %v1663 = vmul.f32 %v1650, %v1658
        %v1664 = vmul.f32 %v1649, %v1658
        %v1665 = vld [vmem:[%s5 + $0x7] sm:$0x1]
        %v1666 = vlaneseq
        %v1667 = vshrl.u32 %v1666, 7
        %v1668 = vsub.s32 0, %v1667
        %v1669 = vrot.slane %v1665, %v1668
        %v1670 = vmul.f32 0.0, %v1669
        %v1671 = vmul.f32 %v1653, %v1669
        %v1672 = vmul.f32 %v1652, %v1669
        %v1673 = vmul.f32 %v1651, %v1669
        %v1674 = vmul.f32 %v1650, %v1669
        %v1675 = vmul.f32 %v1649, %v1669
        %v1676 = vmul.f32 %v1648, %v1669
        %v1677 = vadd.f32 %v1659, %v1670
        %v1678 = vadd.f32 %v1659, %v1671
        %v1679 = vadd.f32 %v1660, %v1672
        %v1680 = vadd.f32 %v1661, %v1673
        %v1681 = vadd.f32 %v1662, %v1674
        %v1682 = vadd.f32 %v1663, %v1675
        %v1683 = vadd.f32 %v1664, %v1676
        %v1684 = vld [vmem:[%s5 + $0xe] sm:$0x1]
        %v1685 = vlaneseq
        %v1686 = vshrl.u32 %v1685, 7
        %v1687 = vsub.s32 0, %v1686
        %v1688 = vrot.slane %v1684, %v1687
        %v1689 = vmul.f32 0.0, %v1688
        %v1690 = vmul.f32 %v1653, %v1688
        %v1691 = vmul.f32 %v1652, %v1688
        %v1692 = vmul.f32 %v1651, %v1688
        %v1693 = vmul.f32 %v1650, %v1688
        %v1694 = vmul.f32 %v1649, %v1688
        %v1695 = vmul.f32 %v1648, %v1688
        %v1696 = vmul.f32 %v1647, %v1688
        %v1697 = vadd.f32 %v1677, %v1689
        %v1698 = vadd.f32 %v1677, %v1690
        %v1699 = vadd.f32 %v1678, %v1691
        %v1700 = vadd.f32 %v1679, %v1692
        %v1701 = vadd.f32 %v1680, %v1693
        %v1702 = vadd.f32 %v1681, %v1694
        %v1703 = vadd.f32 %v1682, %v1695
        %v1704 = vadd.f32 %v1683, %v1696
        %v1705 = vld [vmem:[%s5 + $0x15] sm:$0x1]
        %v1706 = vlaneseq
        %v1707 = vshrl.u32 %v1706, 7
        %v1708 = vsub.s32 0, %v1707
        %v1709 = vrot.slane %v1705, %v1708
        %v1710 = vmul.f32 %v1653, %v1709
        %v1711 = vmul.f32 %v1652, %v1709
        %v1712 = vmul.f32 %v1651, %v1709
        %v1713 = vmul.f32 %v1650, %v1709
        %v1714 = vmul.f32 %v1649, %v1709
        %v1715 = vmul.f32 %v1648, %v1709
        %v1716 = vmul.f32 %v1647, %v1709
        %v1717 = vmul.f32 %v1646, %v1709
        %v1718 = vadd.f32 %v1697, %v1710
        %v1719 = vadd.f32 %v1698, %v1711
        %v1720 = vadd.f32 %v1699, %v1712
        %v1721 = vadd.f32 %v1700, %v1713
        %v1722 = vadd.f32 %v1701, %v1714
        %v1723 = vadd.f32 %v1702, %v1715
        %v1724 = vadd.f32 %v1703, %v1716
        %v1725 = vadd.f32 %v1704, %v1717
        %v1726 = vld [vmem:[%s5 + $0x1c] sm:$0x1]
        %v1727 = vlaneseq
        %v1728 = vshrl.u32 %v1727, 7
        %v1729 = vsub.s32 0, %v1728
        %v1730 = vrot.slane %v1726, %v1729
        %v1731 = vmul.f32 %v1652, %v1730
        %v1732 = vmul.f32 %v1651, %v1730
        %v1733 = vmul.f32 %v1650, %v1730
        %v1734 = vmul.f32 %v1649, %v1730
        %v1735 = vmul.f32 %v1648, %v1730
        %v1736 = vmul.f32 %v1647, %v1730
        %v1737 = vmul.f32 %v1646, %v1730
        %v1738 = vmul.f32 %v1645, %v1730
        %v1739 = vadd.f32 %v1718, %v1731
        %v1740 = vadd.f32 %v1719, %v1732
        %v1741 = vadd.f32 %v1720, %v1733
        %v1742 = vadd.f32 %v1721, %v1734
        %v1743 = vadd.f32 %v1722, %v1735
        %v1744 = vadd.f32 %v1723, %v1736
        %v1745 = vadd.f32 %v1724, %v1737
        %v1746 = vadd.f32 %v1725, %v1738
        %v1747 = vld [vmem:[%s5 + $0x23] sm:$0x1]
        %v1748 = vlaneseq
        %v1749 = vshrl.u32 %v1748, 7
        %v1750 = vsub.s32 0, %v1749
        %v1751 = vrot.slane %v1747, %v1750
        %v1752 = vmul.f32 %v1651, %v1751
        %v1753 = vmul.f32 %v1650, %v1751
        %v1754 = vmul.f32 %v1649, %v1751
        %v1755 = vmul.f32 %v1648, %v1751
        %v1756 = vmul.f32 %v1647, %v1751
        %v1757 = vmul.f32 %v1646, %v1751
        %v1758 = vmul.f32 %v1645, %v1751
        %v1759 = vmul.f32 0.0, %v1751
        %v1760 = vadd.f32 %v1739, %v1752
        %v1761 = vadd.f32 %v1740, %v1753
        %v1762 = vadd.f32 %v1741, %v1754
        %v1763 = vadd.f32 %v1742, %v1755
        %v1764 = vadd.f32 %v1743, %v1756
        %v1765 = vadd.f32 %v1744, %v1757
        %v1766 = vadd.f32 %v1745, %v1758
        %v1767 = vadd.f32 %v1746, %v1759
        %v1768 = vld [vmem:[%s5 + $0x2a] sm:$0x1]
        %v1769 = vlaneseq
        %v1770 = vshrl.u32 %v1769, 7
        %v1771 = vsub.s32 0, %v1770
        %v1772 = vrot.slane %v1768, %v1771
        %v1773 = vmul.f32 %v1650, %v1772
        %v1774 = vmul.f32 %v1649, %v1772
        %v1775 = vmul.f32 %v1648, %v1772
        %v1776 = vmul.f32 %v1647, %v1772
        %v1777 = vmul.f32 %v1646, %v1772
        %v1778 = vmul.f32 %v1645, %v1772
        %v1779 = vmul.f32 0.0, %v1772
        %v1780 = vadd.f32 %v1760, %v1773
        %v1781 = vadd.f32 %v1761, %v1774
        %v1782 = vadd.f32 %v1762, %v1775
        %v1783 = vadd.f32 %v1763, %v1776
        %v1784 = vadd.f32 %v1764, %v1777
        %v1785 = vadd.f32 %v1765, %v1778
        %v1786 = vadd.f32 %v1766, %v1779
        %v1787 = vadd.f32 %v1767, %v1779
        %v1788 = vadd.s32 %v1628, 4294967293
        %v1789 = vadd.s32 %v1629, 4294967293
        %v1790 = vadd.s32 %v1630, 4294967293
        %v1791 = vadd.s32 %v1631, 4294967293
        %v1792 = vadd.s32 %v1632, 4294967293
        %v1793 = vadd.s32 %v1633, 4294967293
        %v1794 = vadd.s32 %v1634, 4294967293
        %v1795 = vadd.s32 %v1635, 4294967293
        %vm1796 = vcmp.ge.s32.totalorder %v1788, 0
        %vm1797 = vcmp.ge.s32.totalorder %v1789, 0
        %vm1798 = vcmp.ge.s32.totalorder %v1790, 0
        %vm1799 = vcmp.ge.s32.totalorder %v1791, 0
        %vm1800 = vcmp.ge.s32.totalorder %v1792, 0
        %vm1801 = vcmp.ge.s32.totalorder %v1793, 0
        %vm1802 = vcmp.ge.s32.totalorder %v1794, 0
        %vm1803 = vcmp.ge.s32.totalorder %v1795, 0
        %vm1804 = vcmp.lt.s32.totalorder %v1788, 8
        %vm1805 = vcmp.lt.s32.totalorder %v1789, 8
        %vm1806 = vcmp.lt.s32.totalorder %v1790, 8
        %vm1807 = vcmp.lt.s32.totalorder %v1791, 8
        %vm1808 = vcmp.lt.s32.totalorder %v1792, 8
        %vm1809 = vcmp.lt.s32.totalorder %v1793, 8
        %vm1810 = vcmp.lt.s32.totalorder %v1794, 8
        %vm1811 = vcmp.lt.s32.totalorder %v1795, 8
        %vm1812 = vmand %vm1796, %vm1804
        %vm1813 = vmand %vm1797, %vm1805
        %vm1814 = vmand %vm1798, %vm1806
        %vm1815 = vmand %vm1799, %vm1807
        %vm1816 = vmand %vm1800, %vm1808
        %vm1817 = vmand %vm1801, %vm1809
        %vm1818 = vmand %vm1802, %vm1810
        %vm1819 = vmand %vm1803, %vm1811
        %v1820 = vsel %vm1812, 1, 0
        %v1821 = vsel %vm1813, 1, 0
        %v1822 = vsel %vm1814, 1, 0
        %v1823 = vsel %vm1815, 1, 0
        %v1824 = vsel %vm1816, 1, 0
        %v1825 = vsel %vm1817, 1, 0
        %v1826 = vsel %vm1818, 1, 0
        %v1827 = vsel %vm1819, 1, 0
        %v1828 = vcvt.s32.f32 %v1820
        %v1829 = vcvt.s32.f32 %v1821
        %v1830 = vcvt.s32.f32 %v1822
        %v1831 = vcvt.s32.f32 %v1823
        %v1832 = vcvt.s32.f32 %v1824
        %v1833 = vcvt.s32.f32 %v1825
        %v1834 = vcvt.s32.f32 %v1826
        %v1835 = vcvt.s32.f32 %v1827
        %v1836 = vmul.f32 %v1780, %v1828
        %v1837 = vmul.f32 %v1781, %v1829
        %v1838 = vmul.f32 %v1782, %v1830
        %v1839 = vmul.f32 %v1783, %v1831
        %v1840 = vmul.f32 %v1784, %v1832
        %v1841 = vmul.f32 %v1785, %v1833
        %v1842 = vmul.f32 %v1786, %v1834
        %v1843 = vmul.f32 %v1787, %v1835
        %v1844 = vrot.slane %v1523, 6
        %v1845 = vrot.slane %v1524, 6
        %v1846 = vrot.slane %v1525, 6
        %v1847 = vrot.slane %v1526, 6
        %v1848 = vrot.slane %v1527, 6
        %v1849 = vrot.slane %v1528, 6
        %v1850 = vrot.slane %v1529, 6
        %v1851 = vrot.slane %v1530, 6
        %vm1852 = vcmp.lt.s32.totalorder %v1532, 2
        %v1853 = vsel %vm1852, %v1851, 0.0
        %v1854 = vsel %vm1852, %v1850, %v1851
        %v1855 = vsel %vm1852, %v1849, %v1850
        %v1856 = vsel %vm1852, %v1848, %v1849
        %v1857 = vsel %vm1852, %v1847, %v1848
        %v1858 = vsel %vm1852, %v1846, %v1847
        %v1859 = vsel %vm1852, %v1845, %v1846
        %v1860 = vsel %vm1852, %v1844, %v1845
        %v1861 = vsel %vm1852, 0.0, %v1844
        %v1862 = vld [vmem:[%s5 + $0x1] sm:$0x1]
        %v1863 = vlaneseq
        %v1864 = vshrl.u32 %v1863, 7
        %v1865 = vsub.s32 0, %v1864
        %v1866 = vrot.slane %v1862, %v1865
        %v1867 = vmul.f32 0.0, %v1866
        %v1868 = vmul.f32 %v1861, %v1866
        %v1869 = vmul.f32 %v1860, %v1866
        %v1870 = vmul.f32 %v1859, %v1866
        %v1871 = vmul.f32 %v1858, %v1866
        %v1872 = vmul.f32 %v1857, %v1866
        %v1873 = vld [vmem:[%s5 + $0x8] sm:$0x1]
        %v1874 = vlaneseq
        %v1875 = vshrl.u32 %v1874, 7
        %v1876 = vsub.s32 0, %v1875
        %v1877 = vrot.slane %v1873, %v1876
        %v1878 = vmul.f32 0.0, %v1877
        %v1879 = vmul.f32 %v1861, %v1877
        %v1880 = vmul.f32 %v1860, %v1877
        %v1881 = vmul.f32 %v1859, %v1877
        %v1882 = vmul.f32 %v1858, %v1877
        %v1883 = vmul.f32 %v1857, %v1877
        %v1884 = vmul.f32 %v1856, %v1877
        %v1885 = vadd.f32 %v1867, %v1878
        %v1886 = vadd.f32 %v1867, %v1879
        %v1887 = vadd.f32 %v1868, %v1880
        %v1888 = vadd.f32 %v1869, %v1881
        %v1889 = vadd.f32 %v1870, %v1882
        %v1890 = vadd.f32 %v1871, %v1883
        %v1891 = vadd.f32 %v1872, %v1884
        %v1892 = vld [vmem:[%s5 + $0xf] sm:$0x1]
        %v1893 = vlaneseq
        %v1894 = vshrl.u32 %v1893, 7
        %v1895 = vsub.s32 0, %v1894
        %v1896 = vrot.slane %v1892, %v1895
        %v1897 = vmul.f32 0.0, %v1896
        %v1898 = vmul.f32 %v1861, %v1896
        %v1899 = vmul.f32 %v1860, %v1896
        %v1900 = vmul.f32 %v1859, %v1896
        %v1901 = vmul.f32 %v1858, %v1896
        %v1902 = vmul.f32 %v1857, %v1896
        %v1903 = vmul.f32 %v1856, %v1896
        %v1904 = vmul.f32 %v1855, %v1896
        %v1905 = vadd.f32 %v1885, %v1897
        %v1906 = vadd.f32 %v1885, %v1898
        %v1907 = vadd.f32 %v1886, %v1899
        %v1908 = vadd.f32 %v1887, %v1900
        %v1909 = vadd.f32 %v1888, %v1901
        %v1910 = vadd.f32 %v1889, %v1902
        %v1911 = vadd.f32 %v1890, %v1903
        %v1912 = vadd.f32 %v1891, %v1904
        %v1913 = vld [vmem:[%s5 + $0x16] sm:$0x1]
        %v1914 = vlaneseq
        %v1915 = vshrl.u32 %v1914, 7
        %v1916 = vsub.s32 0, %v1915
        %v1917 = vrot.slane %v1913, %v1916
        %v1918 = vmul.f32 %v1861, %v1917
        %v1919 = vmul.f32 %v1860, %v1917
        %v1920 = vmul.f32 %v1859, %v1917
        %v1921 = vmul.f32 %v1858, %v1917
        %v1922 = vmul.f32 %v1857, %v1917
        %v1923 = vmul.f32 %v1856, %v1917
        %v1924 = vmul.f32 %v1855, %v1917
        %v1925 = vmul.f32 %v1854, %v1917
        %v1926 = vadd.f32 %v1905, %v1918
        %v1927 = vadd.f32 %v1906, %v1919
        %v1928 = vadd.f32 %v1907, %v1920
        %v1929 = vadd.f32 %v1908, %v1921
        %v1930 = vadd.f32 %v1909, %v1922
        %v1931 = vadd.f32 %v1910, %v1923
        %v1932 = vadd.f32 %v1911, %v1924
        %v1933 = vadd.f32 %v1912, %v1925
        %v1934 = vld [vmem:[%s5 + $0x1d] sm:$0x1]
        %v1935 = vlaneseq
        %v1936 = vshrl.u32 %v1935, 7
        %v1937 = vsub.s32 0, %v1936
        %v1938 = vrot.slane %v1934, %v1937
        %v1939 = vmul.f32 %v1860, %v1938
        %v1940 = vmul.f32 %v1859, %v1938
        %v1941 = vmul.f32 %v1858, %v1938
        %v1942 = vmul.f32 %v1857, %v1938
        %v1943 = vmul.f32 %v1856, %v1938
        %v1944 = vmul.f32 %v1855, %v1938
        %v1945 = vmul.f32 %v1854, %v1938
        %v1946 = vmul.f32 %v1853, %v1938
        %v1947 = vadd.f32 %v1926, %v1939
        %v1948 = vadd.f32 %v1927, %v1940
        %v1949 = vadd.f32 %v1928, %v1941
        %v1950 = vadd.f32 %v1929, %v1942
        %v1951 = vadd.f32 %v1930, %v1943
        %v1952 = vadd.f32 %v1931, %v1944
        %v1953 = vadd.f32 %v1932, %v1945
        %v1954 = vadd.f32 %v1933, %v1946
        %v1955 = vld [vmem:[%s5 + $0x24] sm:$0x1]
        %v1956 = vlaneseq
        %v1957 = vshrl.u32 %v1956, 7
        %v1958 = vsub.s32 0, %v1957
        %v1959 = vrot.slane %v1955, %v1958
        %v1960 = vmul.f32 %v1859, %v1959
        %v1961 = vmul.f32 %v1858, %v1959
        %v1962 = vmul.f32 %v1857, %v1959
        %v1963 = vmul.f32 %v1856, %v1959
        %v1964 = vmul.f32 %v1855, %v1959
        %v1965 = vmul.f32 %v1854, %v1959
        %v1966 = vmul.f32 %v1853, %v1959
        %v1967 = vmul.f32 0.0, %v1959
        %v1968 = vadd.f32 %v1947, %v1960
        %v1969 = vadd.f32 %v1948, %v1961
        %v1970 = vadd.f32 %v1949, %v1962
        %v1971 = vadd.f32 %v1950, %v1963
        %v1972 = vadd.f32 %v1951, %v1964
        %v1973 = vadd.f32 %v1952, %v1965
        %v1974 = vadd.f32 %v1953, %v1966
        %v1975 = vadd.f32 %v1954, %v1967
        %v1976 = vld [vmem:[%s5 + $0x2b] sm:$0x1]
        %v1977 = vlaneseq
        %v1978 = vshrl.u32 %v1977, 7
        %v1979 = vsub.s32 0, %v1978
        %v1980 = vrot.slane %v1976, %v1979
        %v1981 = vmul.f32 %v1858, %v1980
        %v1982 = vmul.f32 %v1857, %v1980
        %v1983 = vmul.f32 %v1856, %v1980
        %v1984 = vmul.f32 %v1855, %v1980
        %v1985 = vmul.f32 %v1854, %v1980
        %v1986 = vmul.f32 %v1853, %v1980
        %v1987 = vmul.f32 0.0, %v1980
        %v1988 = vadd.f32 %v1968, %v1981
        %v1989 = vadd.f32 %v1969, %v1982
        %v1990 = vadd.f32 %v1970, %v1983
        %v1991 = vadd.f32 %v1971, %v1984
        %v1992 = vadd.f32 %v1972, %v1985
        %v1993 = vadd.f32 %v1973, %v1986
        %v1994 = vadd.f32 %v1974, %v1987
        %v1995 = vadd.f32 %v1975, %v1987
        %v1996 = vadd.s32 %v1628, 4294967294
        %v1997 = vadd.s32 %v1629, 4294967294
        %v1998 = vadd.s32 %v1630, 4294967294
        %v1999 = vadd.s32 %v1631, 4294967294
        %v2000 = vadd.s32 %v1632, 4294967294
        %v2001 = vadd.s32 %v1633, 4294967294
        %v2002 = vadd.s32 %v1634, 4294967294
        %v2003 = vadd.s32 %v1635, 4294967294
        %vm2004 = vcmp.ge.s32.totalorder %v1996, 0
        %vm2005 = vcmp.ge.s32.totalorder %v1997, 0
        %vm2006 = vcmp.ge.s32.totalorder %v1998, 0
        %vm2007 = vcmp.ge.s32.totalorder %v1999, 0
        %vm2008 = vcmp.ge.s32.totalorder %v2000, 0
        %vm2009 = vcmp.ge.s32.totalorder %v2001, 0
        %vm2010 = vcmp.ge.s32.totalorder %v2002, 0
        %vm2011 = vcmp.ge.s32.totalorder %v2003, 0
        %vm2012 = vcmp.lt.s32.totalorder %v1996, 8
        %vm2013 = vcmp.lt.s32.totalorder %v1997, 8
        %vm2014 = vcmp.lt.s32.totalorder %v1998, 8
        %vm2015 = vcmp.lt.s32.totalorder %v1999, 8
        %vm2016 = vcmp.lt.s32.totalorder %v2000, 8
        %vm2017 = vcmp.lt.s32.totalorder %v2001, 8
        %vm2018 = vcmp.lt.s32.totalorder %v2002, 8
        %vm2019 = vcmp.lt.s32.totalorder %v2003, 8
        %vm2020 = vmand %vm2004, %vm2012
        %vm2021 = vmand %vm2005, %vm2013
        %vm2022 = vmand %vm2006, %vm2014
        %vm2023 = vmand %vm2007, %vm2015
        %vm2024 = vmand %vm2008, %vm2016
        %vm2025 = vmand %vm2009, %vm2017
        %vm2026 = vmand %vm2010, %vm2018
        %vm2027 = vmand %vm2011, %vm2019
        %v2028 = vsel %vm2020, 1, 0
        %v2029 = vsel %vm2021, 1, 0
        %v2030 = vsel %vm2022, 1, 0
        %v2031 = vsel %vm2023, 1, 0
        %v2032 = vsel %vm2024, 1, 0
        %v2033 = vsel %vm2025, 1, 0
        %v2034 = vsel %vm2026, 1, 0
        %v2035 = vsel %vm2027, 1, 0
        %v2036 = vcvt.s32.f32 %v2028
        %v2037 = vcvt.s32.f32 %v2029
        %v2038 = vcvt.s32.f32 %v2030
        %v2039 = vcvt.s32.f32 %v2031
        %v2040 = vcvt.s32.f32 %v2032
        %v2041 = vcvt.s32.f32 %v2033
        %v2042 = vcvt.s32.f32 %v2034
        %v2043 = vcvt.s32.f32 %v2035
        %v2044 = vmul.f32 %v1988, %v2036
        %v2045 = vmul.f32 %v1989, %v2037
        %v2046 = vmul.f32 %v1990, %v2038
        %v2047 = vmul.f32 %v1991, %v2039
        %v2048 = vmul.f32 %v1992, %v2040
        %v2049 = vmul.f32 %v1993, %v2041
        %v2050 = vmul.f32 %v1994, %v2042
        %v2051 = vmul.f32 %v1995, %v2043
        %v2052 = vrot.slane %v1523, 7
        %v2053 = vrot.slane %v1524, 7
        %v2054 = vrot.slane %v1525, 7
        %v2055 = vrot.slane %v1526, 7
        %v2056 = vrot.slane %v1527, 7
        %v2057 = vrot.slane %v1528, 7
        %v2058 = vrot.slane %v1529, 7
        %v2059 = vrot.slane %v1530, 7
        %vm2060 = vcmp.lt.s32.totalorder %v1532, 1
        %v2061 = vsel %vm2060, %v2059, 0.0
        %v2062 = vsel %vm2060, %v2058, %v2059
        %v2063 = vsel %vm2060, %v2057, %v2058
        %v2064 = vsel %vm2060, %v2056, %v2057
        %v2065 = vsel %vm2060, %v2055, %v2056
        %v2066 = vsel %vm2060, %v2054, %v2055
        %v2067 = vsel %vm2060, %v2053, %v2054
        %v2068 = vsel %vm2060, %v2052, %v2053
        %v2069 = vsel %vm2060, 0.0, %v2052
        %v2070 = vld [vmem:[%s5 + $0x2] sm:$0x1]
        %v2071 = vlaneseq
        %v2072 = vshrl.u32 %v2071, 7
        %v2073 = vsub.s32 0, %v2072
        %v2074 = vrot.slane %v2070, %v2073
        %v2075 = vmul.f32 0.0, %v2074
        %v2076 = vmul.f32 %v2069, %v2074
        %v2077 = vmul.f32 %v2068, %v2074
        %v2078 = vmul.f32 %v2067, %v2074
        %v2079 = vmul.f32 %v2066, %v2074
        %v2080 = vmul.f32 %v2065, %v2074
        %v2081 = vld [vmem:[%s5 + $0x9] sm:$0x1]
        %v2082 = vlaneseq
        %v2083 = vshrl.u32 %v2082, 7
        %v2084 = vsub.s32 0, %v2083
        %v2085 = vrot.slane %v2081, %v2084
        %v2086 = vmul.f32 0.0, %v2085
        %v2087 = vmul.f32 %v2069, %v2085
        %v2088 = vmul.f32 %v2068, %v2085
        %v2089 = vmul.f32 %v2067, %v2085
        %v2090 = vmul.f32 %v2066, %v2085
        %v2091 = vmul.f32 %v2065, %v2085
        %v2092 = vmul.f32 %v2064, %v2085
        %v2093 = vadd.f32 %v2075, %v2086
        %v2094 = vadd.f32 %v2075, %v2087
        %v2095 = vadd.f32 %v2076, %v2088
        %v2096 = vadd.f32 %v2077, %v2089
        %v2097 = vadd.f32 %v2078, %v2090
        %v2098 = vadd.f32 %v2079, %v2091
        %v2099 = vadd.f32 %v2080, %v2092
        %v2100 = vld [vmem:[%s5 + $0x10] sm:$0x1]
        %v2101 = vlaneseq
        %v2102 = vshrl.u32 %v2101, 7
        %v2103 = vsub.s32 0, %v2102
        %v2104 = vrot.slane %v2100, %v2103
        %v2105 = vmul.f32 0.0, %v2104
        %v2106 = vmul.f32 %v2069, %v2104
        %v2107 = vmul.f32 %v2068, %v2104
        %v2108 = vmul.f32 %v2067, %v2104
        %v2109 = vmul.f32 %v2066, %v2104
        %v2110 = vmul.f32 %v2065, %v2104
        %v2111 = vmul.f32 %v2064, %v2104
        %v2112 = vmul.f32 %v2063, %v2104
        %v2113 = vadd.f32 %v2093, %v2105
        %v2114 = vadd.f32 %v2093, %v2106
        %v2115 = vadd.f32 %v2094, %v2107
        %v2116 = vadd.f32 %v2095, %v2108
        %v2117 = vadd.f32 %v2096, %v2109
        %v2118 = vadd.f32 %v2097, %v2110
        %v2119 = vadd.f32 %v2098, %v2111
        %v2120 = vadd.f32 %v2099, %v2112
        %v2121 = vld [vmem:[%s5 + $0x17] sm:$0x1]
        %v2122 = vlaneseq
        %v2123 = vshrl.u32 %v2122, 7
        %v2124 = vsub.s32 0, %v2123
        %v2125 = vrot.slane %v2121, %v2124
        %v2126 = vmul.f32 %v2069, %v2125
        %v2127 = vmul.f32 %v2068, %v2125
        %v2128 = vmul.f32 %v2067, %v2125
        %v2129 = vmul.f32 %v2066, %v2125
        %v2130 = vmul.f32 %v2065, %v2125
        %v2131 = vmul.f32 %v2064, %v2125
        %v2132 = vmul.f32 %v2063, %v2125
        %v2133 = vmul.f32 %v2062, %v2125
        %v2134 = vadd.f32 %v2113, %v2126
        %v2135 = vadd.f32 %v2114, %v2127
        %v2136 = vadd.f32 %v2115, %v2128
        %v2137 = vadd.f32 %v2116, %v2129
        %v2138 = vadd.f32 %v2117, %v2130
        %v2139 = vadd.f32 %v2118, %v2131
        %v2140 = vadd.f32 %v2119, %v2132
        %v2141 = vadd.f32 %v2120, %v2133
        %v2142 = vld [vmem:[%s5 + $0x1e] sm:$0x1]
        %v2143 = vlaneseq
        %v2144 = vshrl.u32 %v2143, 7
        %v2145 = vsub.s32 0, %v2144
        %v2146 = vrot.slane %v2142, %v2145
        %v2147 = vmul.f32 %v2068, %v2146
        %v2148 = vmul.f32 %v2067, %v2146
        %v2149 = vmul.f32 %v2066, %v2146
        %v2150 = vmul.f32 %v2065, %v2146
        %v2151 = vmul.f32 %v2064, %v2146
        %v2152 = vmul.f32 %v2063, %v2146
        %v2153 = vmul.f32 %v2062, %v2146
        %v2154 = vmul.f32 %v2061, %v2146
        %v2155 = vadd.f32 %v2134, %v2147
        %v2156 = vadd.f32 %v2135, %v2148
        %v2157 = vadd.f32 %v2136, %v2149
        %v2158 = vadd.f32 %v2137, %v2150
        %v2159 = vadd.f32 %v2138, %v2151
        %v2160 = vadd.f32 %v2139, %v2152
        %v2161 = vadd.f32 %v2140, %v2153
        %v2162 = vadd.f32 %v2141, %v2154
        %v2163 = vld [vmem:[%s5 + $0x25] sm:$0x1]
        %v2164 = vlaneseq
        %v2165 = vshrl.u32 %v2164, 7
        %v2166 = vsub.s32 0, %v2165
        %v2167 = vrot.slane %v2163, %v2166
        %v2168 = vmul.f32 %v2067, %v2167
        %v2169 = vmul.f32 %v2066, %v2167
        %v2170 = vmul.f32 %v2065, %v2167
        %v2171 = vmul.f32 %v2064, %v2167
        %v2172 = vmul.f32 %v2063, %v2167
        %v2173 = vmul.f32 %v2062, %v2167
        %v2174 = vmul.f32 %v2061, %v2167
        %v2175 = vmul.f32 0.0, %v2167
        %v2176 = vadd.f32 %v2155, %v2168
        %v2177 = vadd.f32 %v2156, %v2169
        %v2178 = vadd.f32 %v2157, %v2170
        %v2179 = vadd.f32 %v2158, %v2171
        %v2180 = vadd.f32 %v2159, %v2172
        %v2181 = vadd.f32 %v2160, %v2173
        %v2182 = vadd.f32 %v2161, %v2174
        %v2183 = vadd.f32 %v2162, %v2175
        %v2184 = vld [vmem:[%s5 + $0x2c] sm:$0x1]
        %v2185 = vlaneseq
        %v2186 = vshrl.u32 %v2185, 7
        %v2187 = vsub.s32 0, %v2186
        %v2188 = vrot.slane %v2184, %v2187
        %v2189 = vmul.f32 %v2066, %v2188
        %v2190 = vmul.f32 %v2065, %v2188
        %v2191 = vmul.f32 %v2064, %v2188
        %v2192 = vmul.f32 %v2063, %v2188
        %v2193 = vmul.f32 %v2062, %v2188
        %v2194 = vmul.f32 %v2061, %v2188
        %v2195 = vmul.f32 0.0, %v2188
        %v2196 = vadd.f32 %v2176, %v2189
        %v2197 = vadd.f32 %v2177, %v2190
        %v2198 = vadd.f32 %v2178, %v2191
        %v2199 = vadd.f32 %v2179, %v2192
        %v2200 = vadd.f32 %v2180, %v2193
        %v2201 = vadd.f32 %v2181, %v2194
        %v2202 = vadd.f32 %v2182, %v2195
        %v2203 = vadd.f32 %v2183, %v2195
        %v2204 = vadd.s32 %v1628, 4294967295
        %v2205 = vadd.s32 %v1629, 4294967295
        %v2206 = vadd.s32 %v1630, 4294967295
        %v2207 = vadd.s32 %v1631, 4294967295
        %v2208 = vadd.s32 %v1632, 4294967295
        %v2209 = vadd.s32 %v1633, 4294967295
        %v2210 = vadd.s32 %v1634, 4294967295
        %v2211 = vadd.s32 %v1635, 4294967295
        %vm2212 = vcmp.ge.s32.totalorder %v2204, 0
        %vm2213 = vcmp.ge.s32.totalorder %v2205, 0
        %vm2214 = vcmp.ge.s32.totalorder %v2206, 0
        %vm2215 = vcmp.ge.s32.totalorder %v2207, 0
        %vm2216 = vcmp.ge.s32.totalorder %v2208, 0
        %vm2217 = vcmp.ge.s32.totalorder %v2209, 0
        %vm2218 = vcmp.ge.s32.totalorder %v2210, 0
        %vm2219 = vcmp.ge.s32.totalorder %v2211, 0
        %vm2220 = vcmp.lt.s32.totalorder %v2204, 8
        %vm2221 = vcmp.lt.s32.totalorder %v2205, 8
        %vm2222 = vcmp.lt.s32.totalorder %v2206, 8
        %vm2223 = vcmp.lt.s32.totalorder %v2207, 8
        %vm2224 = vcmp.lt.s32.totalorder %v2208, 8
        %vm2225 = vcmp.lt.s32.totalorder %v2209, 8
        %vm2226 = vcmp.lt.s32.totalorder %v2210, 8
        %vm2227 = vcmp.lt.s32.totalorder %v2211, 8
        %vm2228 = vmand %vm2212, %vm2220
        %vm2229 = vmand %vm2213, %vm2221
        %vm2230 = vmand %vm2214, %vm2222
        %vm2231 = vmand %vm2215, %vm2223
        %vm2232 = vmand %vm2216, %vm2224
        %vm2233 = vmand %vm2217, %vm2225
        %vm2234 = vmand %vm2218, %vm2226
        %vm2235 = vmand %vm2219, %vm2227
        %v2236 = vsel %vm2228, 1, 0
        %v2237 = vsel %vm2229, 1, 0
        %v2238 = vsel %vm2230, 1, 0
        %v2239 = vsel %vm2231, 1, 0
        %v2240 = vsel %vm2232, 1, 0
        %v2241 = vsel %vm2233, 1, 0
        %v2242 = vsel %vm2234, 1, 0
        %v2243 = vsel %vm2235, 1, 0
        %v2244 = vcvt.s32.f32 %v2236
        %v2245 = vcvt.s32.f32 %v2237
        %v2246 = vcvt.s32.f32 %v2238
        %v2247 = vcvt.s32.f32 %v2239
        %v2248 = vcvt.s32.f32 %v2240
        %v2249 = vcvt.s32.f32 %v2241
        %v2250 = vcvt.s32.f32 %v2242
        %v2251 = vcvt.s32.f32 %v2243
        %v2252 = vmul.f32 %v2196, %v2244
        %v2253 = vmul.f32 %v2197, %v2245
        %v2254 = vmul.f32 %v2198, %v2246
        %v2255 = vmul.f32 %v2199, %v2247
        %v2256 = vmul.f32 %v2200, %v2248
        %v2257 = vmul.f32 %v2201, %v2249
        %v2258 = vmul.f32 %v2202, %v2250
        %v2259 = vmul.f32 %v2203, %v2251
        %v2260 = vadd.f32 %v1836, %v2252
        %v2261 = vadd.f32 %v1837, %v2253
        %v2262 = vadd.f32 %v1838, %v2254
        %v2263 = vadd.f32 %v1839, %v2255
        %v2264 = vadd.f32 %v1840, %v2256
        %v2265 = vadd.f32 %v1841, %v2257
        %v2266 = vadd.f32 %v1842, %v2258
        %v2267 = vadd.f32 %v1843, %v2259
        %v2268 = vld [vmem:[%s5 + $0x3] sm:$0x1]
        %v2269 = vlaneseq
        %v2270 = vshrl.u32 %v2269, 7
        %v2271 = vsub.s32 0, %v2270
        %v2272 = vrot.slane %v2268, %v2271
        %v2273 = vmul.f32 %v2272, 0.0
        %v2274 = vmul.f32 %v1523, %v2272
        %v2275 = vmul.f32 %v1524, %v2272
        %v2276 = vmul.f32 %v1525, %v2272
        %v2277 = vmul.f32 %v1526, %v2272
        %v2278 = vmul.f32 %v1527, %v2272
        %v2279 = vld [vmem:[%s5 + $0xa] sm:$0x1]
        %v2280 = vlaneseq
        %v2281 = vshrl.u32 %v2280, 7
        %v2282 = vsub.s32 0, %v2281
        %v2283 = vrot.slane %v2279, %v2282
        %v2284 = vmul.f32 %v2283, 0.0
        %v2285 = vmul.f32 %v1523, %v2283
        %v2286 = vmul.f32 %v1524, %v2283
        %v2287 = vmul.f32 %v1525, %v2283
        %v2288 = vmul.f32 %v1526, %v2283
        %v2289 = vmul.f32 %v1527, %v2283
        %v2290 = vmul.f32 %v1528, %v2283
        %v2291 = vadd.f32 %v2273, %v2284
        %v2292 = vadd.f32 %v2273, %v2285
        %v2293 = vadd.f32 %v2274, %v2286
        %v2294 = vadd.f32 %v2275, %v2287
        %v2295 = vadd.f32 %v2276, %v2288
        %v2296 = vadd.f32 %v2277, %v2289
        %v2297 = vadd.f32 %v2278, %v2290
        %v2298 = vld [vmem:[%s5 + $0x11] sm:$0x1]
        %v2299 = vlaneseq
        %v2300 = vshrl.u32 %v2299, 7
        %v2301 = vsub.s32 0, %v2300
        %v2302 = vrot.slane %v2298, %v2301
        %v2303 = vmul.f32 %v2302, 0.0
        %v2304 = vmul.f32 %v1523, %v2302
        %v2305 = vmul.f32 %v1524, %v2302
        %v2306 = vmul.f32 %v1525, %v2302
        %v2307 = vmul.f32 %v1526, %v2302
        %v2308 = vmul.f32 %v1527, %v2302
        %v2309 = vmul.f32 %v1528, %v2302
        %v2310 = vmul.f32 %v1529, %v2302
        %v2311 = vadd.f32 %v2291, %v2303
        %v2312 = vadd.f32 %v2291, %v2304
        %v2313 = vadd.f32 %v2292, %v2305
        %v2314 = vadd.f32 %v2293, %v2306
        %v2315 = vadd.f32 %v2294, %v2307
        %v2316 = vadd.f32 %v2295, %v2308
        %v2317 = vadd.f32 %v2296, %v2309
        %v2318 = vadd.f32 %v2297, %v2310
        %v2319 = vld [vmem:[%s5 + $0x18] sm:$0x1]
        %v2320 = vlaneseq
        %v2321 = vshrl.u32 %v2320, 7
        %v2322 = vsub.s32 0, %v2321
        %v2323 = vrot.slane %v2319, %v2322
        %v2324 = vmul.f32 %v1523, %v2323
        %v2325 = vmul.f32 %v1524, %v2323
        %v2326 = vmul.f32 %v1525, %v2323
        %v2327 = vmul.f32 %v1526, %v2323
        %v2328 = vmul.f32 %v1527, %v2323
        %v2329 = vmul.f32 %v1528, %v2323
        %v2330 = vmul.f32 %v1529, %v2323
        %v2331 = vmul.f32 %v1530, %v2323
        %v2332 = vadd.f32 %v2311, %v2324
        %v2333 = vadd.f32 %v2312, %v2325
        %v2334 = vadd.f32 %v2313, %v2326
        %v2335 = vadd.f32 %v2314, %v2327
        %v2336 = vadd.f32 %v2315, %v2328
        %v2337 = vadd.f32 %v2316, %v2329
        %v2338 = vadd.f32 %v2317, %v2330
        %v2339 = vadd.f32 %v2318, %v2331
        %v2340 = vld [vmem:[%s5 + $0x1f] sm:$0x1]
        %v2341 = vlaneseq
        %v2342 = vshrl.u32 %v2341, 7
        %v2343 = vsub.s32 0, %v2342
        %v2344 = vrot.slane %v2340, %v2343
        %v2345 = vmul.f32 %v1524, %v2344
        %v2346 = vmul.f32 %v1525, %v2344
        %v2347 = vmul.f32 %v1526, %v2344
        %v2348 = vmul.f32 %v1527, %v2344
        %v2349 = vmul.f32 %v1528, %v2344
        %v2350 = vmul.f32 %v1529, %v2344
        %v2351 = vmul.f32 %v1530, %v2344
        %v2352 = vmul.f32 %v2344, 0.0
        %v2353 = vadd.f32 %v2332, %v2345
        %v2354 = vadd.f32 %v2333, %v2346
        %v2355 = vadd.f32 %v2334, %v2347
        %v2356 = vadd.f32 %v2335, %v2348
        %v2357 = vadd.f32 %v2336, %v2349
        %v2358 = vadd.f32 %v2337, %v2350
        %v2359 = vadd.f32 %v2338, %v2351
        %v2360 = vadd.f32 %v2339, %v2352
        %v2361 = vld [vmem:[%s5 + $0x26] sm:$0x1]
        %v2362 = vlaneseq
        %v2363 = vshrl.u32 %v2362, 7
        %v2364 = vsub.s32 0, %v2363
        %v2365 = vrot.slane %v2361, %v2364
        %v2366 = vmul.f32 %v1525, %v2365
        %v2367 = vmul.f32 %v1526, %v2365
        %v2368 = vmul.f32 %v1527, %v2365
        %v2369 = vmul.f32 %v1528, %v2365
        %v2370 = vmul.f32 %v1529, %v2365
        %v2371 = vmul.f32 %v1530, %v2365
        %v2372 = vmul.f32 %v2365, 0.0
        %v2373 = vadd.f32 %v2353, %v2366
        %v2374 = vadd.f32 %v2354, %v2367
        %v2375 = vadd.f32 %v2355, %v2368
        %v2376 = vadd.f32 %v2356, %v2369
        %v2377 = vadd.f32 %v2357, %v2370
        %v2378 = vadd.f32 %v2358, %v2371
        %v2379 = vadd.f32 %v2359, %v2372
        %v2380 = vadd.f32 %v2360, %v2372
        %v2381 = vld [vmem:[%s5 + $0x2d] sm:$0x1]
        %v2382 = vlaneseq
        %v2383 = vshrl.u32 %v2382, 7
        %v2384 = vsub.s32 0, %v2383
        %v2385 = vrot.slane %v2381, %v2384
        %v2386 = vmul.f32 %v1526, %v2385
        %v2387 = vmul.f32 %v1527, %v2385
        %v2388 = vmul.f32 %v1528, %v2385
        %v2389 = vmul.f32 %v1529, %v2385
        %v2390 = vmul.f32 %v1530, %v2385
        %v2391 = vmul.f32 %v2385, 0.0
        %v2392 = vadd.f32 %v2373, %v2386
        %v2393 = vadd.f32 %v2374, %v2387
        %v2394 = vadd.f32 %v2375, %v2388
        %v2395 = vadd.f32 %v2376, %v2389
        %v2396 = vadd.f32 %v2377, %v2390
        %v2397 = vadd.f32 %v2378, %v2391
        %v2398 = vadd.f32 %v2379, %v2391
        %v2399 = vadd.f32 %v2380, %v2391
        %v2400 = vadd.f32 %v2044, %v2392
        %v2401 = vadd.f32 %v2045, %v2393
        %v2402 = vadd.f32 %v2046, %v2394
        %v2403 = vadd.f32 %v2047, %v2395
        %v2404 = vadd.f32 %v2048, %v2396
        %v2405 = vadd.f32 %v2049, %v2397
        %v2406 = vadd.f32 %v2050, %v2398
        %v2407 = vadd.f32 %v2051, %v2399
        %v2408 = vrot.slane %v1523, 1
        %v2409 = vrot.slane %v1524, 1
        %v2410 = vrot.slane %v1525, 1
        %v2411 = vrot.slane %v1526, 1
        %v2412 = vrot.slane %v1527, 1
        %v2413 = vrot.slane %v1528, 1
        %v2414 = vrot.slane %v1529, 1
        %v2415 = vrot.slane %v1530, 1
        %vm2416 = vcmp.lt.s32.totalorder %v1532, 7
        %v2417 = vsel %vm2416, %v2415, 0.0
        %v2418 = vsel %vm2416, %v2414, %v2415
        %v2419 = vsel %vm2416, %v2413, %v2414
        %v2420 = vsel %vm2416, %v2412, %v2413
        %v2421 = vsel %vm2416, %v2411, %v2412
        %v2422 = vsel %vm2416, %v2410, %v2411
        %v2423 = vsel %vm2416, %v2409, %v2410
        %v2424 = vsel %vm2416, %v2408, %v2409
        %v2425 = vsel %vm2416, 0.0, %v2408
        %v2426 = vld [vmem:[%s5 + $0x4] sm:$0x1]
        %v2427 = vlaneseq
        %v2428 = vshrl.u32 %v2427, 7
        %v2429 = vsub.s32 0, %v2428
        %v2430 = vrot.slane %v2426, %v2429
        %v2431 = vmul.f32 0.0, %v2430
        %v2432 = vmul.f32 %v2425, %v2430
        %v2433 = vmul.f32 %v2424, %v2430
        %v2434 = vmul.f32 %v2423, %v2430
        %v2435 = vmul.f32 %v2422, %v2430
        %v2436 = vmul.f32 %v2421, %v2430
        %v2437 = vmul.f32 %v2420, %v2430
        %v2438 = vld [vmem:[%s5 + $0xb] sm:$0x1]
        %v2439 = vlaneseq
        %v2440 = vshrl.u32 %v2439, 7
        %v2441 = vsub.s32 0, %v2440
        %v2442 = vrot.slane %v2438, %v2441
        %v2443 = vmul.f32 0.0, %v2442
        %v2444 = vmul.f32 %v2425, %v2442
        %v2445 = vmul.f32 %v2424, %v2442
        %v2446 = vmul.f32 %v2423, %v2442
        %v2447 = vmul.f32 %v2422, %v2442
        %v2448 = vmul.f32 %v2421, %v2442
        %v2449 = vmul.f32 %v2420, %v2442
        %v2450 = vmul.f32 %v2419, %v2442
        %v2451 = vadd.f32 %v2431, %v2443
        %v2452 = vadd.f32 %v2431, %v2444
        %v2453 = vadd.f32 %v2432, %v2445
        %v2454 = vadd.f32 %v2433, %v2446
        %v2455 = vadd.f32 %v2434, %v2447
        %v2456 = vadd.f32 %v2435, %v2448
        %v2457 = vadd.f32 %v2436, %v2449
        %v2458 = vadd.f32 %v2437, %v2450
        %v2459 = vld [vmem:[%s5 + $0x12] sm:$0x1]
        %v2460 = vlaneseq
        %v2461 = vshrl.u32 %v2460, 7
        %v2462 = vsub.s32 0, %v2461
        %v2463 = vrot.slane %v2459, %v2462
        %v2464 = vmul.f32 %v2425, %v2463
        %v2465 = vmul.f32 %v2424, %v2463
        %v2466 = vmul.f32 %v2423, %v2463
        %v2467 = vmul.f32 %v2422, %v2463
        %v2468 = vmul.f32 %v2421, %v2463
        %v2469 = vmul.f32 %v2420, %v2463
        %v2470 = vmul.f32 %v2419, %v2463
        %v2471 = vmul.f32 %v2418, %v2463
        %v2472 = vadd.f32 %v2451, %v2464
        %v2473 = vadd.f32 %v2452, %v2465
        %v2474 = vadd.f32 %v2453, %v2466
        %v2475 = vadd.f32 %v2454, %v2467
        %v2476 = vadd.f32 %v2455, %v2468
        %v2477 = vadd.f32 %v2456, %v2469
        %v2478 = vadd.f32 %v2457, %v2470
        %v2479 = vadd.f32 %v2458, %v2471
        %v2480 = vld [vmem:[%s5 + $0x19] sm:$0x1]
        %v2481 = vlaneseq
        %v2482 = vshrl.u32 %v2481, 7
        %v2483 = vsub.s32 0, %v2482
        %v2484 = vrot.slane %v2480, %v2483
        %v2485 = vmul.f32 %v2424, %v2484
        %v2486 = vmul.f32 %v2423, %v2484
        %v2487 = vmul.f32 %v2422, %v2484
        %v2488 = vmul.f32 %v2421, %v2484
        %v2489 = vmul.f32 %v2420, %v2484
        %v2490 = vmul.f32 %v2419, %v2484
        %v2491 = vmul.f32 %v2418, %v2484
        %v2492 = vmul.f32 %v2417, %v2484
        %v2493 = vadd.f32 %v2472, %v2485
        %v2494 = vadd.f32 %v2473, %v2486
        %v2495 = vadd.f32 %v2474, %v2487
        %v2496 = vadd.f32 %v2475, %v2488
        %v2497 = vadd.f32 %v2476, %v2489
        %v2498 = vadd.f32 %v2477, %v2490
        %v2499 = vadd.f32 %v2478, %v2491
        %v2500 = vadd.f32 %v2479, %v2492
        %v2501 = vld [vmem:[%s5 + $0x20] sm:$0x1]
        %v2502 = vlaneseq
        %v2503 = vshrl.u32 %v2502, 7
        %v2504 = vsub.s32 0, %v2503
        %v2505 = vrot.slane %v2501, %v2504
        %v2506 = vmul.f32 %v2423, %v2505
        %v2507 = vmul.f32 %v2422, %v2505
        %v2508 = vmul.f32 %v2421, %v2505
        %v2509 = vmul.f32 %v2420, %v2505
        %v2510 = vmul.f32 %v2419, %v2505
        %v2511 = vmul.f32 %v2418, %v2505
        %v2512 = vmul.f32 %v2417, %v2505
        %v2513 = vmul.f32 0.0, %v2505
        %v2514 = vadd.f32 %v2493, %v2506
        %v2515 = vadd.f32 %v2494, %v2507
        %v2516 = vadd.f32 %v2495, %v2508
        %v2517 = vadd.f32 %v2496, %v2509
        %v2518 = vadd.f32 %v2497, %v2510
        %v2519 = vadd.f32 %v2498, %v2511
        %v2520 = vadd.f32 %v2499, %v2512
        %v2521 = vadd.f32 %v2500, %v2513
        %v2522 = vld [vmem:[%s5 + $0x27] sm:$0x1]
        %v2523 = vlaneseq
        %v2524 = vshrl.u32 %v2523, 7
        %v2525 = vsub.s32 0, %v2524
        %v2526 = vrot.slane %v2522, %v2525
        %v2527 = vmul.f32 %v2422, %v2526
        %v2528 = vmul.f32 %v2421, %v2526
        %v2529 = vmul.f32 %v2420, %v2526
        %v2530 = vmul.f32 %v2419, %v2526
        %v2531 = vmul.f32 %v2418, %v2526
        %v2532 = vmul.f32 %v2417, %v2526
        %v2533 = vmul.f32 0.0, %v2526
        %v2534 = vadd.f32 %v2514, %v2527
        %v2535 = vadd.f32 %v2515, %v2528
        %v2536 = vadd.f32 %v2516, %v2529
        %v2537 = vadd.f32 %v2517, %v2530
        %v2538 = vadd.f32 %v2518, %v2531
        %v2539 = vadd.f32 %v2519, %v2532
        %v2540 = vadd.f32 %v2520, %v2533
        %v2541 = vadd.f32 %v2521, %v2533
        %v2542 = vld [vmem:[%s5 + $0x2e] sm:$0x1]
        %v2543 = vlaneseq
        %v2544 = vshrl.u32 %v2543, 7
        %v2545 = vsub.s32 0, %v2544
        %v2546 = vrot.slane %v2542, %v2545
        %v2547 = vmul.f32 %v2421, %v2546
        %v2548 = vmul.f32 %v2420, %v2546
        %v2549 = vmul.f32 %v2419, %v2546
        %v2550 = vmul.f32 %v2418, %v2546
        %v2551 = vmul.f32 %v2417, %v2546
        %v2552 = vmul.f32 0.0, %v2546
        %v2553 = vadd.f32 %v2534, %v2547
        %v2554 = vadd.f32 %v2535, %v2548
        %v2555 = vadd.f32 %v2536, %v2549
        %v2556 = vadd.f32 %v2537, %v2550
        %v2557 = vadd.f32 %v2538, %v2551
        %v2558 = vadd.f32 %v2539, %v2552
        %v2559 = vadd.f32 %v2540, %v2552
        %v2560 = vadd.f32 %v2541, %v2552
        %v2561 = vadd.s32 %v1628, 1
        %v2562 = vadd.s32 %v1629, 1
        %v2563 = vadd.s32 %v1630, 1
        %v2564 = vadd.s32 %v1631, 1
        %v2565 = vadd.s32 %v1632, 1
        %v2566 = vadd.s32 %v1633, 1
        %v2567 = vadd.s32 %v1634, 1
        %v2568 = vadd.s32 %v1635, 1
        %vm2569 = vcmp.ge.s32.totalorder %v2561, 0
        %vm2570 = vcmp.ge.s32.totalorder %v2562, 0
        %vm2571 = vcmp.ge.s32.totalorder %v2563, 0
        %vm2572 = vcmp.ge.s32.totalorder %v2564, 0
        %vm2573 = vcmp.ge.s32.totalorder %v2565, 0
        %vm2574 = vcmp.ge.s32.totalorder %v2566, 0
        %vm2575 = vcmp.ge.s32.totalorder %v2567, 0
        %vm2576 = vcmp.ge.s32.totalorder %v2568, 0
        %vm2577 = vcmp.lt.s32.totalorder %v2561, 8
        %vm2578 = vcmp.lt.s32.totalorder %v2562, 8
        %vm2579 = vcmp.lt.s32.totalorder %v2563, 8
        %vm2580 = vcmp.lt.s32.totalorder %v2564, 8
        %vm2581 = vcmp.lt.s32.totalorder %v2565, 8
        %vm2582 = vcmp.lt.s32.totalorder %v2566, 8
        %vm2583 = vcmp.lt.s32.totalorder %v2567, 8
        %vm2584 = vcmp.lt.s32.totalorder %v2568, 8
        %vm2585 = vmand %vm2569, %vm2577
        %vm2586 = vmand %vm2570, %vm2578
        %vm2587 = vmand %vm2571, %vm2579
        %vm2588 = vmand %vm2572, %vm2580
        %vm2589 = vmand %vm2573, %vm2581
        %vm2590 = vmand %vm2574, %vm2582
        %vm2591 = vmand %vm2575, %vm2583
        %vm2592 = vmand %vm2576, %vm2584
        %v2593 = vsel %vm2585, 1, 0
        %v2594 = vsel %vm2586, 1, 0
        %v2595 = vsel %vm2587, 1, 0
        %v2596 = vsel %vm2588, 1, 0
        %v2597 = vsel %vm2589, 1, 0
        %v2598 = vsel %vm2590, 1, 0
        %v2599 = vsel %vm2591, 1, 0
        %v2600 = vsel %vm2592, 1, 0
        %v2601 = vcvt.s32.f32 %v2593
        %v2602 = vcvt.s32.f32 %v2594
        %v2603 = vcvt.s32.f32 %v2595
        %v2604 = vcvt.s32.f32 %v2596
        %v2605 = vcvt.s32.f32 %v2597
        %v2606 = vcvt.s32.f32 %v2598
        %v2607 = vcvt.s32.f32 %v2599
        %v2608 = vcvt.s32.f32 %v2600
        %v2609 = vmul.f32 %v2553, %v2601
        %v2610 = vmul.f32 %v2554, %v2602
        %v2611 = vmul.f32 %v2555, %v2603
        %v2612 = vmul.f32 %v2556, %v2604
        %v2613 = vmul.f32 %v2557, %v2605
        %v2614 = vmul.f32 %v2558, %v2606
        %v2615 = vmul.f32 %v2559, %v2607
        %v2616 = vmul.f32 %v2560, %v2608
        %v2617 = vadd.f32 %v2260, %v2609
        %v2618 = vadd.f32 %v2261, %v2610
        %v2619 = vadd.f32 %v2262, %v2611
        %v2620 = vadd.f32 %v2263, %v2612
        %v2621 = vadd.f32 %v2264, %v2613
        %v2622 = vadd.f32 %v2265, %v2614
        %v2623 = vadd.f32 %v2266, %v2615
        %v2624 = vadd.f32 %v2267, %v2616
        %v2625 = vrot.slane %v1523, 2
        %v2626 = vrot.slane %v1524, 2
        %v2627 = vrot.slane %v1525, 2
        %v2628 = vrot.slane %v1526, 2
        %v2629 = vrot.slane %v1527, 2
        %v2630 = vrot.slane %v1528, 2
        %v2631 = vrot.slane %v1529, 2
        %v2632 = vrot.slane %v1530, 2
        %vm2633 = vcmp.lt.s32.totalorder %v1532, 6
        %v2634 = vsel %vm2633, %v2632, 0.0
        %v2635 = vsel %vm2633, %v2631, %v2632
        %v2636 = vsel %vm2633, %v2630, %v2631
        %v2637 = vsel %vm2633, %v2629, %v2630
        %v2638 = vsel %vm2633, %v2628, %v2629
        %v2639 = vsel %vm2633, %v2627, %v2628
        %v2640 = vsel %vm2633, %v2626, %v2627
        %v2641 = vsel %vm2633, %v2625, %v2626
        %v2642 = vsel %vm2633, 0.0, %v2625
        %v2643 = vld [vmem:[%s5 + $0x5] sm:$0x1]
        %v2644 = vlaneseq
        %v2645 = vshrl.u32 %v2644, 7
        %v2646 = vsub.s32 0, %v2645
        %v2647 = vrot.slane %v2643, %v2646
        %v2648 = vmul.f32 0.0, %v2647
        %v2649 = vmul.f32 %v2642, %v2647
        %v2650 = vmul.f32 %v2641, %v2647
        %v2651 = vmul.f32 %v2640, %v2647
        %v2652 = vmul.f32 %v2639, %v2647
        %v2653 = vmul.f32 %v2638, %v2647
        %v2654 = vmul.f32 %v2637, %v2647
        %v2655 = vld [vmem:[%s5 + $0xc] sm:$0x1]
        %v2656 = vlaneseq
        %v2657 = vshrl.u32 %v2656, 7
        %v2658 = vsub.s32 0, %v2657
        %v2659 = vrot.slane %v2655, %v2658
        %v2660 = vmul.f32 0.0, %v2659
        %v2661 = vmul.f32 %v2642, %v2659
        %v2662 = vmul.f32 %v2641, %v2659
        %v2663 = vmul.f32 %v2640, %v2659
        %v2664 = vmul.f32 %v2639, %v2659
        %v2665 = vmul.f32 %v2638, %v2659
        %v2666 = vmul.f32 %v2637, %v2659
        %v2667 = vmul.f32 %v2636, %v2659
        %v2668 = vadd.f32 %v2648, %v2660
        %v2669 = vadd.f32 %v2648, %v2661
        %v2670 = vadd.f32 %v2649, %v2662
        %v2671 = vadd.f32 %v2650, %v2663
        %v2672 = vadd.f32 %v2651, %v2664
        %v2673 = vadd.f32 %v2652, %v2665
        %v2674 = vadd.f32 %v2653, %v2666
        %v2675 = vadd.f32 %v2654, %v2667
        %v2676 = vld [vmem:[%s5 + $0x13] sm:$0x1]
        %v2677 = vlaneseq
        %v2678 = vshrl.u32 %v2677, 7
        %v2679 = vsub.s32 0, %v2678
        %v2680 = vrot.slane %v2676, %v2679
        %v2681 = vmul.f32 %v2642, %v2680
        %v2682 = vmul.f32 %v2641, %v2680
        %v2683 = vmul.f32 %v2640, %v2680
        %v2684 = vmul.f32 %v2639, %v2680
        %v2685 = vmul.f32 %v2638, %v2680
        %v2686 = vmul.f32 %v2637, %v2680
        %v2687 = vmul.f32 %v2636, %v2680
        %v2688 = vmul.f32 %v2635, %v2680
        %v2689 = vadd.f32 %v2668, %v2681
        %v2690 = vadd.f32 %v2669, %v2682
        %v2691 = vadd.f32 %v2670, %v2683
        %v2692 = vadd.f32 %v2671, %v2684
        %v2693 = vadd.f32 %v2672, %v2685
        %v2694 = vadd.f32 %v2673, %v2686
        %v2695 = vadd.f32 %v2674, %v2687
        %v2696 = vadd.f32 %v2675, %v2688
        %v2697 = vld [vmem:[%s5 + $0x1a] sm:$0x1]
        %v2698 = vlaneseq
        %v2699 = vshrl.u32 %v2698, 7
        %v2700 = vsub.s32 0, %v2699
        %v2701 = vrot.slane %v2697, %v2700
        %v2702 = vmul.f32 %v2641, %v2701
        %v2703 = vmul.f32 %v2640, %v2701
        %v2704 = vmul.f32 %v2639, %v2701
        %v2705 = vmul.f32 %v2638, %v2701
        %v2706 = vmul.f32 %v2637, %v2701
        %v2707 = vmul.f32 %v2636, %v2701
        %v2708 = vmul.f32 %v2635, %v2701
        %v2709 = vmul.f32 %v2634, %v2701
        %v2710 = vadd.f32 %v2689, %v2702
        %v2711 = vadd.f32 %v2690, %v2703
        %v2712 = vadd.f32 %v2691, %v2704
        %v2713 = vadd.f32 %v2692, %v2705
        %v2714 = vadd.f32 %v2693, %v2706
        %v2715 = vadd.f32 %v2694, %v2707
        %v2716 = vadd.f32 %v2695, %v2708
        %v2717 = vadd.f32 %v2696, %v2709
        %v2718 = vld [vmem:[%s5 + $0x21] sm:$0x1]
        %v2719 = vlaneseq
        %v2720 = vshrl.u32 %v2719, 7
        %v2721 = vsub.s32 0, %v2720
        %v2722 = vrot.slane %v2718, %v2721
        %v2723 = vmul.f32 %v2640, %v2722
        %v2724 = vmul.f32 %v2639, %v2722
        %v2725 = vmul.f32 %v2638, %v2722
        %v2726 = vmul.f32 %v2637, %v2722
        %v2727 = vmul.f32 %v2636, %v2722
        %v2728 = vmul.f32 %v2635, %v2722
        %v2729 = vmul.f32 %v2634, %v2722
        %v2730 = vmul.f32 0.0, %v2722
        %v2731 = vadd.f32 %v2710, %v2723
        %v2732 = vadd.f32 %v2711, %v2724
        %v2733 = vadd.f32 %v2712, %v2725
        %v2734 = vadd.f32 %v2713, %v2726
        %v2735 = vadd.f32 %v2714, %v2727
        %v2736 = vadd.f32 %v2715, %v2728
        %v2737 = vadd.f32 %v2716, %v2729
        %v2738 = vadd.f32 %v2717, %v2730
        %v2739 = vld [vmem:[%s5 + $0x28] sm:$0x1]
        %v2740 = vlaneseq
        %v2741 = vshrl.u32 %v2740, 7
        %v2742 = vsub.s32 0, %v2741
        %v2743 = vrot.slane %v2739, %v2742
        %v2744 = vmul.f32 %v2639, %v2743
        %v2745 = vmul.f32 %v2638, %v2743
        %v2746 = vmul.f32 %v2637, %v2743
        %v2747 = vmul.f32 %v2636, %v2743
        %v2748 = vmul.f32 %v2635, %v2743
        %v2749 = vmul.f32 %v2634, %v2743
        %v2750 = vmul.f32 0.0, %v2743
        %v2751 = vadd.f32 %v2731, %v2744
        %v2752 = vadd.f32 %v2732, %v2745
        %v2753 = vadd.f32 %v2733, %v2746
        %v2754 = vadd.f32 %v2734, %v2747
        %v2755 = vadd.f32 %v2735, %v2748
        %v2756 = vadd.f32 %v2736, %v2749
        %v2757 = vadd.f32 %v2737, %v2750
        %v2758 = vadd.f32 %v2738, %v2750
        %v2759 = vld [vmem:[%s5 + $0x2f] sm:$0x1]
        %v2760 = vlaneseq
        %v2761 = vshrl.u32 %v2760, 7
        %v2762 = vsub.s32 0, %v2761
        %v2763 = vrot.slane %v2759, %v2762
        %v2764 = vmul.f32 %v2638, %v2763
        %v2765 = vmul.f32 %v2637, %v2763
        %v2766 = vmul.f32 %v2636, %v2763
        %v2767 = vmul.f32 %v2635, %v2763
        %v2768 = vmul.f32 %v2634, %v2763
        %v2769 = vmul.f32 0.0, %v2763
        %v2770 = vadd.f32 %v2751, %v2764
        %v2771 = vadd.f32 %v2752, %v2765
        %v2772 = vadd.f32 %v2753, %v2766
        %v2773 = vadd.f32 %v2754, %v2767
        %v2774 = vadd.f32 %v2755, %v2768
        %v2775 = vadd.f32 %v2756, %v2769
        %v2776 = vadd.f32 %v2757, %v2769
        %v2777 = vadd.f32 %v2758, %v2769
        %v2778 = vadd.s32 %v1628, 2
        %v2779 = vadd.s32 %v1629, 2
        %v2780 = vadd.s32 %v1630, 2
        %v2781 = vadd.s32 %v1631, 2
        %v2782 = vadd.s32 %v1632, 2
        %v2783 = vadd.s32 %v1633, 2
        %v2784 = vadd.s32 %v1634, 2
        %v2785 = vadd.s32 %v1635, 2
        %vm2786 = vcmp.ge.s32.totalorder %v2778, 0
        %vm2787 = vcmp.ge.s32.totalorder %v2779, 0
        %vm2788 = vcmp.ge.s32.totalorder %v2780, 0
        %vm2789 = vcmp.ge.s32.totalorder %v2781, 0
        %vm2790 = vcmp.ge.s32.totalorder %v2782, 0
        %vm2791 = vcmp.ge.s32.totalorder %v2783, 0
        %vm2792 = vcmp.ge.s32.totalorder %v2784, 0
        %vm2793 = vcmp.ge.s32.totalorder %v2785, 0
        %vm2794 = vcmp.lt.s32.totalorder %v2778, 8
        %vm2795 = vcmp.lt.s32.totalorder %v2779, 8
        %vm2796 = vcmp.lt.s32.totalorder %v2780, 8
        %vm2797 = vcmp.lt.s32.totalorder %v2781, 8
        %vm2798 = vcmp.lt.s32.totalorder %v2782, 8
        %vm2799 = vcmp.lt.s32.totalorder %v2783, 8
        %vm2800 = vcmp.lt.s32.totalorder %v2784, 8
        %vm2801 = vcmp.lt.s32.totalorder %v2785, 8
        %vm2802 = vmand %vm2786, %vm2794
        %vm2803 = vmand %vm2787, %vm2795
        %vm2804 = vmand %vm2788, %vm2796
        %vm2805 = vmand %vm2789, %vm2797
        %vm2806 = vmand %vm2790, %vm2798
        %vm2807 = vmand %vm2791, %vm2799
        %vm2808 = vmand %vm2792, %vm2800
        %vm2809 = vmand %vm2793, %vm2801
        %v2810 = vsel %vm2802, 1, 0
        %v2811 = vsel %vm2803, 1, 0
        %v2812 = vsel %vm2804, 1, 0
        %v2813 = vsel %vm2805, 1, 0
        %v2814 = vsel %vm2806, 1, 0
        %v2815 = vsel %vm2807, 1, 0
        %v2816 = vsel %vm2808, 1, 0
        %v2817 = vsel %vm2809, 1, 0
        %v2818 = vcvt.s32.f32 %v2810
        %v2819 = vcvt.s32.f32 %v2811
        %v2820 = vcvt.s32.f32 %v2812
        %v2821 = vcvt.s32.f32 %v2813
        %v2822 = vcvt.s32.f32 %v2814
        %v2823 = vcvt.s32.f32 %v2815
        %v2824 = vcvt.s32.f32 %v2816
        %v2825 = vcvt.s32.f32 %v2817
        %v2826 = vmul.f32 %v2770, %v2818
        %v2827 = vmul.f32 %v2771, %v2819
        %v2828 = vmul.f32 %v2772, %v2820
        %v2829 = vmul.f32 %v2773, %v2821
        %v2830 = vmul.f32 %v2774, %v2822
        %v2831 = vmul.f32 %v2775, %v2823
        %v2832 = vmul.f32 %v2776, %v2824
        %v2833 = vmul.f32 %v2777, %v2825
        %v2834 = vadd.f32 %v2400, %v2826
        %v2835 = vadd.f32 %v2401, %v2827
        %v2836 = vadd.f32 %v2402, %v2828
        %v2837 = vadd.f32 %v2403, %v2829
        %v2838 = vadd.f32 %v2404, %v2830
        %v2839 = vadd.f32 %v2405, %v2831
        %v2840 = vadd.f32 %v2406, %v2832
        %v2841 = vadd.f32 %v2407, %v2833
        %v2842 = vrot.slane %v1523, 3
        %v2843 = vrot.slane %v1524, 3
        %v2844 = vrot.slane %v1525, 3
        %v2845 = vrot.slane %v1526, 3
        %v2846 = vrot.slane %v1527, 3
        %v2847 = vrot.slane %v1528, 3
        %v2848 = vrot.slane %v1529, 3
        %v2849 = vrot.slane %v1530, 3
        %vm2850 = vcmp.lt.s32.totalorder %v1532, 5
        %v2851 = vsel %vm2850, %v2849, 0.0
        %v2852 = vsel %vm2850, %v2848, %v2849
        %v2853 = vsel %vm2850, %v2847, %v2848
        %v2854 = vsel %vm2850, %v2846, %v2847
        %v2855 = vsel %vm2850, %v2845, %v2846
        %v2856 = vsel %vm2850, %v2844, %v2845
        %v2857 = vsel %vm2850, %v2843, %v2844
        %v2858 = vsel %vm2850, %v2842, %v2843
        %v2859 = vsel %vm2850, 0.0, %v2842
        %v2860 = vld [vmem:[%s5 + $0x6] sm:$0x1]
        %v2861 = vlaneseq
        %v2862 = vshrl.u32 %v2861, 7
        %v2863 = vsub.s32 0, %v2862
        %v2864 = vrot.slane %v2860, %v2863
        %v2865 = vmul.f32 0.0, %v2864
        %v2866 = vmul.f32 %v2859, %v2864
        %v2867 = vmul.f32 %v2858, %v2864
        %v2868 = vmul.f32 %v2857, %v2864
        %v2869 = vmul.f32 %v2856, %v2864
        %v2870 = vmul.f32 %v2855, %v2864
        %v2871 = vmul.f32 %v2854, %v2864
        %v2872 = vld [vmem:[%s5 + $0xd] sm:$0x1]
        %v2873 = vlaneseq
        %v2874 = vshrl.u32 %v2873, 7
        %v2875 = vsub.s32 0, %v2874
        %v2876 = vrot.slane %v2872, %v2875
        %v2877 = vmul.f32 0.0, %v2876
        %v2878 = vmul.f32 %v2859, %v2876
        %v2879 = vmul.f32 %v2858, %v2876
        %v2880 = vmul.f32 %v2857, %v2876
        %v2881 = vmul.f32 %v2856, %v2876
        %v2882 = vmul.f32 %v2855, %v2876
        %v2883 = vmul.f32 %v2854, %v2876
        %v2884 = vmul.f32 %v2853, %v2876
        %v2885 = vadd.f32 %v2865, %v2877
        %v2886 = vadd.f32 %v2865, %v2878
        %v2887 = vadd.f32 %v2866, %v2879
        %v2888 = vadd.f32 %v2867, %v2880
        %v2889 = vadd.f32 %v2868, %v2881
        %v2890 = vadd.f32 %v2869, %v2882
        %v2891 = vadd.f32 %v2870, %v2883
        %v2892 = vadd.f32 %v2871, %v2884
        %v2893 = vld [vmem:[%s5 + $0x14] sm:$0x1]
        %v2894 = vlaneseq
        %v2895 = vshrl.u32 %v2894, 7
        %v2896 = vsub.s32 0, %v2895
        %v2897 = vrot.slane %v2893, %v2896
        %v2898 = vmul.f32 %v2859, %v2897
        %v2899 = vmul.f32 %v2858, %v2897
        %v2900 = vmul.f32 %v2857, %v2897
        %v2901 = vmul.f32 %v2856, %v2897
        %v2902 = vmul.f32 %v2855, %v2897
        %v2903 = vmul.f32 %v2854, %v2897
        %v2904 = vmul.f32 %v2853, %v2897
        %v2905 = vmul.f32 %v2852, %v2897
        %v2906 = vadd.f32 %v2885, %v2898
        %v2907 = vadd.f32 %v2886, %v2899
        %v2908 = vadd.f32 %v2887, %v2900
        %v2909 = vadd.f32 %v2888, %v2901
        %v2910 = vadd.f32 %v2889, %v2902
        %v2911 = vadd.f32 %v2890, %v2903
        %v2912 = vadd.f32 %v2891, %v2904
        %v2913 = vadd.f32 %v2892, %v2905
        %v2914 = vld [vmem:[%s5 + $0x1b] sm:$0x1]
        %v2915 = vlaneseq
        %v2916 = vshrl.u32 %v2915, 7
        %v2917 = vsub.s32 0, %v2916
        %v2918 = vrot.slane %v2914, %v2917
        %v2919 = vmul.f32 %v2858, %v2918
        %v2920 = vmul.f32 %v2857, %v2918
        %v2921 = vmul.f32 %v2856, %v2918
        %v2922 = vmul.f32 %v2855, %v2918
        %v2923 = vmul.f32 %v2854, %v2918
        %v2924 = vmul.f32 %v2853, %v2918
        %v2925 = vmul.f32 %v2852, %v2918
        %v2926 = vmul.f32 %v2851, %v2918
        %v2927 = vadd.f32 %v2906, %v2919
        %v2928 = vadd.f32 %v2907, %v2920
        %v2929 = vadd.f32 %v2908, %v2921
        %v2930 = vadd.f32 %v2909, %v2922
        %v2931 = vadd.f32 %v2910, %v2923
        %v2932 = vadd.f32 %v2911, %v2924
        %v2933 = vadd.f32 %v2912, %v2925
        %v2934 = vadd.f32 %v2913, %v2926
        %v2935 = vld [vmem:[%s5 + $0x22] sm:$0x1]
        %v2936 = vlaneseq
        %v2937 = vshrl.u32 %v2936, 7
        %v2938 = vsub.s32 0, %v2937
        %v2939 = vrot.slane %v2935, %v2938
        %v2940 = vmul.f32 %v2857, %v2939
        %v2941 = vmul.f32 %v2856, %v2939
        %v2942 = vmul.f32 %v2855, %v2939
        %v2943 = vmul.f32 %v2854, %v2939
        %v2944 = vmul.f32 %v2853, %v2939
        %v2945 = vmul.f32 %v2852, %v2939
        %v2946 = vmul.f32 %v2851, %v2939
        %v2947 = vmul.f32 0.0, %v2939
        %v2948 = vadd.f32 %v2927, %v2940
        %v2949 = vadd.f32 %v2928, %v2941
        %v2950 = vadd.f32 %v2929, %v2942
        %v2951 = vadd.f32 %v2930, %v2943
        %v2952 = vadd.f32 %v2931, %v2944
        %v2953 = vadd.f32 %v2932, %v2945
        %v2954 = vadd.f32 %v2933, %v2946
        %v2955 = vadd.f32 %v2934, %v2947
        %v2956 = vld [vmem:[%s5 + $0x29] sm:$0x1]
        %v2957 = vlaneseq
        %v2958 = vshrl.u32 %v2957, 7
        %v2959 = vsub.s32 0, %v2958
        %v2960 = vrot.slane %v2956, %v2959
        %v2961 = vmul.f32 %v2856, %v2960
        %v2962 = vmul.f32 %v2855, %v2960
        %v2963 = vmul.f32 %v2854, %v2960
        %v2964 = vmul.f32 %v2853, %v2960
        %v2965 = vmul.f32 %v2852, %v2960
        %v2966 = vmul.f32 %v2851, %v2960
        %v2967 = vmul.f32 0.0, %v2960
        %v2968 = vadd.f32 %v2948, %v2961
        %v2969 = vadd.f32 %v2949, %v2962
        %v2970 = vadd.f32 %v2950, %v2963
        %v2971 = vadd.f32 %v2951, %v2964
        %v2972 = vadd.f32 %v2952, %v2965
        %v2973 = vadd.f32 %v2953, %v2966
        %v2974 = vadd.f32 %v2954, %v2967
        %v2975 = vadd.f32 %v2955, %v2967
        %v2976 = vld [vmem:[%s5 + $0x30] sm:$0x1]
        %v2977 = vlaneseq
        %v2978 = vshrl.u32 %v2977, 7
        %v2979 = vsub.s32 0, %v2978
        %v2980 = vrot.slane %v2976, %v2979
        %v2981 = vmul.f32 %v2855, %v2980
        %v2982 = vmul.f32 %v2854, %v2980
        %v2983 = vmul.f32 %v2853, %v2980
        %v2984 = vmul.f32 %v2852, %v2980
        %v2985 = vmul.f32 %v2851, %v2980
        %v2986 = vmul.f32 0.0, %v2980
        %v2987 = vadd.f32 %v2968, %v2981
        %v2988 = vadd.f32 %v2969, %v2982
        %v2989 = vadd.f32 %v2970, %v2983
        %v2990 = vadd.f32 %v2971, %v2984
        %v2991 = vadd.f32 %v2972, %v2985
        %v2992 = vadd.f32 %v2973, %v2986
        %v2993 = vadd.f32 %v2974, %v2986
        %v2994 = vadd.f32 %v2975, %v2986
        %v2995 = vadd.s32 %v1628, 3
        %v2996 = vadd.s32 %v1629, 3
        %v2997 = vadd.s32 %v1630, 3
        %v2998 = vadd.s32 %v1631, 3
        %v2999 = vadd.s32 %v1632, 3
        %v3000 = vadd.s32 %v1633, 3
        %v3001 = vadd.s32 %v1634, 3
        %v3002 = vadd.s32 %v1635, 3
        %vm3003 = vcmp.ge.s32.totalorder %v2995, 0
        %vm3004 = vcmp.ge.s32.totalorder %v2996, 0
        %vm3005 = vcmp.ge.s32.totalorder %v2997, 0
        %vm3006 = vcmp.ge.s32.totalorder %v2998, 0
        %vm3007 = vcmp.ge.s32.totalorder %v2999, 0
        %vm3008 = vcmp.ge.s32.totalorder %v3000, 0
        %vm3009 = vcmp.ge.s32.totalorder %v3001, 0
        %vm3010 = vcmp.ge.s32.totalorder %v3002, 0
        %vm3011 = vcmp.lt.s32.totalorder %v2995, 8
        %vm3012 = vcmp.lt.s32.totalorder %v2996, 8
        %vm3013 = vcmp.lt.s32.totalorder %v2997, 8
        %vm3014 = vcmp.lt.s32.totalorder %v2998, 8
        %vm3015 = vcmp.lt.s32.totalorder %v2999, 8
        %vm3016 = vcmp.lt.s32.totalorder %v3000, 8
        %vm3017 = vcmp.lt.s32.totalorder %v3001, 8
        %vm3018 = vcmp.lt.s32.totalorder %v3002, 8
        %vm3019 = vmand %vm3003, %vm3011
        %vm3020 = vmand %vm3004, %vm3012
        %vm3021 = vmand %vm3005, %vm3013
        %vm3022 = vmand %vm3006, %vm3014
        %vm3023 = vmand %vm3007, %vm3015
        %vm3024 = vmand %vm3008, %vm3016
        %vm3025 = vmand %vm3009, %vm3017
        %vm3026 = vmand %vm3010, %vm3018
        %v3027 = vsel %vm3019, 1, 0
        %v3028 = vsel %vm3020, 1, 0
        %v3029 = vsel %vm3021, 1, 0
        %v3030 = vsel %vm3022, 1, 0
        %v3031 = vsel %vm3023, 1, 0
        %v3032 = vsel %vm3024, 1, 0
        %v3033 = vsel %vm3025, 1, 0
        %v3034 = vsel %vm3026, 1, 0
        %v3035 = vcvt.s32.f32 %v3027
        %v3036 = vcvt.s32.f32 %v3028
        %v3037 = vcvt.s32.f32 %v3029
        %v3038 = vcvt.s32.f32 %v3030
        %v3039 = vcvt.s32.f32 %v3031
        %v3040 = vcvt.s32.f32 %v3032
        %v3041 = vcvt.s32.f32 %v3033
        %v3042 = vcvt.s32.f32 %v3034
        %v3043 = vmul.f32 %v2987, %v3035
        %v3044 = vmul.f32 %v2988, %v3036
        %v3045 = vmul.f32 %v2989, %v3037
        %v3046 = vmul.f32 %v2990, %v3038
        %v3047 = vmul.f32 %v2991, %v3039
        %v3048 = vmul.f32 %v2992, %v3040
        %v3049 = vmul.f32 %v2993, %v3041
        %v3050 = vmul.f32 %v2994, %v3042
        %v3051 = vadd.f32 %v2617, %v3043
        %v3052 = vadd.f32 %v2618, %v3044
        %v3053 = vadd.f32 %v2619, %v3045
        %v3054 = vadd.f32 %v2620, %v3046
        %v3055 = vadd.f32 %v2621, %v3047
        %v3056 = vadd.f32 %v2622, %v3048
        %v3057 = vadd.f32 %v2623, %v3049
        %v3058 = vadd.f32 %v2624, %v3050
        %v3059 = vadd.f32 %v3051, %v2834
        %v3060 = vadd.f32 %v3052, %v2835
        %v3061 = vadd.f32 %v3053, %v2836
        %v3062 = vadd.f32 %v3054, %v2837
        %v3063 = vadd.f32 %v3055, %v2838
        %v3064 = vadd.f32 %v3056, %v2839
        %v3065 = vadd.f32 %v3057, %v2840
        %v3066 = vadd.f32 %v3058, %v2841
        %v3067 = vpack.c.bf16 %v3060, %v3059
        %v3068 = vpack.c.bf16 %v3062, %v3061
        %v3069 = vpack.c.bf16 %v3064, %v3063
        %v3070 = vpack.c.bf16 %v3066, %v3065
        %v3071 = vld [vmem:[%s6] sm:$0xff]
        %v3072 = vld [vmem:[%s6 + $0x8] sm:$0xff]
        %v3073 = vld [vmem:[%s6 + $0x10] sm:$0xff]
        %v3074 = vld [vmem:[%s6 + $0x18] sm:$0xff]
        %v3075 = vld [vmem:[%s6 + $0x20] sm:$0xff]
        %v3076 = vld [vmem:[%s6 + $0x28] sm:$0xff]
        %v3077 = vld [vmem:[%s6 + $0x30] sm:$0xff]
        %v3078 = vld [vmem:[%s6 + $0x38] sm:$0xff]
        %v3079 = vld [vmem:[%s7] sm:$0x3]
        %v3081 = vlaneseq
        %v3082 = vshrl.u32 %v3081, 7
        %v3083 = vsub.s32 0, %v3082
        %v3084 = vrot.slane %v3079, %v3083
        %v3085 = vlaneseq
        %v3086 = vshrl.u32 %v3085, 7
        %v3087 = vsub.s32 1, %v3086
        %v3088 = vrot.slane %v3079, %v3087
        %v3099 = vunpack.c.l.b16 %v3071
        %v3100 = vunpack.c.h.b16 %v3071
        %v3101 = vunpack.c.l.b16 %v3072
        %v3102 = vunpack.c.h.b16 %v3072
        %v3103 = vunpack.c.l.b16 %v3073
        %v3104 = vunpack.c.h.b16 %v3073
        %v3105 = vunpack.c.l.b16 %v3074
        %v3106 = vunpack.c.h.b16 %v3074
        %v3107 = vunpack.c.l.b16 %v3075
        %v3108 = vunpack.c.h.b16 %v3075
        %v3109 = vunpack.c.l.b16 %v3076
        %v3110 = vunpack.c.h.b16 %v3076
        %v3111 = vunpack.c.l.b16 %v3077
        %v3112 = vunpack.c.h.b16 %v3077
        %v3113 = vunpack.c.l.b16 %v3078
        %v3114 = vunpack.c.h.b16 %v3078
        %v3115 = vpack.c.b16 %v3101, %v3099
        %v3116 = vpack.c.b16 %v3102, %v3100
        %v3117 = vpack.c.b16 %v3105, %v3103
        %v3118 = vpack.c.b16 %v3106, %v3104
        %v3119 = vpack.c.b16 %v3109, %v3107
        %v3120 = vpack.c.b16 %v3110, %v3108
        %v3121 = vpack.c.b16 %v3113, %v3111
        %v3122 = vpack.c.b16 %v3114, %v3112
        %v3132 = vsel %vm431, %v3067, 0
        %v3135 = vsel %vm431, %v3068, 0
        %v3138 = vsel %vm431, %v3069, 0
        %v3141 = vsel %vm431, %v3070, 0
        %3143 = vmatprep.subr.bf16.mxu0 %v3116
        %3144 = vmatpush1.bf16.msra.mxu0 %v3115
        %3145 = vmatprep.subr.bf16.mxu0 %v3118
        %3146 = vmatpush1.bf16.msra.mxu0 %v3117
        %3147 = vmatprep.subr.bf16.mxu0 %v3120
        %3148 = vmatpush1.bf16.msra.mxu0 %v3119
        %3149 = vmatprep.subr.bf16.mxu0 %v3122
        %3150 = vmatpush1.bf16.msra.mxu0 %v3121
        %3151 = vmatprep.subr.bf16.mxu0 0
        %3152 = vmatpush1.bf16.msra.mxu0 0
        %3153 = vmatprep.subr.bf16.mxu0 0
        %3154 = vmatpush1.bf16.msra.mxu0 0
        %3155 = vmatprep.subr.bf16.mxu0 0
        %3156 = vmatpush1.bf16.msra.mxu0 0
        %3157 = vmatprep.subr.bf16.mxu0 0
        %3158 = vmatpush1.bf16.msra.mxu0 0
        %3159 = vmatprep.subr.bf16.mxu0 0
        %3160 = vmatpush1.bf16.msra.mxu0 0
        %3161 = vmatprep.subr.bf16.mxu0 0
        %3162 = vmatpush1.bf16.msra.mxu0 0
        %3163 = vmatprep.subr.bf16.mxu0 0
        %3164 = vmatpush1.bf16.msra.mxu0 0
        %3165 = vmatprep.subr.bf16.mxu0 0
        %3166 = vmatpush1.bf16.msra.mxu0 0
        %3167 = vmatprep.subr.bf16.mxu0 0
        %3168 = vmatpush1.bf16.msra.mxu0 0
        %3169 = vmatprep.subr.bf16.mxu0 0
        %3170 = vmatpush1.bf16.msra.mxu0 0
        %3171 = vmatprep.subr.bf16.mxu0 0
        %3172 = vmatpush1.bf16.msra.mxu0 0
        %3173 = vmatprep.subr.bf16.mxu0 0
        %3174 = vmatpush1.bf16.msra.mxu0 0
        %3175 = vmatprep.mubr.bf16.mxu0 0
        %3176 = vmatmul.mubr.bf16.gmra.mrb[0].mxu0 %v3132
        %v3177 = vpop.f32.mrb[0].mxu0
        %v3178 = vadd.f32 %v3084, %v3177
        %v3179 = vpop.f32.mrb[0].mxu0
        %v3180 = vadd.f32 %v3088, %v3179
        %v3181 = vpop.f32.mrb[0].mxu0
        %v3182 = vadd.f32 %v3084, %v3181
        %v3183 = vpop.f32.mrb[0].mxu0
        %v3184 = vadd.f32 %v3088, %v3183
        %3185 = vmatprep.mubr.bf16.mxu0 0
        %3186 = vmatmul.mubr.bf16.gmra.mrb[0].mxu0 %v3135
        %v3187 = vpop.f32.mrb[0].mxu0
        %v3188 = vadd.f32 %v3084, %v3187
        %v3189 = vpop.f32.mrb[0].mxu0
        %v3190 = vadd.f32 %v3088, %v3189
        %v3191 = vpop.f32.mrb[0].mxu0
        %v3192 = vadd.f32 %v3084, %v3191
        %v3193 = vpop.f32.mrb[0].mxu0
        %v3194 = vadd.f32 %v3088, %v3193
        %3195 = vmatprep.mubr.bf16.mxu0 0
        %3196 = vmatmul.mubr.bf16.gmra.mrb[0].mxu0 %v3138
        %v3197 = vpop.f32.mrb[0].mxu0
        %v3198 = vadd.f32 %v3084, %v3197
        %v3199 = vpop.f32.mrb[0].mxu0
        %v3200 = vadd.f32 %v3088, %v3199
        %v3201 = vpop.f32.mrb[0].mxu0
        %v3202 = vadd.f32 %v3084, %v3201
        %v3203 = vpop.f32.mrb[0].mxu0
        %v3204 = vadd.f32 %v3088, %v3203
        %3205 = vmatprep.mubr.bf16.mxu0 0
        %3206 = vmatmul.mubr.bf16.gmra.mrb[0].mxu0 %v3141
        %v3207 = vpop.f32.mrb[0].mxu0
        %v3208 = vadd.f32 %v3084, %v3207
        %v3209 = vpop.f32.mrb[0].mxu0
        %v3210 = vadd.f32 %v3088, %v3209
        %v3211 = vpop.f32.mrb[0].mxu0
        %v3212 = vadd.f32 %v3084, %v3211
        %v3213 = vpop.f32.mrb[0].mxu0
        %v3214 = vadd.f32 %v3088, %v3213
        %3215 = vdwg.mxu0
        %v3216 = vmul.f32 %v3178, 0.5
        %v3217 = vmul.f32 %v3180, 0.5
        %v3218 = vmul.f32 %v3182, 0.5
        %v3219 = vmul.f32 %v3184, 0.5
        %v3220 = vmul.f32 %v3188, 0.5
        %v3221 = vmul.f32 %v3190, 0.5
        %v3222 = vmul.f32 %v3192, 0.5
        %v3223 = vmul.f32 %v3194, 0.5
        %v3224 = vmul.f32 %v3198, 0.5
        %v3225 = vmul.f32 %v3200, 0.5
        %v3226 = vmul.f32 %v3202, 0.5
        %v3227 = vmul.f32 %v3204, 0.5
        %v3228 = vmul.f32 %v3208, 0.5
        %v3229 = vmul.f32 %v3210, 0.5
        %v3230 = vmul.f32 %v3212, 0.5
        %v3231 = vmul.f32 %v3214, 0.5
        %v3232 = vmul.f32 %v3178, 0.044715
        %v3233 = vmul.f32 %v3180, 0.044715
        %v3234 = vmul.f32 %v3182, 0.044715
        %v3235 = vmul.f32 %v3184, 0.044715
        %v3236 = vmul.f32 %v3188, 0.044715
        %v3237 = vmul.f32 %v3190, 0.044715
        %v3238 = vmul.f32 %v3192, 0.044715
        %v3239 = vmul.f32 %v3194, 0.044715
        %v3240 = vmul.f32 %v3198, 0.044715
        %v3241 = vmul.f32 %v3200, 0.044715
        %v3242 = vmul.f32 %v3202, 0.044715
        %v3243 = vmul.f32 %v3204, 0.044715
        %v3244 = vmul.f32 %v3208, 0.044715
        %v3245 = vmul.f32 %v3210, 0.044715
        %v3246 = vmul.f32 %v3212, 0.044715
        %v3247 = vmul.f32 %v3214, 0.044715
        %v3248 = vmul.f32 %v3232, %v3178
        %v3249 = vmul.f32 %v3233, %v3180
        %v3250 = vmul.f32 %v3234, %v3182
        %v3251 = vmul.f32 %v3235, %v3184
        %v3252 = vmul.f32 %v3236, %v3188
        %v3253 = vmul.f32 %v3237, %v3190
        %v3254 = vmul.f32 %v3238, %v3192
        %v3255 = vmul.f32 %v3239, %v3194
        %v3256 = vmul.f32 %v3240, %v3198
        %v3257 = vmul.f32 %v3241, %v3200
        %v3258 = vmul.f32 %v3242, %v3202
        %v3259 = vmul.f32 %v3243, %v3204
        %v3260 = vmul.f32 %v3244, %v3208
        %v3261 = vmul.f32 %v3245, %v3210
        %v3262 = vmul.f32 %v3246, %v3212
        %v3263 = vmul.f32 %v3247, %v3214
        %v3264 = vmul.f32 %v3248, %v3178
        %v3265 = vmul.f32 %v3249, %v3180
        %v3266 = vmul.f32 %v3250, %v3182
        %v3267 = vmul.f32 %v3251, %v3184
        %v3268 = vmul.f32 %v3252, %v3188
        %v3269 = vmul.f32 %v3253, %v3190
        %v3270 = vmul.f32 %v3254, %v3192
        %v3271 = vmul.f32 %v3255, %v3194
        %v3272 = vmul.f32 %v3256, %v3198
        %v3273 = vmul.f32 %v3257, %v3200
        %v3274 = vmul.f32 %v3258, %v3202
        %v3275 = vmul.f32 %v3259, %v3204
        %v3276 = vmul.f32 %v3260, %v3208
        %v3277 = vmul.f32 %v3261, %v3210
        %v3278 = vmul.f32 %v3262, %v3212
        %v3279 = vmul.f32 %v3263, %v3214
        %v3280 = vadd.f32 %v3178, %v3264
        %v3281 = vadd.f32 %v3180, %v3265
        %v3282 = vadd.f32 %v3182, %v3266
        %v3283 = vadd.f32 %v3184, %v3267
        %v3284 = vadd.f32 %v3188, %v3268
        %v3285 = vadd.f32 %v3190, %v3269
        %v3286 = vadd.f32 %v3192, %v3270
        %v3287 = vadd.f32 %v3194, %v3271
        %v3288 = vadd.f32 %v3198, %v3272
        %v3289 = vadd.f32 %v3200, %v3273
        %v3290 = vadd.f32 %v3202, %v3274
        %v3291 = vadd.f32 %v3204, %v3275
        %v3292 = vadd.f32 %v3208, %v3276
        %v3293 = vadd.f32 %v3210, %v3277
        %v3294 = vadd.f32 %v3212, %v3278
        %v3295 = vadd.f32 %v3214, %v3279
        %v3296 = vmul.f32 %v3280, 0.7978846
        %v3297 = vmul.f32 %v3281, 0.7978846
        %v3298 = vmul.f32 %v3282, 0.7978846
        %v3299 = vmul.f32 %v3283, 0.7978846
        %v3300 = vmul.f32 %v3284, 0.7978846
        %v3301 = vmul.f32 %v3285, 0.7978846
        %v3302 = vmul.f32 %v3286, 0.7978846
        %v3303 = vmul.f32 %v3287, 0.7978846
        %v3304 = vmul.f32 %v3288, 0.7978846
        %v3305 = vmul.f32 %v3289, 0.7978846
        %v3306 = vmul.f32 %v3290, 0.7978846
        %v3307 = vmul.f32 %v3291, 0.7978846
        %v3308 = vmul.f32 %v3292, 0.7978846
        %v3309 = vmul.f32 %v3293, 0.7978846
        %v3310 = vmul.f32 %v3294, 0.7978846
        %v3311 = vmul.f32 %v3295, 0.7978846
        %v3312 = vtanh.pop %v3296
        %v3313 = vtanh.pop %v3297
        %v3314 = vtanh.pop %v3298
        %v3315 = vtanh.pop %v3299
        %v3316 = vtanh.pop %v3300
        %v3317 = vtanh.pop %v3301
        %v3318 = vtanh.pop %v3302
        %v3319 = vtanh.pop %v3303
        %v3320 = vtanh.pop %v3304
        %v3321 = vtanh.pop %v3305
        %v3322 = vtanh.pop %v3306
        %v3323 = vtanh.pop %v3307
        %v3324 = vtanh.pop %v3308
        %v3325 = vtanh.pop %v3309
        %v3326 = vtanh.pop %v3310
        %v3327 = vtanh.pop %v3311
        %v3328 = vadd.f32 %v3312, 1.0
        %v3329 = vadd.f32 %v3313, 1.0
        %v3330 = vadd.f32 %v3314, 1.0
        %v3331 = vadd.f32 %v3315, 1.0
        %v3332 = vadd.f32 %v3316, 1.0
        %v3333 = vadd.f32 %v3317, 1.0
        %v3334 = vadd.f32 %v3318, 1.0
        %v3335 = vadd.f32 %v3319, 1.0
        %v3336 = vadd.f32 %v3320, 1.0
        %v3337 = vadd.f32 %v3321, 1.0
        %v3338 = vadd.f32 %v3322, 1.0
        %v3339 = vadd.f32 %v3323, 1.0
        %v3340 = vadd.f32 %v3324, 1.0
        %v3341 = vadd.f32 %v3325, 1.0
        %v3342 = vadd.f32 %v3326, 1.0
        %v3343 = vadd.f32 %v3327, 1.0
        %v3344 = vmul.f32 %v3216, %v3328
        %v3345 = vmul.f32 %v3217, %v3329
        %v3346 = vmul.f32 %v3218, %v3330
        %v3347 = vmul.f32 %v3219, %v3331
        %v3348 = vmul.f32 %v3220, %v3332
        %v3349 = vmul.f32 %v3221, %v3333
        %v3350 = vmul.f32 %v3222, %v3334
        %v3351 = vmul.f32 %v3223, %v3335
        %v3352 = vmul.f32 %v3224, %v3336
        %v3353 = vmul.f32 %v3225, %v3337
        %v3354 = vmul.f32 %v3226, %v3338
        %v3355 = vmul.f32 %v3227, %v3339
        %v3356 = vmul.f32 %v3228, %v3340
        %v3357 = vmul.f32 %v3229, %v3341
        %v3358 = vmul.f32 %v3230, %v3342
        %v3359 = vmul.f32 %v3231, %v3343
        %v3360 = vpack.c.bf16 %v3346, %v3344
        %v3361 = vpack.c.bf16 %v3347, %v3345
        %v3362 = vpack.c.bf16 %v3350, %v3348
        %v3363 = vpack.c.bf16 %v3351, %v3349
        %v3364 = vpack.c.bf16 %v3354, %v3352
        %v3365 = vpack.c.bf16 %v3355, %v3353
        %v3366 = vpack.c.bf16 %v3358, %v3356
        %v3367 = vpack.c.bf16 %v3359, %v3357
        %v3368 = vld [vmem:[%s8] sm:$0xf]
        %v3369 = vld [vmem:[%s8 + $0x4] sm:$0xf]
        %v3370 = vld [vmem:[%s8 + $0x8] sm:$0xf]
        %v3371 = vld [vmem:[%s8 + $0xc] sm:$0xf]
        %v3372 = vld [vmem:[%s8 + $0x10] sm:$0xf]
        %v3373 = vld [vmem:[%s8 + $0x14] sm:$0xf]
        %v3374 = vld [vmem:[%s8 + $0x18] sm:$0xf]
        %v3375 = vld [vmem:[%s8 + $0x1c] sm:$0xf]
        %v3376 = vld [vmem:[%s8 + $0x20] sm:$0xf]
        %v3377 = vld [vmem:[%s8 + $0x24] sm:$0xf]
        %v3378 = vld [vmem:[%s8 + $0x28] sm:$0xf]
        %v3379 = vld [vmem:[%s8 + $0x2c] sm:$0xf]
        %v3380 = vld [vmem:[%s8 + $0x30] sm:$0xf]
        %v3381 = vld [vmem:[%s8 + $0x34] sm:$0xf]
        %v3382 = vld [vmem:[%s8 + $0x38] sm:$0xf]
        %v3383 = vld [vmem:[%s8 + $0x3c] sm:$0xf]
        %v3384 = vld [vmem:[%s8 + $0x40] sm:$0xf]
        %v3385 = vld [vmem:[%s8 + $0x44] sm:$0xf]
        %v3386 = vld [vmem:[%s8 + $0x48] sm:$0xf]
        %v3387 = vld [vmem:[%s8 + $0x4c] sm:$0xf]
        %v3388 = vld [vmem:[%s8 + $0x50] sm:$0xf]
        %v3389 = vld [vmem:[%s8 + $0x54] sm:$0xf]
        %v3390 = vld [vmem:[%s8 + $0x58] sm:$0xf]
        %v3391 = vld [vmem:[%s8 + $0x5c] sm:$0xf]
        %v3392 = vld [vmem:[%s8 + $0x60] sm:$0xf]
        %v3393 = vld [vmem:[%s8 + $0x64] sm:$0xf]
        %v3394 = vld [vmem:[%s8 + $0x68] sm:$0xf]
        %v3395 = vld [vmem:[%s8 + $0x6c] sm:$0xf]
        %v3396 = vld [vmem:[%s8 + $0x70] sm:$0xf]
        %v3397 = vld [vmem:[%s8 + $0x74] sm:$0xf]
        %v3398 = vld [vmem:[%s8 + $0x78] sm:$0xf]
        %v3399 = vld [vmem:[%s8 + $0x7c] sm:$0xf]
        %v3400 = vld [vmem:[%s9] sm:$0x1]
        %v3402 = vlaneseq
        %v3403 = vshrl.u32 %v3402, 7
        %v3404 = vsub.s32 0, %v3403
        %v3405 = vrot.slane %v3400, %v3404
        %v3439 = vunpack.c.l.b16 %v3368
        %v3440 = vunpack.c.l.b16 %v3369
        %v3441 = vunpack.c.l.b16 %v3370
        %v3442 = vunpack.c.l.b16 %v3371
        %v3443 = vunpack.c.l.b16 %v3372
        %v3444 = vunpack.c.l.b16 %v3373
        %v3445 = vunpack.c.l.b16 %v3374
        %v3446 = vunpack.c.l.b16 %v3375
        %v3447 = vunpack.c.l.b16 %v3376
        %v3448 = vunpack.c.l.b16 %v3377
        %v3449 = vunpack.c.l.b16 %v3378
        %v3450 = vunpack.c.l.b16 %v3379
        %v3451 = vunpack.c.l.b16 %v3380
        %v3452 = vunpack.c.l.b16 %v3381
        %v3453 = vunpack.c.l.b16 %v3382
        %v3454 = vunpack.c.l.b16 %v3383
        %v3455 = vunpack.c.l.b16 %v3384
        %v3456 = vunpack.c.l.b16 %v3385
        %v3457 = vunpack.c.l.b16 %v3386
        %v3458 = vunpack.c.l.b16 %v3387
        %v3459 = vunpack.c.l.b16 %v3388
        %v3460 = vunpack.c.l.b16 %v3389
        %v3461 = vunpack.c.l.b16 %v3390
        %v3462 = vunpack.c.l.b16 %v3391
        %v3463 = vunpack.c.l.b16 %v3392
        %v3464 = vunpack.c.l.b16 %v3393
        %v3465 = vunpack.c.l.b16 %v3394
        %v3466 = vunpack.c.l.b16 %v3395
        %v3467 = vunpack.c.l.b16 %v3396
        %v3468 = vunpack.c.l.b16 %v3397
        %v3469 = vunpack.c.l.b16 %v3398
        %v3470 = vunpack.c.l.b16 %v3399
        %v3471 = vpack.c.b16 %v3440, %v3439
        %v3472 = vpack.c.b16 %v3442, %v3441
        %v3473 = vpack.c.b16 %v3444, %v3443
        %v3474 = vpack.c.b16 %v3446, %v3445
        %v3475 = vpack.c.b16 %v3448, %v3447
        %v3476 = vpack.c.b16 %v3450, %v3449
        %v3477 = vpack.c.b16 %v3452, %v3451
        %v3478 = vpack.c.b16 %v3454, %v3453
        %v3479 = vpack.c.b16 %v3456, %v3455
        %v3480 = vpack.c.b16 %v3458, %v3457
        %v3481 = vpack.c.b16 %v3460, %v3459
        %v3482 = vpack.c.b16 %v3462, %v3461
        %v3483 = vpack.c.b16 %v3464, %v3463
        %v3484 = vpack.c.b16 %v3466, %v3465
        %v3485 = vpack.c.b16 %v3468, %v3467
        %v3486 = vpack.c.b16 %v3470, %v3469
        %3503 = vmatprep.subr.bf16.mxu0 0
        %3504 = vmatpush1.bf16.msra.mxu0 %v3471
        %3505 = vmatprep.subr.bf16.mxu0 0
        %3506 = vmatpush1.bf16.msra.mxu0 %v3472
        %3507 = vmatprep.subr.bf16.mxu0 0
        %3508 = vmatpush1.bf16.msra.mxu0 %v3473
        %3509 = vmatprep.subr.bf16.mxu0 0
        %3510 = vmatpush1.bf16.msra.mxu0 %v3474
        %3511 = vmatprep.subr.bf16.mxu0 0
        %3512 = vmatpush1.bf16.msra.mxu0 %v3475
        %3513 = vmatprep.subr.bf16.mxu0 0
        %3514 = vmatpush1.bf16.msra.mxu0 %v3476
        %3515 = vmatprep.subr.bf16.mxu0 0
        %3516 = vmatpush1.bf16.msra.mxu0 %v3477
        %3517 = vmatprep.subr.bf16.mxu0 0
        %3518 = vmatpush1.bf16.msra.mxu0 %v3478
        %3519 = vmatprep.subr.bf16.mxu0 0
        %3520 = vmatpush1.bf16.msra.mxu0 %v3479
        %3521 = vmatprep.subr.bf16.mxu0 0
        %3522 = vmatpush1.bf16.msra.mxu0 %v3480
        %3523 = vmatprep.subr.bf16.mxu0 0
        %3524 = vmatpush1.bf16.msra.mxu0 %v3481
        %3525 = vmatprep.subr.bf16.mxu0 0
        %3526 = vmatpush1.bf16.msra.mxu0 %v3482
        %3527 = vmatprep.subr.bf16.mxu0 0
        %3528 = vmatpush1.bf16.msra.mxu0 %v3483
        %3529 = vmatprep.subr.bf16.mxu0 0
        %3530 = vmatpush1.bf16.msra.mxu0 %v3484
        %3531 = vmatprep.subr.bf16.mxu0 0
        %3532 = vmatpush1.bf16.msra.mxu0 %v3485
        %3533 = vmatprep.subr.bf16.mxu0 0
        %3534 = vmatpush1.bf16.msra.mxu0 %v3486
        %3535 = vmatprep.mubr.bf16.mxu0 %v3361
        %3536 = vmatmul.mubr.bf16.gmra.mrb[0].mxu0 %v3360
        %v3537 = vpop.f32.mrb[0].mxu0
        %v3538 = vadd.f32 %v3405, %v3537
        %v3539 = vpop.f32.mrb[0].mxu0
        %v3540 = vpop.f32.mrb[0].mxu0
        %v3541 = vadd.f32 %v3405, %v3540
        %v3542 = vpop.f32.mrb[0].mxu0
        %3543 = vmatprep.mubr.bf16.mxu0 %v3363
        %3544 = vmatmul.mubr.bf16.gmra.mrb[0].mxu0 %v3362
        %v3545 = vpop.f32.mrb[0].mxu0
        %v3546 = vadd.f32 %v3405, %v3545
        %v3547 = vpop.f32.mrb[0].mxu0
        %v3548 = vpop.f32.mrb[0].mxu0
        %v3549 = vadd.f32 %v3405, %v3548
        %v3550 = vpop.f32.mrb[0].mxu0
        %3551 = vmatprep.mubr.bf16.mxu0 %v3365
        %3552 = vmatmul.mubr.bf16.gmra.mrb[0].mxu0 %v3364
        %v3553 = vpop.f32.mrb[0].mxu0
        %v3554 = vadd.f32 %v3405, %v3553
        %v3555 = vpop.f32.mrb[0].mxu0
        %v3556 = vpop.f32.mrb[0].mxu0
        %v3557 = vadd.f32 %v3405, %v3556
        %v3558 = vpop.f32.mrb[0].mxu0
        %3559 = vmatprep.mubr.bf16.mxu0 %v3367
        %3560 = vmatmul.mubr.bf16.gmra.mrb[0].mxu0 %v3366
        %v3561 = vpop.f32.mrb[0].mxu0
        %v3562 = vadd.f32 %v3405, %v3561
        %v3563 = vpop.f32.mrb[0].mxu0
        %v3564 = vpop.f32.mrb[0].mxu0
        %v3565 = vadd.f32 %v3405, %v3564
        %v3566 = vpop.f32.mrb[0].mxu0
        %3567 = vdwg.mxu0
        %v3568 = vadd.f32 %v1523, %v3538
        %v3569 = vadd.f32 %v1524, %v3541
        %v3570 = vadd.f32 %v1525, %v3546
        %v3571 = vadd.f32 %v1526, %v3549
        %v3572 = vadd.f32 %v1527, %v3554
        %v3573 = vadd.f32 %v1528, %v3557
        %v3574 = vadd.f32 %v1529, %v3562
        %v3575 = vadd.f32 %v1530, %v3565
        %3576 = vst.msk [vmem:[%s352] sm:$0xff] %vm431, %v3568
        %3577 = vst.msk [vmem:[%s352 + $0x8] sm:$0xff] %vm431, %v3569
        %3578 = vst.msk [vmem:[%s352 + $0x10] sm:$0xff] %vm431, %v3570
        %3579 = vst.msk [vmem:[%s352 + $0x18] sm:$0xff] %vm431, %v3571
        %3580 = vst.msk [vmem:[%s352 + $0x20] sm:$0xff] %vm431, %v3572
        %3581 = vst.msk [vmem:[%s352 + $0x28] sm:$0xff] %vm431, %v3573
        %3582 = vst.msk [vmem:[%s352 + $0x30] sm:$0xff] %vm431, %v3574
        %3583 = vst.msk [vmem:[%s352 + $0x38] sm:$0xff] %vm431, %v3575
        %s3584 = sand.u32 %s247, 1
        %s3585 = scalar_lea.sflag [#allocation3], %s3584
        %s3586 = sand.u32 %s247, 1
        %s3587 = smul.addr %s3586, 64
        %s3588 = scalar_lea.vmem [#allocation2], %s3587
        // Predicated region
        $region61: #{attention_block_forward.1} parent=59 // pred_check
          %p3589 = pneg %p257
        $region62: #{attention_block_forward.1} parent=59 // pred_check_branch
          %3591 = sbr.rel (%p3589) target = $region64
        $region63: #{attention_block_forward.1} parent=59 // pred_region
          %s3593 = ssub.s32 1024, 1024
          %3594 = vsyncadd %s3585, %s3593
          %s3595 = smul.addr %s24, 8
          %s3596 = smul.addr %s3595, 128
          %s3597 = scalar_lea.hbm %s10, %s3596
          %s3598 = sshll.u32 %s3588, 4
          %s3599 = int_to_ptr.vmem [resolvable:$true] %s3598
          %3604 = dma.vmem_to_hbm [thread:$0]  %s3599, 1024, %s3597, %s3585, 128, 128, 8
        $region64: #{attention_block_forward.1} parent=59 // pred_fallthru
          _
      $region60: #{attention_block_forward.1} parent=5 // pred_fallthru
        _
      %p3605 = scmp.le.s32.totalorder 2, %s19
      // Predicated region
      $region65: #{attention_block_forward.1} parent=5 // pred_check
        %p3606 = pneg %p3605
      $region66: #{attention_block_forward.1} parent=5 // pred_check_branch
        %3608 = sbr.rel (%p3606) target = $region68
      $region67: #{attention_block_forward.1} parent=5 // pred_region
        %s3609 = ssub.s32 %s19, 2
        // Predicated region
        $region69: #{attention_block_forward.1} parent=67 // pred_check
          %p3610 = pneg %p263
        $region70: #{attention_block_forward.1} parent=67 // pred_check_branch
          %3612 = sbr.rel (%p3610) target = $region72
        $region71: #{attention_block_forward.1} parent=67 // pred_region
          %s3613 = sand.u32 %s248, 1
          %s3614 = scalar_lea.sflag [#allocation3], %s3613
          %s3615 = sand.u32 %s248, 1
          %s3616 = smul.addr %s3615, 64
          %s3617 = scalar_lea.vmem [#allocation2], %s3616
          %3618 = dma.done %s3614, 1024
        $region72: #{attention_block_forward.1} parent=67 // pred_fallthru
          _
      $region68: #{attention_block_forward.1} parent=5 // pred_fallthru
        _
    $region6: #{attention_block_forward.1} parent=1 // loop_footer
      %s23 = sadd.s32 1, %s19
    $region7: #{attention_block_forward.1} parent=1 // loop_footer_branch
      %18 = sbr.rel target = $region3
    $region8: #{attention_block_forward.1} parent=1 // loop_exit
      _
    %3619 = vsyncpa [#allocation3], 1
    %s3620 = scalar_lea.sflag [#allocation3], 1
    %3621 = vsyncpa %s3620, 1

</llo_original>
